<compile_context>
chip_gen: v5e
topology: v5e:2x2
jax: 0.10.0
libtpu: 0.0.40
codegen_flags: <defaults>
</compile_context>

<pallas_src>
import functools

import jax
import jax.numpy as jnp
from jax.experimental import pallas as pl
from jax.experimental.pallas import tpu as pltpu


def _round_up(x, m):
    return ((x + m - 1) // m) * m


def _pick_block_b(batch, max_bb=8):
    """Largest divisor of `batch` not exceeding max_bb."""
    bb = 1
    for c in range(1, min(batch, max_bb) + 1):
        if batch % c == 0:
            bb = c
    return bb


# ---------------------------------------------------------------------------
# Fused TemporalBlock kernel
# ---------------------------------------------------------------------------
def _dilated_conv(w_ref, slab_ref, *, K, dilation, pad, pad_off, Wout):
    """K accumulating MXU matmuls reading the padded slab directly.

    slab layout per batch stripe: [pad_off zeros | data(Lp)], stripe width
    Sp = pad_off + Lp.  Returns the full-width (C_out, Wout) f32 result;
    stripe b's causal outputs live at columns [b*Sp, b*Sp + Lp).
    """
    base = pad_off - pad
    acc = jnp.dot(w_ref[0], slab_ref[:, base:base + Wout],
                  preferred_element_type=jnp.float32)
    for j in range(1, K):
        off = base + j * dilation
        acc = acc + jnp.dot(w_ref[j], slab_ref[:, off:off + Wout],
                            preferred_element_type=jnp.float32)
    return acc


def _block_kernel(x_ref, w1_ref, b1_ref, w2_ref, b2_ref, *rest,
                  K, dilation, pad, pad_off, Lp, block_b, has_downsample):
    if has_downsample:
        wd_ref, bd_ref, o_ref, xslab, o1slab = rest
    else:
        o_ref, xslab, o1slab = rest

    Sp = pad_off + Lp
    Wout = block_b * Sp - pad_off
    mdt = xslab.dtype                      # MXU operand dtype (f32 or bf16)

    # Build the striped, causally left-padded input slab.  Pad columns are
    # re-zeroed every step (cheap); data columns are fully overwritten.
    for bb in range(block_b):
        if pad_off:
            xslab[:, bb * Sp: bb * Sp + pad_off] = jnp.zeros(
                (xslab.shape[0], pad_off), mdt)
        xslab[:, bb * Sp + pad_off: (bb + 1) * Sp] = x_ref[bb].astype(mdt)

    # conv1 + bias + ReLU (f32 accumulation / bias / ReLU).
    out1 = jnp.maximum(
        _dilated_conv(w1_ref, xslab, K=K, dilation=dilation,
                      pad=pad, pad_off=pad_off, Wout=Wout) + b1_ref[...], 0.0)

    # out1 -> second slab (stays in VMEM, never round-trips HBM).
    for bb in range(block_b):
        if pad_off:
            o1slab[:, bb * Sp: bb * Sp + pad_off] = jnp.zeros(
                (o1slab.shape[0], pad_off), mdt)
        o1slab[:, bb * Sp + pad_off: bb * Sp + pad_off + Lp] = \
            out1[:, bb * Sp: bb * Sp + Lp].astype(mdt)

    # conv2 + bias + ReLU.
    out2 = jnp.maximum(
        _dilated_conv(w2_ref, o1slab, K=K, dilation=dilation,
                      pad=pad, pad_off=pad_off, Wout=Wout) + b2_ref[...], 0.0)

    # Residual path + per-stripe, lane-dense output stores.
    # Spec semantics: out + res, NO post-residual ReLU.
    for bb in range(block_b):
        xb = x_ref[bb]                                     # (C_in, Lp)
        if has_downsample:
            res = jnp.dot(wd_ref[...], xb.astype(wd_ref.dtype),
                          preferred_element_type=jnp.float32) + bd_ref[...]
        else:
            res = xb.astype(jnp.float32)
        o_ref[bb] = (out2[:, bb * Sp: bb * Sp + Lp] + res).astype(o_ref.dtype)


# ---------------------------------------------------------------------------
# pallas_call wrapper for one TemporalBlock
# ---------------------------------------------------------------------------
def temporal_block(x, p, *, kernel_size, dilation, block_b=None):
    """x: (B, C_in, Lp) with Lp a multiple of 128. Returns (B, C_out, Lp)."""
    B, C_in, Lp = x.shape
    assert Lp % 128 == 0
    K = kernel_size
    C_out = p["w1"].shape[1]
    pad = (K - 1) * dilation
    pad_off = _round_up(pad, 128) if pad else 0
    Sp = pad_off + Lp
    has_ds = p["wd"] is not None
    mxu_dtype = p["w1"].dtype

    if block_b is None:
        block_b = _pick_block_b(B)
    assert B % block_b == 0
    Wout = block_b * Sp - pad_off

    in_specs = [
        pl.BlockSpec((block_b, C_in, Lp), lambda i: (i, 0, 0)),   # x (batch block)
        pl.BlockSpec((K, C_out, C_in), lambda i: (0, 0, 0)),      # w1 (resident)
        pl.BlockSpec((C_out, 1), lambda i: (0, 0)),               # b1
        pl.BlockSpec((K, C_out, C_out), lambda i: (0, 0, 0)),     # w2
        pl.BlockSpec((C_out, 1), lambda i: (0, 0)),               # b2
    ]
    args = [x, p["w1"], p["b1"], p["w2"], p["b2"]]
    if has_ds:
        in_specs += [pl.BlockSpec((C_out, C_in), lambda i: (0, 0)),   # 1x1 ds
                     pl.BlockSpec((C_out, 1), lambda i: (0, 0))]
        args += [p["wd"], p["bd"]]

    kernel = functools.partial(
        _block_kernel, K=K, dilation=dilation, pad=pad, pad_off=pad_off,
        Lp=Lp, block_b=block_b, has_downsample=has_ds)

    # VMEM budget from the actual buffer sum (review item), with headroom.
    xb = x.dtype.itemsize
    mb = jnp.dtype(mxu_dtype).itemsize
    buf = 0
    buf += 2 * block_b * C_in * Lp * xb                 # x block (double buffered)
    buf += 2 * block_b * C_out * Lp * xb                # out block (double buffered)
    w_elems = K * C_out * (C_in + C_out) + (C_out * C_in if has_ds else 0)
    buf += 2 * (w_elems * mb + 3 * C_out * 4)           # weights + biases
    buf += (C_in + C_out) * block_b * Sp * mb           # conv slabs (scratch)
    buf += 3 * C_out * Wout * 4                         # f32 matmul temps headroom
    vmem_limit = int(min(max(2 * buf, 32 * 2 ** 20), 128 * 2 ** 20))

    return pl.pallas_call(
        kernel,
        out_shape=jax.ShapeDtypeStruct((B, C_out, Lp), x.dtype),
        grid=(B // block_b,),
        in_specs=in_specs,
        out_specs=pl.BlockSpec((block_b, C_out, Lp), lambda i: (i, 0, 0)),
        scratch_shapes=[pltpu.VMEM((C_in, block_b * Sp), mxu_dtype),
                        pltpu.VMEM((C_out, block_b * Sp), mxu_dtype)],
        compiler_params=pltpu.CompilerParams(
            dimension_semantics=("parallel",),
            vmem_limit_bytes=vmem_limit),
    )(*args)


def temporal_conv_net_fwd(x, params, wc, bc, kernel_size, block_b=None):
    """x: (B, C_in, L) -> logits (B, num_classes)."""
    B, C_in, L = x.shape
    Lp = _round_up(L, 128)
    if Lp != L:
        # Pad the time axis once so every kernel store is lane-dense; causal
        # (left-only) conv padding keeps positions < L exact.
        x = jnp.pad(x, ((0, 0), (0, 0), (0, Lp - L)))
    y = x
    for i, p in enumerate(params):
        y = temporal_block(y, p, kernel_size=kernel_size, dilation=2 ** i,
                           block_b=block_b)
    feat = y[:, :, L - 1]                  # last *real* time step, (B, C_last)
    # Classifier: one sub-vreg matmul; per review, let XLA handle it rather
    # than launching a separate pallas_call.
    # TODO(synk): fuse the classifier into the last block kernel and only
    # compute the output tile containing column L-1.
    return feat.astype(jnp.float32) @ wc + bc[None, :]


# ---------------------------------------------------------------------------
# Parameter construction (PyTorch layout) and kernel-layout preparation
# ---------------------------------------------------------------------------
def _kaiming(key, shape):
    fan_in = shape[1] * shape[2]
    return jax.random.normal(key, shape, jnp.float32) * jnp.sqrt(2.0 / fan_in)


def _weight_norm_fold(v, g):
    # nn.utils.weight_norm, dim=0: w = g * v / ||v|| (per-out-channel L2 norm).
    norm = jnp.sqrt(jnp.sum(v * v, axis=(1, 2), keepdims=True))
    return g.reshape(-1, 1, 1) * v / norm


def init_torch_params(key, in_channels, channels, kernel_size, num_classes):
    """Deterministic params in PyTorch Conv1d layout: weight (C_out, C_in, K).
    Biases are random here (PyTorch init zeroes them) purely to exercise the
    bias path in the self-test; forward semantics are identical."""
    params = []
    for i, out_ch in enumerate(channels):
        in_ch = in_channels if i == 0 else channels[i - 1]
        key, k1, k2, k3, k4, k5, k6 = jax.random.split(key, 7)
        v1 = _kaiming(k1, (out_ch, in_ch, kernel_size))
        g1 = jnp.sqrt(jnp.sum(v1 * v1, axis=(1, 2)))     # weight_norm init g=||v||
        v2 = _kaiming(k2, (out_ch, out_ch, kernel_size))
        g2 = jnp.sqrt(jnp.sum(v2 * v2, axis=(1, 2)))
        p = {"w1": _weight_norm_fold(v1, g1),
             "b1": 0.5 * jax.random.normal(k3, (out_ch,), jnp.float32),
             "w2": _weight_norm_fold(v2, g2),
             "b2": 0.5 * jax.random.normal(k4, (out_ch,), jnp.float32)}
        if in_ch != out_ch:
            p["wd"] = _kaiming(k5, (out_ch, in_ch, 1))
            p["bd"] = 0.5 * jax.random.normal(k6, (out_ch,), jnp.float32)
        else:
            p["wd"], p["bd"] = None, None
        params.append(p)
    c_last = channels[-1]
    key, kc = jax.random.split(key)
    bound = 1.0 / (c_last ** 0.5)
    wc = jax.random.uniform(kc, (c_last, num_classes), jnp.float32, -bound, bound)
    bc = jnp.zeros((num_classes,), jnp.float32)
    return params, wc, bc


def prepare_params(torch_params, mxu_dtype=jnp.float32):
    """Torch layout -> kernel layout.

    Conv weights become (K, C_out, C_in) so tap j is a lane-aligned w_ref[j]
    load; weights are stored in `mxu_dtype` (bf16 recommended on v6e/v7x);
    biases stay f32 (bias add / ReLU run in f32)."""
    prepped = []
    for p in torch_params:
        q = {"w1": jnp.transpose(p["w1"], (2, 0, 1)).astype(mxu_dtype),
             "b1": p["b1"].reshape(-1, 1).astype(jnp.float32),
             "w2": jnp.transpose(p["w2"], (2, 0, 1)).astype(mxu_dtype),
             "b2": p["b2"].reshape(-1, 1).astype(jnp.float32)}
        if p["wd"] is None:
            q["wd"], q["bd"] = None, None
        else:
            q["wd"] = p["wd"][:, :, 0].astype(mxu_dtype)      # (C_out, C_in)
            q["bd"] = p["bd"].reshape(-1, 1).astype(jnp.float32)
        prepped.append(q)
    return prepped


# ---------------------------------------------------------------------------
# Pure-JAX reference (mirrors the PyTorch forward exactly, incl. truncation)
# ---------------------------------------------------------------------------
def _ref_conv1d(x, w, b, dilation, padding):
    # PyTorch Conv1d (cross-correlation), stride 1. w: (C_out, C_in, K).
    B, C_in, L = x.shape
    C_out, _, K = w.shape
    L_out = L + 2 * padding - dilation * (K - 1)
    xp = jnp.pad(x, ((0, 0), (0, 0), (padding, padding)))
    out = jnp.zeros((B, C_out, L_out), jnp.float32)
    for j in range(K):
        out = out + jnp.einsum("oi,bil->bol", w[:, :, j],
                               xp[:, :, j * dilation: j * dilation + L_out])
    return out + b[None, :, None]


def _ref_block(x, p, kernel_size, dilation):
    pad = (kernel_size - 1) * dilation
    out = jax.nn.relu(_ref_conv1d(x, p["w1"], p["b1"], dilation, pad))
    out = jax.nn.relu(_ref_conv1d(out, p["w2"], p["b2"], dilation, pad))
    res = x if p["wd"] is None else _ref_conv1d(x, p["wd"], p["bd"], 1, 0)
    min_len = min(out.shape[2], res.shape[2])
    return out[:, :, :min_len] + res[:, :, :min_len]


def _ref_net(x, torch_params, wc, bc, kernel_size):
    y = x
    for i, p in enumerate(torch_params):
        y = _ref_block(y, p, kernel_size, 2 ** i)
    return y[:, :, -1] @ wc + bc[None, :]


# ---------------------------------------------------------------------------
if __name__ == "__main__":
    B, C_IN, L = 4, 8, 20
    CHANNELS = [8, 16, 16]     # exercises both residual branches (identity & 1x1)
    KSIZE = 3
    NUM_CLASSES = 4
    BLOCK_B = 2                # 2 batch items per grid step -> 2 grid steps

    key = jax.random.PRNGKey(0)
    kx, kp = jax.random.split(key)
    x = jax.random.normal(kx, (B, C_IN, L), jnp.float32)
    torch_params, wc, bc = init_torch_params(kp, C_IN, CHANNELS, KSIZE,
                                             NUM_CLASSES)

    ref = _ref_net(x, torch_params, wc, bc, KSIZE)
    ref_scale = float(jnp.max(jnp.abs(ref))) + 1e-6

    fwd = jax.jit(functools.partial(temporal_conv_net_fwd, kernel_size=KSIZE,
                                    block_b=BLOCK_B))

    # f32 MXU-operand path.
    params_f32 = prepare_params(torch_params, jnp.float32)
    out_f32 = jax.block_until_ready(fwd(x, params_f32, wc, bc))
    assert out_f32.shape == (B, NUM_CLASSES), out_f32.shape
    err_f32 = float(jnp.max(jnp.abs(out_f32 - ref))) / ref_scale
    if err_f32 > 5e-2:
        raise AssertionError(f"f32 path mismatch: relative error {err_f32}")

    # bf16 MXU-operand path (weights + conv slabs bf16, f32 accumulation).
    params_bf16 = prepare_params(torch_params, jnp.bfloat16)
    out_bf16 = jax.block_until_ready(fwd(x, params_bf16, wc, bc))
    err_bf16 = float(jnp.max(jnp.abs(out_bf16 - ref))) / ref_scale
    if err_bf16 > 1e-1:
        raise AssertionError(f"bf16 path mismatch: relative error {err_bf16}")

    print("KERNEL_OK")
</pallas_src>

<mosaic_0001>
module attributes {stable_mosaic.version = 11 : i64} {
  func.func @_block_kernel(%arg0: i32, %arg1: memref<2x8x128xf32, #tpu.memory_space<vmem>>, %arg2: memref<3x8x8xf32, #tpu.memory_space<vmem>>, %arg3: memref<8x1xf32, #tpu.memory_space<vmem>>, %arg4: memref<3x8x8xf32, #tpu.memory_space<vmem>>, %arg5: memref<8x1xf32, #tpu.memory_space<vmem>>, %arg6: memref<2x8x128xf32, #tpu.memory_space<vmem>>, %arg7: memref<8x512xf32, #tpu.memory_space<vmem>>, %arg8: memref<8x512xf32, #tpu.memory_space<vmem>>) attributes {dimension_semantics = [#tpu.dimension_semantics<parallel>], iteration_bounds = array<i64: 2>, scalar_prefetch = 0 : i64, scratch_operands = 2 : i64, tpu.core_type = #tpu.core_type<tc>, window_params = [{transform_indices = @transform_0, window_bounds = array<i64: 2, 8, 128>}, {pipeline_mode = #tpu.pipeline_mode<synchronous>, transform_indices = @transform_1, window_bounds = array<i64: 3, 8, 8>}, {pipeline_mode = #tpu.pipeline_mode<synchronous>, transform_indices = @transform_2, window_bounds = array<i64: 8, 1>}, {pipeline_mode = #tpu.pipeline_mode<synchronous>, transform_indices = @transform_3, window_bounds = array<i64: 3, 8, 8>}, {pipeline_mode = #tpu.pipeline_mode<synchronous>, transform_indices = @transform_4, window_bounds = array<i64: 8, 1>}, {transform_indices = @transform_5, window_bounds = array<i64: 2, 8, 128>}]} {
    %cst = arith.constant 0.000000e+00 : f32
    %0 = vector.broadcast %cst : f32 to vector<8x128xf32>
    %c0 = arith.constant 0 : index
    %c0_0 = arith.constant 0 : index
    %1 = vector.load %arg7[%c0, %c0_0] : memref<8x512xf32, #tpu.memory_space<vmem>>, vector<8x128xf32>
    tpu.vector_store %arg7[%c0, %c0_0], %0 {strides = array<i32>} : memref<8x512xf32, #tpu.memory_space<vmem>>, vector<8x128xf32>,
    %c0_1 = arith.constant 0 : index
    %c0_2 = arith.constant 0 : index
    %c0_3 = arith.constant 0 : index
    %2 = vector.load %arg1[%c0_1, %c0_2, %c0_3] : memref<2x8x128xf32, #tpu.memory_space<vmem>>, vector<1x8x128xf32>
    %3 = vector.shape_cast %2 : vector<1x8x128xf32> to vector<8x128xf32>
    %c0_4 = arith.constant 0 : index
    %c128 = arith.constant 128 : index
    %4 = vector.load %arg7[%c0_4, %c128] : memref<8x512xf32, #tpu.memory_space<vmem>>, vector<8x128xf32>
    tpu.vector_store %arg7[%c0_4, %c128], %3 {strides = array<i32>} : memref<8x512xf32, #tpu.memory_space<vmem>>, vector<8x128xf32>,
    %cst_5 = arith.constant 0.000000e+00 : f32
    %5 = vector.broadcast %cst_5 : f32 to vector<8x128xf32>
    %c0_6 = arith.constant 0 : index
    %c256 = arith.constant 256 : index
    %6 = vector.load %arg7[%c0_6, %c256] : memref<8x512xf32, #tpu.memory_space<vmem>>, vector<8x128xf32>
    tpu.vector_store %arg7[%c0_6, %c256], %5 {strides = array<i32>} : memref<8x512xf32, #tpu.memory_space<vmem>>, vector<8x128xf32>,
    %c1 = arith.constant 1 : index
    %c0_7 = arith.constant 0 : index
    %c0_8 = arith.constant 0 : index
    %7 = vector.load %arg1[%c1, %c0_7, %c0_8] : memref<2x8x128xf32, #tpu.memory_space<vmem>>, vector<1x8x128xf32>
    %8 = vector.shape_cast %7 : vector<1x8x128xf32> to vector<8x128xf32>
    %c0_9 = arith.constant 0 : index
    %c384 = arith.constant 384 : index
    %9 = vector.load %arg7[%c0_9, %c384] : memref<8x512xf32, #tpu.memory_space<vmem>>, vector<8x128xf32>
    tpu.vector_store %arg7[%c0_9, %c384], %8 {strides = array<i32>} : memref<8x512xf32, #tpu.memory_space<vmem>>, vector<8x128xf32>,
    %c0_10 = arith.constant 0 : index
    %c0_11 = arith.constant 0 : index
    %c0_12 = arith.constant 0 : index
    %10 = vector.load %arg2[%c0_10, %c0_11, %c0_12] : memref<3x8x8xf32, #tpu.memory_space<vmem>>, vector<1x8x8xf32>
    %11 = vector.shape_cast %10 : vector<1x8x8xf32> to vector<8x8xf32>
    %c0_13 = arith.constant 0 : index
    %c126 = arith.constant 126 : index
    %12 = vector.load %arg7[%c0_13, %c126] : memref<8x512xf32, #tpu.memory_space<vmem>>, vector<8x384xf32>
    %cst_14 = arith.constant dense<0.000000e+00> : vector<8x384xf32>
    %13 = tpu.matmul %11, %12, %cst_14 {dimension_numbers = #tpu.dot_dimension_numbers<[1], [0], [0], [1], [0, 0, 1, 1], [], []>} : vector<8x8xf32>, vector<8x384xf32>, vector<8x384xf32> -> vector<8x384xf32>
    %c1_15 = arith.constant 1 : index
    %c0_16 = arith.constant 0 : index
    %c0_17 = arith.constant 0 : index
    %14 = vector.load %arg2[%c1_15, %c0_16, %c0_17] : memref<3x8x8xf32, #tpu.memory_space<vmem>>, vector<1x8x8xf32>
    %15 = vector.shape_cast %14 : vector<1x8x8xf32> to vector<8x8xf32>
    %c0_18 = arith.constant 0 : index
    %c127 = arith.constant 127 : index
    %16 = vector.load %arg7[%c0_18, %c127] : memref<8x512xf32, #tpu.memory_space<vmem>>, vector<8x384xf32>
    %cst_19 = arith.constant dense<0.000000e+00> : vector<8x384xf32>
    %17 = tpu.matmul %15, %16, %cst_19 {dimension_numbers = #tpu.dot_dimension_numbers<[1], [0], [0], [1], [0, 0, 1, 1], [], []>} : vector<8x8xf32>, vector<8x384xf32>, vector<8x384xf32> -> vector<8x384xf32>
    %18 = arith.addf %13, %17 : vector<8x384xf32>
    %c2 = arith.constant 2 : index
    %c0_20 = arith.constant 0 : index
    %c0_21 = arith.constant 0 : index
    %19 = vector.load %arg2[%c2, %c0_20, %c0_21] : memref<3x8x8xf32, #tpu.memory_space<vmem>>, vector<1x8x8xf32>
    %20 = vector.shape_cast %19 : vector<1x8x8xf32> to vector<8x8xf32>
    %c0_22 = arith.constant 0 : index
    %c128_23 = arith.constant 128 : index
    %21 = vector.load %arg7[%c0_22, %c128_23] : memref<8x512xf32, #tpu.memory_space<vmem>>, vector<8x384xf32>
    %cst_24 = arith.constant dense<0.000000e+00> : vector<8x384xf32>
    %22 = tpu.matmul %20, %21, %cst_24 {dimension_numbers = #tpu.dot_dimension_numbers<[1], [0], [0], [1], [0, 0, 1, 1], [], []>} : vector<8x8xf32>, vector<8x384xf32>, vector<8x384xf32> -> vector<8x384xf32>
    %23 = arith.addf %18, %22 : vector<8x384xf32>
    %c0_25 = arith.constant 0 : index
    %c0_26 = arith.constant 0 : index
    %24 = vector.load %arg3[%c0_25, %c0_26] : memref<8x1xf32, #tpu.memory_space<vmem>>, vector<8x1xf32>
    %25 = vector.broadcast %24 : vector<8x1xf32> to vector<8x384xf32>
    %26 = arith.addf %23, %25 : vector<8x384xf32>
    %cst_27 = arith.constant 0.000000e+00 : f32
    %27 = vector.broadcast %cst_27 : f32 to vector<8x384xf32>
    %28 = arith.maximumf %26, %27 : vector<8x384xf32>
    %cst_28 = arith.constant 0.000000e+00 : f32
    %29 = vector.broadcast %cst_28 : f32 to vector<8x128xf32>
    %c0_29 = arith.constant 0 : index
    %c0_30 = arith.constant 0 : index
    %30 = vector.load %arg8[%c0_29, %c0_30] : memref<8x512xf32, #tpu.memory_space<vmem>>, vector<8x128xf32>
    tpu.vector_store %arg8[%c0_29, %c0_30], %29 {strides = array<i32>} : memref<8x512xf32, #tpu.memory_space<vmem>>, vector<8x128xf32>,
    %31 = vector.extract_strided_slice %28 {offsets = [0, 0], sizes = [8, 128], strides = [1, 1]} : vector<8x384xf32> to vector<8x128xf32>
    %c0_31 = arith.constant 0 : index
    %c128_32 = arith.constant 128 : index
    %32 = vector.load %arg8[%c0_31, %c128_32] : memref<8x512xf32, #tpu.memory_space<vmem>>, vector<8x128xf32>
    tpu.vector_store %arg8[%c0_31, %c128_32], %31 {strides = array<i32>} : memref<8x512xf32, #tpu.memory_space<vmem>>, vector<8x128xf32>,
    %cst_33 = arith.constant 0.000000e+00 : f32
    %33 = vector.broadcast %cst_33 : f32 to vector<8x128xf32>
    %c0_34 = arith.constant 0 : index
    %c256_35 = arith.constant 256 : index
    %34 = vector.load %arg8[%c0_34, %c256_35] : memref<8x512xf32, #tpu.memory_space<vmem>>, vector<8x128xf32>
    tpu.vector_store %arg8[%c0_34, %c256_35], %33 {strides = array<i32>} : memref<8x512xf32, #tpu.memory_space<vmem>>, vector<8x128xf32>,
    %35 = vector.extract_strided_slice %28 {offsets = [0, 256], sizes = [8, 128], strides = [1, 1]} : vector<8x384xf32> to vector<8x128xf32>
    %c0_36 = arith.constant 0 : index
    %c384_37 = arith.constant 384 : index
    %36 = vector.load %arg8[%c0_36, %c384_37] : memref<8x512xf32, #tpu.memory_space<vmem>>, vector<8x128xf32>
    tpu.vector_store %arg8[%c0_36, %c384_37], %35 {strides = array<i32>} : memref<8x512xf32, #tpu.memory_space<vmem>>, vector<8x128xf32>,
    %c0_38 = arith.constant 0 : index
    %c0_39 = arith.constant 0 : index
    %c0_40 = arith.constant 0 : index
    %37 = vector.load %arg4[%c0_38, %c0_39, %c0_40] : memref<3x8x8xf32, #tpu.memory_space<vmem>>, vector<1x8x8xf32>
    %38 = vector.shape_cast %37 : vector<1x8x8xf32> to vector<8x8xf32>
    %c0_41 = arith.constant 0 : index
    %c126_42 = arith.constant 126 : index
    %39 = vector.load %arg8[%c0_41, %c126_42] : memref<8x512xf32, #tpu.memory_space<vmem>>, vector<8x384xf32>
    %cst_43 = arith.constant dense<0.000000e+00> : vector<8x384xf32>
    %40 = tpu.matmul %38, %39, %cst_43 {dimension_numbers = #tpu.dot_dimension_numbers<[1], [0], [0], [1], [0, 0, 1, 1], [], []>} : vector<8x8xf32>, vector<8x384xf32>, vector<8x384xf32> -> vector<8x384xf32>
    %c1_44 = arith.constant 1 : index
    %c0_45 = arith.constant 0 : index
    %c0_46 = arith.constant 0 : index
    %41 = vector.load %arg4[%c1_44, %c0_45, %c0_46] : memref<3x8x8xf32, #tpu.memory_space<vmem>>, vector<1x8x8xf32>
    %42 = vector.shape_cast %41 : vector<1x8x8xf32> to vector<8x8xf32>
    %c0_47 = arith.constant 0 : index
    %c127_48 = arith.constant 127 : index
    %43 = vector.load %arg8[%c0_47, %c127_48] : memref<8x512xf32, #tpu.memory_space<vmem>>, vector<8x384xf32>
    %cst_49 = arith.constant dense<0.000000e+00> : vector<8x384xf32>
    %44 = tpu.matmul %42, %43, %cst_49 {dimension_numbers = #tpu.dot_dimension_numbers<[1], [0], [0], [1], [0, 0, 1, 1], [], []>} : vector<8x8xf32>, vector<8x384xf32>, vector<8x384xf32> -> vector<8x384xf32>
    %45 = arith.addf %40, %44 : vector<8x384xf32>
    %c2_50 = arith.constant 2 : index
    %c0_51 = arith.constant 0 : index
    %c0_52 = arith.constant 0 : index
    %46 = vector.load %arg4[%c2_50, %c0_51, %c0_52] : memref<3x8x8xf32, #tpu.memory_space<vmem>>, vector<1x8x8xf32>
    %47 = vector.shape_cast %46 : vector<1x8x8xf32> to vector<8x8xf32>
    %c0_53 = arith.constant 0 : index
    %c128_54 = arith.constant 128 : index
    %48 = vector.load %arg8[%c0_53, %c128_54] : memref<8x512xf32, #tpu.memory_space<vmem>>, vector<8x384xf32>
    %cst_55 = arith.constant dense<0.000000e+00> : vector<8x384xf32>
    %49 = tpu.matmul %47, %48, %cst_55 {dimension_numbers = #tpu.dot_dimension_numbers<[1], [0], [0], [1], [0, 0, 1, 1], [], []>} : vector<8x8xf32>, vector<8x384xf32>, vector<8x384xf32> -> vector<8x384xf32>
    %50 = arith.addf %45, %49 : vector<8x384xf32>
    %c0_56 = arith.constant 0 : index
    %c0_57 = arith.constant 0 : index
    %51 = vector.load %arg5[%c0_56, %c0_57] : memref<8x1xf32, #tpu.memory_space<vmem>>, vector<8x1xf32>
    %52 = vector.broadcast %51 : vector<8x1xf32> to vector<8x384xf32>
    %53 = arith.addf %50, %52 : vector<8x384xf32>
    %cst_58 = arith.constant 0.000000e+00 : f32
    %54 = vector.broadcast %cst_58 : f32 to vector<8x384xf32>
    %55 = arith.maximumf %53, %54 : vector<8x384xf32>
    %c0_59 = arith.constant 0 : index
    %c0_60 = arith.constant 0 : index
    %c0_61 = arith.constant 0 : index
    %56 = vector.load %arg1[%c0_59, %c0_60, %c0_61] : memref<2x8x128xf32, #tpu.memory_space<vmem>>, vector<1x8x128xf32>
    %57 = vector.shape_cast %56 : vector<1x8x128xf32> to vector<8x128xf32>
    %58 = vector.extract_strided_slice %55 {offsets = [0, 0], sizes = [8, 128], strides = [1, 1]} : vector<8x384xf32> to vector<8x128xf32>
    %59 = arith.addf %58, %57 : vector<8x128xf32>
    %c0_62 = arith.constant 0 : index
    %c0_63 = arith.constant 0 : index
    %c0_64 = arith.constant 0 : index
    %60 = vector.load %arg6[%c0_62, %c0_63, %c0_64] : memref<2x8x128xf32, #tpu.memory_space<vmem>>, vector<1x8x128xf32>
    %61 = vector.shape_cast %60 : vector<1x8x128xf32> to vector<8x128xf32>
    %62 = vector.shape_cast %59 : vector<8x128xf32> to vector<1x8x128xf32>
    tpu.vector_store %arg6[%c0_62, %c0_63, %c0_64], %62 {strides = array<i32>} : memref<2x8x128xf32, #tpu.memory_space<vmem>>, vector<1x8x128xf32>,
    %c1_65 = arith.constant 1 : index
    %c0_66 = arith.constant 0 : index
    %c0_67 = arith.constant 0 : index
    %63 = vector.load %arg1[%c1_65, %c0_66, %c0_67] : memref<2x8x128xf32, #tpu.memory_space<vmem>>, vector<1x8x128xf32>
    %64 = vector.shape_cast %63 : vector<1x8x128xf32> to vector<8x128xf32>
    %65 = vector.extract_strided_slice %55 {offsets = [0, 256], sizes = [8, 128], strides = [1, 1]} : vector<8x384xf32> to vector<8x128xf32>
    %66 = arith.addf %65, %64 : vector<8x128xf32>
    %c1_68 = arith.constant 1 : index
    %c0_69 = arith.constant 0 : index
    %c0_70 = arith.constant 0 : index
    %67 = vector.load %arg6[%c1_68, %c0_69, %c0_70] : memref<2x8x128xf32, #tpu.memory_space<vmem>>, vector<1x8x128xf32>
    %68 = vector.shape_cast %67 : vector<1x8x128xf32> to vector<8x128xf32>
    %69 = vector.shape_cast %66 : vector<8x128xf32> to vector<1x8x128xf32>
    tpu.vector_store %arg6[%c1_68, %c0_69, %c0_70], %69 {strides = array<i32>} : memref<2x8x128xf32, #tpu.memory_space<vmem>>, vector<1x8x128xf32>,
    return
  }
  func.func @transform_0(%arg0: i32) -> (i32, i32, i32) {
    %c0_i32 = arith.constant 0 : i32
    %c0_i32_0 = arith.constant 0 : i32
    %c0_i32_1 = arith.constant 0 : i32
    return %arg0, %c0_i32, %c0_i32_0 : i32, i32, i32
  }
  func.func @transform_1(%arg0: i32) -> (i32, i32, i32) {
    %c0_i32 = arith.constant 0 : i32
    %c0_i32_0 = arith.constant 0 : i32
    %c0_i32_1 = arith.constant 0 : i32
    %c0_i32_2 = arith.constant 0 : i32
    return %c0_i32, %c0_i32_0, %c0_i32_1 : i32, i32, i32
  }
  func.func @transform_2(%arg0: i32) -> (i32, i32) {
    %c0_i32 = arith.constant 0 : i32
    %c0_i32_0 = arith.constant 0 : i32
    %c0_i32_1 = arith.constant 0 : i32
    return %c0_i32, %c0_i32_0 : i32, i32
  }
  func.func @transform_3(%arg0: i32) -> (i32, i32, i32) {
    %c0_i32 = arith.constant 0 : i32
    %c0_i32_0 = arith.constant 0 : i32
    %c0_i32_1 = arith.constant 0 : i32
    %c0_i32_2 = arith.constant 0 : i32
    return %c0_i32, %c0_i32_0, %c0_i32_1 : i32, i32, i32
  }
  func.func @transform_4(%arg0: i32) -> (i32, i32) {
    %c0_i32 = arith.constant 0 : i32
    %c0_i32_0 = arith.constant 0 : i32
    %c0_i32_1 = arith.constant 0 : i32
    return %c0_i32, %c0_i32_0 : i32, i32
  }
  func.func @transform_5(%arg0: i32) -> (i32, i32, i32) {
    %c0_i32 = arith.constant 0 : i32
    %c0_i32_0 = arith.constant 0 : i32
    %c0_i32_1 = arith.constant 0 : i32
    return %arg0, %c0_i32, %c0_i32_0 : i32, i32, i32
  }
}

module attributes {stable_mosaic.version = 11 : i64} {
  func.func @_block_kernel(%arg0: i32, %arg1: memref<2x16x128xf32, #tpu.memory_space<vmem>>, %arg2: memref<3x16x16xf32, #tpu.memory_space<vmem>>, %arg3: memref<16x1xf32, #tpu.memory_space<vmem>>, %arg4: memref<3x16x16xf32, #tpu.memory_space<vmem>>, %arg5: memref<16x1xf32, #tpu.memory_space<vmem>>, %arg6: memref<2x16x128xf32, #tpu.memory_space<vmem>>, %arg7: memref<16x512xf32, #tpu.memory_space<vmem>>, %arg8: memref<16x512xf32, #tpu.memory_space<vmem>>) attributes {dimension_semantics = [#tpu.dimension_semantics<parallel>], iteration_bounds = array<i64: 2>, scalar_prefetch = 0 : i64, scratch_operands = 2 : i64, tpu.core_type = #tpu.core_type<tc>, window_params = [{transform_indices = @transform_0, window_bounds = array<i64: 2, 16, 128>}, {pipeline_mode = #tpu.pipeline_mode<synchronous>, transform_indices = @transform_1, window_bounds = array<i64: 3, 16, 16>}, {pipeline_mode = #tpu.pipeline_mode<synchronous>, transform_indices = @transform_2, window_bounds = array<i64: 16, 1>}, {pipeline_mode = #tpu.pipeline_mode<synchronous>, transform_indices = @transform_3, window_bounds = array<i64: 3, 16, 16>}, {pipeline_mode = #tpu.pipeline_mode<synchronous>, transform_indices = @transform_4, window_bounds = array<i64: 16, 1>}, {transform_indices = @transform_5, window_bounds = array<i64: 2, 16, 128>}]} {
    %cst = arith.constant 0.000000e+00 : f32
    %0 = vector.broadcast %cst : f32 to vector<16x128xf32>
    %c0 = arith.constant 0 : index
    %c0_0 = arith.constant 0 : index
    %1 = vector.load %arg7[%c0, %c0_0] : memref<16x512xf32, #tpu.memory_space<vmem>>, vector<16x128xf32>
    tpu.vector_store %arg7[%c0, %c0_0], %0 {strides = array<i32>} : memref<16x512xf32, #tpu.memory_space<vmem>>, vector<16x128xf32>,
    %c0_1 = arith.constant 0 : index
    %c0_2 = arith.constant 0 : index
    %c0_3 = arith.constant 0 : index
    %2 = vector.load %arg1[%c0_1, %c0_2, %c0_3] : memref<2x16x128xf32, #tpu.memory_space<vmem>>, vector<1x16x128xf32>
    %3 = vector.shape_cast %2 : vector<1x16x128xf32> to vector<16x128xf32>
    %c0_4 = arith.constant 0 : index
    %c128 = arith.constant 128 : index
    %4 = vector.load %arg7[%c0_4, %c128] : memref<16x512xf32, #tpu.memory_space<vmem>>, vector<16x128xf32>
    tpu.vector_store %arg7[%c0_4, %c128], %3 {strides = array<i32>} : memref<16x512xf32, #tpu.memory_space<vmem>>, vector<16x128xf32>,
    %cst_5 = arith.constant 0.000000e+00 : f32
    %5 = vector.broadcast %cst_5 : f32 to vector<16x128xf32>
    %c0_6 = arith.constant 0 : index
    %c256 = arith.constant 256 : index
    %6 = vector.load %arg7[%c0_6, %c256] : memref<16x512xf32, #tpu.memory_space<vmem>>, vector<16x128xf32>
    tpu.vector_store %arg7[%c0_6, %c256], %5 {strides = array<i32>} : memref<16x512xf32, #tpu.memory_space<vmem>>, vector<16x128xf32>,
    %c1 = arith.constant 1 : index
    %c0_7 = arith.constant 0 : index
    %c0_8 = arith.constant 0 : index
    %7 = vector.load %arg1[%c1, %c0_7, %c0_8] : memref<2x16x128xf32, #tpu.memory_space<vmem>>, vector<1x16x128xf32>
    %8 = vector.shape_cast %7 : vector<1x16x128xf32> to vector<16x128xf32>
    %c0_9 = arith.constant 0 : index
    %c384 = arith.constant 384 : index
    %9 = vector.load %arg7[%c0_9, %c384] : memref<16x512xf32, #tpu.memory_space<vmem>>, vector<16x128xf32>
    tpu.vector_store %arg7[%c0_9, %c384], %8 {strides = array<i32>} : memref<16x512xf32, #tpu.memory_space<vmem>>, vector<16x128xf32>,
    %c0_10 = arith.constant 0 : index
    %c0_11 = arith.constant 0 : index
    %c0_12 = arith.constant 0 : index
    %10 = vector.load %arg2[%c0_10, %c0_11, %c0_12] : memref<3x16x16xf32, #tpu.memory_space<vmem>>, vector<1x16x16xf32>
    %11 = vector.shape_cast %10 : vector<1x16x16xf32> to vector<16x16xf32>
    %c0_13 = arith.constant 0 : index
    %c120 = arith.constant 120 : index
    %12 = vector.load %arg7[%c0_13, %c120] : memref<16x512xf32, #tpu.memory_space<vmem>>, vector<16x384xf32>
    %cst_14 = arith.constant dense<0.000000e+00> : vector<16x384xf32>
    %13 = tpu.matmul %11, %12, %cst_14 {dimension_numbers = #tpu.dot_dimension_numbers<[1], [0], [0], [1], [0, 0, 1, 1], [], []>} : vector<16x16xf32>, vector<16x384xf32>, vector<16x384xf32> -> vector<16x384xf32>
    %c1_15 = arith.constant 1 : index
    %c0_16 = arith.constant 0 : index
    %c0_17 = arith.constant 0 : index
    %14 = vector.load %arg2[%c1_15, %c0_16, %c0_17] : memref<3x16x16xf32, #tpu.memory_space<vmem>>, vector<1x16x16xf32>
    %15 = vector.shape_cast %14 : vector<1x16x16xf32> to vector<16x16xf32>
    %c0_18 = arith.constant 0 : index
    %c124 = arith.constant 124 : index
    %16 = vector.load %arg7[%c0_18, %c124] : memref<16x512xf32, #tpu.memory_space<vmem>>, vector<16x384xf32>
    %cst_19 = arith.constant dense<0.000000e+00> : vector<16x384xf32>
    %17 = tpu.matmul %15, %16, %cst_19 {dimension_numbers = #tpu.dot_dimension_numbers<[1], [0], [0], [1], [0, 0, 1, 1], [], []>} : vector<16x16xf32>, vector<16x384xf32>, vector<16x384xf32> -> vector<16x384xf32>
    %18 = arith.addf %13, %17 : vector<16x384xf32>
    %c2 = arith.constant 2 : index
    %c0_20 = arith.constant 0 : index
    %c0_21 = arith.constant 0 : index
    %19 = vector.load %arg2[%c2, %c0_20, %c0_21] : memref<3x16x16xf32, #tpu.memory_space<vmem>>, vector<1x16x16xf32>
    %20 = vector.shape_cast %19 : vector<1x16x16xf32> to vector<16x16xf32>
    %c0_22 = arith.constant 0 : index
    %c128_23 = arith.constant 128 : index
    %21 = vector.load %arg7[%c0_22, %c128_23] : memref<16x512xf32, #tpu.memory_space<vmem>>, vector<16x384xf32>
    %cst_24 = arith.constant dense<0.000000e+00> : vector<16x384xf32>
    %22 = tpu.matmul %20, %21, %cst_24 {dimension_numbers = #tpu.dot_dimension_numbers<[1], [0], [0], [1], [0, 0, 1, 1], [], []>} : vector<16x16xf32>, vector<16x384xf32>, vector<16x384xf32> -> vector<16x384xf32>
    %23 = arith.addf %18, %22 : vector<16x384xf32>
    %c0_25 = arith.constant 0 : index
    %c0_26 = arith.constant 0 : index
    %24 = vector.load %arg3[%c0_25, %c0_26] : memref<16x1xf32, #tpu.memory_space<vmem>>, vector<16x1xf32>
    %25 = vector.broadcast %24 : vector<16x1xf32> to vector<16x384xf32>
    %26 = arith.addf %23, %25 : vector<16x384xf32>
    %cst_27 = arith.constant 0.000000e+00 : f32
    %27 = vector.broadcast %cst_27 : f32 to vector<16x384xf32>
    %28 = arith.maximumf %26, %27 : vector<16x384xf32>
    %cst_28 = arith.constant 0.000000e+00 : f32
    %29 = vector.broadcast %cst_28 : f32 to vector<16x128xf32>
    %c0_29 = arith.constant 0 : index
    %c0_30 = arith.constant 0 : index
    %30 = vector.load %arg8[%c0_29, %c0_30] : memref<16x512xf32, #tpu.memory_space<vmem>>, vector<16x128xf32>
    tpu.vector_store %arg8[%c0_29, %c0_30], %29 {strides = array<i32>} : memref<16x512xf32, #tpu.memory_space<vmem>>, vector<16x128xf32>,
    %31 = vector.extract_strided_slice %28 {offsets = [0, 0], sizes = [16, 128], strides = [1, 1]} : vector<16x384xf32> to vector<16x128xf32>
    %c0_31 = arith.constant 0 : index
    %c128_32 = arith.constant 128 : index
    %32 = vector.load %arg8[%c0_31, %c128_32] : memref<16x512xf32, #tpu.memory_space<vmem>>, vector<16x128xf32>
    tpu.vector_store %arg8[%c0_31, %c128_32], %31 {strides = array<i32>} : memref<16x512xf32, #tpu.memory_space<vmem>>, vector<16x128xf32>,
    %cst_33 = arith.constant 0.000000e+00 : f32
    %33 = vector.broadcast %cst_33 : f32 to vector<16x128xf32>
    %c0_34 = arith.constant 0 : index
    %c256_35 = arith.constant 256 : index
    %34 = vector.load %arg8[%c0_34, %c256_35] : memref<16x512xf32, #tpu.memory_space<vmem>>, vector<16x128xf32>
    tpu.vector_store %arg8[%c0_34, %c256_35], %33 {strides = array<i32>} : memref<16x512xf32, #tpu.memory_space<vmem>>, vector<16x128xf32>,
    %35 = vector.extract_strided_slice %28 {offsets = [0, 256], sizes = [16, 128], strides = [1, 1]} : vector<16x384xf32> to vector<16x128xf32>
    %c0_36 = arith.constant 0 : index
    %c384_37 = arith.constant 384 : index
    %36 = vector.load %arg8[%c0_36, %c384_37] : memref<16x512xf32, #tpu.memory_space<vmem>>, vector<16x128xf32>
    tpu.vector_store %arg8[%c0_36, %c384_37], %35 {strides = array<i32>} : memref<16x512xf32, #tpu.memory_space<vmem>>, vector<16x128xf32>,
    %c0_38 = arith.constant 0 : index
    %c0_39 = arith.constant 0 : index
    %c0_40 = arith.constant 0 : index
    %37 = vector.load %arg4[%c0_38, %c0_39, %c0_40] : memref<3x16x16xf32, #tpu.memory_space<vmem>>, vector<1x16x16xf32>
    %38 = vector.shape_cast %37 : vector<1x16x16xf32> to vector<16x16xf32>
    %c0_41 = arith.constant 0 : index
    %c120_42 = arith.constant 120 : index
    %39 = vector.load %arg8[%c0_41, %c120_42] : memref<16x512xf32, #tpu.memory_space<vmem>>, vector<16x384xf32>
    %cst_43 = arith.constant dense<0.000000e+00> : vector<16x384xf32>
    %40 = tpu.matmul %38, %39, %cst_43 {dimension_numbers = #tpu.dot_dimension_numbers<[1], [0], [0], [1], [0, 0, 1, 1], [], []>} : vector<16x16xf32>, vector<16x384xf32>, vector<16x384xf32> -> vector<16x384xf32>
    %c1_44 = arith.constant 1 : index
    %c0_45 = arith.constant 0 : index
    %c0_46 = arith.constant 0 : index
    %41 = vector.load %arg4[%c1_44, %c0_45, %c0_46] : memref<3x16x16xf32, #tpu.memory_space<vmem>>, vector<1x16x16xf32>
    %42 = vector.shape_cast %41 : vector<1x16x16xf32> to vector<16x16xf32>
    %c0_47 = arith.constant 0 : index
    %c124_48 = arith.constant 124 : index
    %43 = vector.load %arg8[%c0_47, %c124_48] : memref<16x512xf32, #tpu.memory_space<vmem>>, vector<16x384xf32>
    %cst_49 = arith.constant dense<0.000000e+00> : vector<16x384xf32>
    %44 = tpu.matmul %42, %43, %cst_49 {dimension_numbers = #tpu.dot_dimension_numbers<[1], [0], [0], [1], [0, 0, 1, 1], [], []>} : vector<16x16xf32>, vector<16x384xf32>, vector<16x384xf32> -> vector<16x384xf32>
    %45 = arith.addf %40, %44 : vector<16x384xf32>
    %c2_50 = arith.constant 2 : index
    %c0_51 = arith.constant 0 : index
    %c0_52 = arith.constant 0 : index
    %46 = vector.load %arg4[%c2_50, %c0_51, %c0_52] : memref<3x16x16xf32, #tpu.memory_space<vmem>>, vector<1x16x16xf32>
    %47 = vector.shape_cast %46 : vector<1x16x16xf32> to vector<16x16xf32>
    %c0_53 = arith.constant 0 : index
    %c128_54 = arith.constant 128 : index
    %48 = vector.load %arg8[%c0_53, %c128_54] : memref<16x512xf32, #tpu.memory_space<vmem>>, vector<16x384xf32>
    %cst_55 = arith.constant dense<0.000000e+00> : vector<16x384xf32>
    %49 = tpu.matmul %47, %48, %cst_55 {dimension_numbers = #tpu.dot_dimension_numbers<[1], [0], [0], [1], [0, 0, 1, 1], [], []>} : vector<16x16xf32>, vector<16x384xf32>, vector<16x384xf32> -> vector<16x384xf32>
    %50 = arith.addf %45, %49 : vector<16x384xf32>
    %c0_56 = arith.constant 0 : index
    %c0_57 = arith.constant 0 : index
    %51 = vector.load %arg5[%c0_56, %c0_57] : memref<16x1xf32, #tpu.memory_space<vmem>>, vector<16x1xf32>
    %52 = vector.broadcast %51 : vector<16x1xf32> to vector<16x384xf32>
    %53 = arith.addf %50, %52 : vector<16x384xf32>
    %cst_58 = arith.constant 0.000000e+00 : f32
    %54 = vector.broadcast %cst_58 : f32 to vector<16x384xf32>
    %55 = arith.maximumf %53, %54 : vector<16x384xf32>
    %c0_59 = arith.constant 0 : index
    %c0_60 = arith.constant 0 : index
    %c0_61 = arith.constant 0 : index
    %56 = vector.load %arg1[%c0_59, %c0_60, %c0_61] : memref<2x16x128xf32, #tpu.memory_space<vmem>>, vector<1x16x128xf32>
    %57 = vector.shape_cast %56 : vector<1x16x128xf32> to vector<16x128xf32>
    %58 = vector.extract_strided_slice %55 {offsets = [0, 0], sizes = [16, 128], strides = [1, 1]} : vector<16x384xf32> to vector<16x128xf32>
    %59 = arith.addf %58, %57 : vector<16x128xf32>
    %c0_62 = arith.constant 0 : index
    %c0_63 = arith.constant 0 : index
    %c0_64 = arith.constant 0 : index
    %60 = vector.load %arg6[%c0_62, %c0_63, %c0_64] : memref<2x16x128xf32, #tpu.memory_space<vmem>>, vector<1x16x128xf32>
    %61 = vector.shape_cast %60 : vector<1x16x128xf32> to vector<16x128xf32>
    %62 = vector.shape_cast %59 : vector<16x128xf32> to vector<1x16x128xf32>
    tpu.vector_store %arg6[%c0_62, %c0_63, %c0_64], %62 {strides = array<i32>} : memref<2x16x128xf32, #tpu.memory_space<vmem>>, vector<1x16x128xf32>,
    %c1_65 = arith.constant 1 : index
    %c0_66 = arith.constant 0 : index
    %c0_67 = arith.constant 0 : index
    %63 = vector.load %arg1[%c1_65, %c0_66, %c0_67] : memref<2x16x128xf32, #tpu.memory_space<vmem>>, vector<1x16x128xf32>
    %64 = vector.shape_cast %63 : vector<1x16x128xf32> to vector<16x128xf32>
    %65 = vector.extract_strided_slice %55 {offsets = [0, 256], sizes = [16, 128], strides = [1, 1]} : vector<16x384xf32> to vector<16x128xf32>
    %66 = arith.addf %65, %64 : vector<16x128xf32>
    %c1_68 = arith.constant 1 : index
    %c0_69 = arith.constant 0 : index
    %c0_70 = arith.constant 0 : index
    %67 = vector.load %arg6[%c1_68, %c0_69, %c0_70] : memref<2x16x128xf32, #tpu.memory_space<vmem>>, vector<1x16x128xf32>
    %68 = vector.shape_cast %67 : vector<1x16x128xf32> to vector<16x128xf32>
    %69 = vector.shape_cast %66 : vector<16x128xf32> to vector<1x16x128xf32>
    tpu.vector_store %arg6[%c1_68, %c0_69, %c0_70], %69 {strides = array<i32>} : memref<2x16x128xf32, #tpu.memory_space<vmem>>, vector<1x16x128xf32>,
    return
  }
  func.func @transform_0(%arg0: i32) -> (i32, i32, i32) {
    %c0_i32 = arith.constant 0 : i32
    %c0_i32_0 = arith.constant 0 : i32
    %c0_i32_1 = arith.constant 0 : i32
    return %arg0, %c0_i32, %c0_i32_0 : i32, i32, i32
  }
  func.func @transform_1(%arg0: i32) -> (i32, i32, i32) {
    %c0_i32 = arith.constant 0 : i32
    %c0_i32_0 = arith.constant 0 : i32
    %c0_i32_1 = arith.constant 0 : i32
    %c0_i32_2 = arith.constant 0 : i32
    return %c0_i32, %c0_i32_0, %c0_i32_1 : i32, i32, i32
  }
  func.func @transform_2(%arg0: i32) -> (i32, i32) {
    %c0_i32 = arith.constant 0 : i32
    %c0_i32_0 = arith.constant 0 : i32
    %c0_i32_1 = arith.constant 0 : i32
    return %c0_i32, %c0_i32_0 : i32, i32
  }
  func.func @transform_3(%arg0: i32) -> (i32, i32, i32) {
    %c0_i32 = arith.constant 0 : i32
    %c0_i32_0 = arith.constant 0 : i32
    %c0_i32_1 = arith.constant 0 : i32
    %c0_i32_2 = arith.constant 0 : i32
    return %c0_i32, %c0_i32_0, %c0_i32_1 : i32, i32, i32
  }
  func.func @transform_4(%arg0: i32) -> (i32, i32) {
    %c0_i32 = arith.constant 0 : i32
    %c0_i32_0 = arith.constant 0 : i32
    %c0_i32_1 = arith.constant 0 : i32
    return %c0_i32, %c0_i32_0 : i32, i32
  }
  func.func @transform_5(%arg0: i32) -> (i32, i32, i32) {
    %c0_i32 = arith.constant 0 : i32
    %c0_i32_0 = arith.constant 0 : i32
    %c0_i32_1 = arith.constant 0 : i32
    return %arg0, %c0_i32, %c0_i32_0 : i32, i32, i32
  }
}

module attributes {stable_mosaic.version = 11 : i64} {
  func.func @_block_kernel(%arg0: i32, %arg1: memref<2x8x128xf32, #tpu.memory_space<vmem>>, %arg2: memref<3x16x8xf32, #tpu.memory_space<vmem>>, %arg3: memref<16x1xf32, #tpu.memory_space<vmem>>, %arg4: memref<3x16x16xf32, #tpu.memory_space<vmem>>, %arg5: memref<16x1xf32, #tpu.memory_space<vmem>>, %arg6: memref<16x8xf32, #tpu.memory_space<vmem>>, %arg7: memref<16x1xf32, #tpu.memory_space<vmem>>, %arg8: memref<2x16x128xf32, #tpu.memory_space<vmem>>, %arg9: memref<8x512xf32, #tpu.memory_space<vmem>>, %arg10: memref<16x512xf32, #tpu.memory_space<vmem>>) attributes {dimension_semantics = [#tpu.dimension_semantics<parallel>], iteration_bounds = array<i64: 2>, scalar_prefetch = 0 : i64, scratch_operands = 2 : i64, tpu.core_type = #tpu.core_type<tc>, window_params = [{transform_indices = @transform_0, window_bounds = array<i64: 2, 8, 128>}, {pipeline_mode = #tpu.pipeline_mode<synchronous>, transform_indices = @transform_1, window_bounds = array<i64: 3, 16, 8>}, {pipeline_mode = #tpu.pipeline_mode<synchronous>, transform_indices = @transform_2, window_bounds = array<i64: 16, 1>}, {pipeline_mode = #tpu.pipeline_mode<synchronous>, transform_indices = @transform_3, window_bounds = array<i64: 3, 16, 16>}, {pipeline_mode = #tpu.pipeline_mode<synchronous>, transform_indices = @transform_4, window_bounds = array<i64: 16, 1>}, {pipeline_mode = #tpu.pipeline_mode<synchronous>, transform_indices = @transform_5, window_bounds = array<i64: 16, 8>}, {pipeline_mode = #tpu.pipeline_mode<synchronous>, transform_indices = @transform_6, window_bounds = array<i64: 16, 1>}, {transform_indices = @transform_7, window_bounds = array<i64: 2, 16, 128>}]} {
    %cst = arith.constant 0.000000e+00 : f32
    %0 = vector.broadcast %cst : f32 to vector<8x128xf32>
    %c0 = arith.constant 0 : index
    %c0_0 = arith.constant 0 : index
    %1 = vector.load %arg9[%c0, %c0_0] : memref<8x512xf32, #tpu.memory_space<vmem>>, vector<8x128xf32>
    tpu.vector_store %arg9[%c0, %c0_0], %0 {strides = array<i32>} : memref<8x512xf32, #tpu.memory_space<vmem>>, vector<8x128xf32>,
    %c0_1 = arith.constant 0 : index
    %c0_2 = arith.constant 0 : index
    %c0_3 = arith.constant 0 : index
    %2 = vector.load %arg1[%c0_1, %c0_2, %c0_3] : memref<2x8x128xf32, #tpu.memory_space<vmem>>, vector<1x8x128xf32>
    %3 = vector.shape_cast %2 : vector<1x8x128xf32> to vector<8x128xf32>
    %c0_4 = arith.constant 0 : index
    %c128 = arith.constant 128 : index
    %4 = vector.load %arg9[%c0_4, %c128] : memref<8x512xf32, #tpu.memory_space<vmem>>, vector<8x128xf32>
    tpu.vector_store %arg9[%c0_4, %c128], %3 {strides = array<i32>} : memref<8x512xf32, #tpu.memory_space<vmem>>, vector<8x128xf32>,
    %cst_5 = arith.constant 0.000000e+00 : f32
    %5 = vector.broadcast %cst_5 : f32 to vector<8x128xf32>
    %c0_6 = arith.constant 0 : index
    %c256 = arith.constant 256 : index
    %6 = vector.load %arg9[%c0_6, %c256] : memref<8x512xf32, #tpu.memory_space<vmem>>, vector<8x128xf32>
    tpu.vector_store %arg9[%c0_6, %c256], %5 {strides = array<i32>} : memref<8x512xf32, #tpu.memory_space<vmem>>, vector<8x128xf32>,
    %c1 = arith.constant 1 : index
    %c0_7 = arith.constant 0 : index
    %c0_8 = arith.constant 0 : index
    %7 = vector.load %arg1[%c1, %c0_7, %c0_8] : memref<2x8x128xf32, #tpu.memory_space<vmem>>, vector<1x8x128xf32>
    %8 = vector.shape_cast %7 : vector<1x8x128xf32> to vector<8x128xf32>
    %c0_9 = arith.constant 0 : index
    %c384 = arith.constant 384 : index
    %9 = vector.load %arg9[%c0_9, %c384] : memref<8x512xf32, #tpu.memory_space<vmem>>, vector<8x128xf32>
    tpu.vector_store %arg9[%c0_9, %c384], %8 {strides = array<i32>} : memref<8x512xf32, #tpu.memory_space<vmem>>, vector<8x128xf32>,
    %c0_10 = arith.constant 0 : index
    %c0_11 = arith.constant 0 : index
    %c0_12 = arith.constant 0 : index
    %10 = vector.load %arg2[%c0_10, %c0_11, %c0_12] : memref<3x16x8xf32, #tpu.memory_space<vmem>>, vector<1x16x8xf32>
    %11 = vector.shape_cast %10 : vector<1x16x8xf32> to vector<16x8xf32>
    %c0_13 = arith.constant 0 : index
    %c124 = arith.constant 124 : index
    %12 = vector.load %arg9[%c0_13, %c124] : memref<8x512xf32, #tpu.memory_space<vmem>>, vector<8x384xf32>
    %cst_14 = arith.constant dense<0.000000e+00> : vector<16x384xf32>
    %13 = tpu.matmul %11, %12, %cst_14 {dimension_numbers = #tpu.dot_dimension_numbers<[1], [0], [0], [1], [0, 0, 1, 1], [], []>} : vector<16x8xf32>, vector<8x384xf32>, vector<16x384xf32> -> vector<16x384xf32>
    %c1_15 = arith.constant 1 : index
    %c0_16 = arith.constant 0 : index
    %c0_17 = arith.constant 0 : index
    %14 = vector.load %arg2[%c1_15, %c0_16, %c0_17] : memref<3x16x8xf32, #tpu.memory_space<vmem>>, vector<1x16x8xf32>
    %15 = vector.shape_cast %14 : vector<1x16x8xf32> to vector<16x8xf32>
    %c0_18 = arith.constant 0 : index
    %c126 = arith.constant 126 : index
    %16 = vector.load %arg9[%c0_18, %c126] : memref<8x512xf32, #tpu.memory_space<vmem>>, vector<8x384xf32>
    %cst_19 = arith.constant dense<0.000000e+00> : vector<16x384xf32>
    %17 = tpu.matmul %15, %16, %cst_19 {dimension_numbers = #tpu.dot_dimension_numbers<[1], [0], [0], [1], [0, 0, 1, 1], [], []>} : vector<16x8xf32>, vector<8x384xf32>, vector<16x384xf32> -> vector<16x384xf32>
    %18 = arith.addf %13, %17 : vector<16x384xf32>
    %c2 = arith.constant 2 : index
    %c0_20 = arith.constant 0 : index
    %c0_21 = arith.constant 0 : index
    %19 = vector.load %arg2[%c2, %c0_20, %c0_21] : memref<3x16x8xf32, #tpu.memory_space<vmem>>, vector<1x16x8xf32>
    %20 = vector.shape_cast %19 : vector<1x16x8xf32> to vector<16x8xf32>
    %c0_22 = arith.constant 0 : index
    %c128_23 = arith.constant 128 : index
    %21 = vector.load %arg9[%c0_22, %c128_23] : memref<8x512xf32, #tpu.memory_space<vmem>>, vector<8x384xf32>
    %cst_24 = arith.constant dense<0.000000e+00> : vector<16x384xf32>
    %22 = tpu.matmul %20, %21, %cst_24 {dimension_numbers = #tpu.dot_dimension_numbers<[1], [0], [0], [1], [0, 0, 1, 1], [], []>} : vector<16x8xf32>, vector<8x384xf32>, vector<16x384xf32> -> vector<16x384xf32>
    %23 = arith.addf %18, %22 : vector<16x384xf32>
    %c0_25 = arith.constant 0 : index
    %c0_26 = arith.constant 0 : index
    %24 = vector.load %arg3[%c0_25, %c0_26] : memref<16x1xf32, #tpu.memory_space<vmem>>, vector<16x1xf32>
    %25 = vector.broadcast %24 : vector<16x1xf32> to vector<16x384xf32>
    %26 = arith.addf %23, %25 : vector<16x384xf32>
    %cst_27 = arith.constant 0.000000e+00 : f32
    %27 = vector.broadcast %cst_27 : f32 to vector<16x384xf32>
    %28 = arith.maximumf %26, %27 : vector<16x384xf32>
    %cst_28 = arith.constant 0.000000e+00 : f32
    %29 = vector.broadcast %cst_28 : f32 to vector<16x128xf32>
    %c0_29 = arith.constant 0 : index
    %c0_30 = arith.constant 0 : index
    %30 = vector.load %arg10[%c0_29, %c0_30] : memref<16x512xf32, #tpu.memory_space<vmem>>, vector<16x128xf32>
    tpu.vector_store %arg10[%c0_29, %c0_30], %29 {strides = array<i32>} : memref<16x512xf32, #tpu.memory_space<vmem>>, vector<16x128xf32>,
    %31 = vector.extract_strided_slice %28 {offsets = [0, 0], sizes = [16, 128], strides = [1, 1]} : vector<16x384xf32> to vector<16x128xf32>
    %c0_31 = arith.constant 0 : index
    %c128_32 = arith.constant 128 : index
    %32 = vector.load %arg10[%c0_31, %c128_32] : memref<16x512xf32, #tpu.memory_space<vmem>>, vector<16x128xf32>
    tpu.vector_store %arg10[%c0_31, %c128_32], %31 {strides = array<i32>} : memref<16x512xf32, #tpu.memory_space<vmem>>, vector<16x128xf32>,
    %cst_33 = arith.constant 0.000000e+00 : f32
    %33 = vector.broadcast %cst_33 : f32 to vector<16x128xf32>
    %c0_34 = arith.constant 0 : index
    %c256_35 = arith.constant 256 : index
    %34 = vector.load %arg10[%c0_34, %c256_35] : memref<16x512xf32, #tpu.memory_space<vmem>>, vector<16x128xf32>
    tpu.vector_store %arg10[%c0_34, %c256_35], %33 {strides = array<i32>} : memref<16x512xf32, #tpu.memory_space<vmem>>, vector<16x128xf32>,
    %35 = vector.extract_strided_slice %28 {offsets = [0, 256], sizes = [16, 128], strides = [1, 1]} : vector<16x384xf32> to vector<16x128xf32>
    %c0_36 = arith.constant 0 : index
    %c384_37 = arith.constant 384 : index
    %36 = vector.load %arg10[%c0_36, %c384_37] : memref<16x512xf32, #tpu.memory_space<vmem>>, vector<16x128xf32>
    tpu.vector_store %arg10[%c0_36, %c384_37], %35 {strides = array<i32>} : memref<16x512xf32, #tpu.memory_space<vmem>>, vector<16x128xf32>,
    %c0_38 = arith.constant 0 : index
    %c0_39 = arith.constant 0 : index
    %c0_40 = arith.constant 0 : index
    %37 = vector.load %arg4[%c0_38, %c0_39, %c0_40] : memref<3x16x16xf32, #tpu.memory_space<vmem>>, vector<1x16x16xf32>
    %38 = vector.shape_cast %37 : vector<1x16x16xf32> to vector<16x16xf32>
    %c0_41 = arith.constant 0 : index
    %c124_42 = arith.constant 124 : index
    %39 = vector.load %arg10[%c0_41, %c124_42] : memref<16x512xf32, #tpu.memory_space<vmem>>, vector<16x384xf32>
    %cst_43 = arith.constant dense<0.000000e+00> : vector<16x384xf32>
    %40 = tpu.matmul %38, %39, %cst_43 {dimension_numbers = #tpu.dot_dimension_numbers<[1], [0], [0], [1], [0, 0, 1, 1], [], []>} : vector<16x16xf32>, vector<16x384xf32>, vector<16x384xf32> -> vector<16x384xf32>
    %c1_44 = arith.constant 1 : index
    %c0_45 = arith.constant 0 : index
    %c0_46 = arith.constant 0 : index
    %41 = vector.load %arg4[%c1_44, %c0_45, %c0_46] : memref<3x16x16xf32, #tpu.memory_space<vmem>>, vector<1x16x16xf32>
    %42 = vector.shape_cast %41 : vector<1x16x16xf32> to vector<16x16xf32>
    %c0_47 = arith.constant 0 : index
    %c126_48 = arith.constant 126 : index
    %43 = vector.load %arg10[%c0_47, %c126_48] : memref<16x512xf32, #tpu.memory_space<vmem>>, vector<16x384xf32>
    %cst_49 = arith.constant dense<0.000000e+00> : vector<16x384xf32>
    %44 = tpu.matmul %42, %43, %cst_49 {dimension_numbers = #tpu.dot_dimension_numbers<[1], [0], [0], [1], [0, 0, 1, 1], [], []>} : vector<16x16xf32>, vector<16x384xf32>, vector<16x384xf32> -> vector<16x384xf32>
    %45 = arith.addf %40, %44 : vector<16x384xf32>
    %c2_50 = arith.constant 2 : index
    %c0_51 = arith.constant 0 : index
    %c0_52 = arith.constant 0 : index
    %46 = vector.load %arg4[%c2_50, %c0_51, %c0_52] : memref<3x16x16xf32, #tpu.memory_space<vmem>>, vector<1x16x16xf32>
    %47 = vector.shape_cast %46 : vector<1x16x16xf32> to vector<16x16xf32>
    %c0_53 = arith.constant 0 : index
    %c128_54 = arith.constant 128 : index
    %48 = vector.load %arg10[%c0_53, %c128_54] : memref<16x512xf32, #tpu.memory_space<vmem>>, vector<16x384xf32>
    %cst_55 = arith.constant dense<0.000000e+00> : vector<16x384xf32>
    %49 = tpu.matmul %47, %48, %cst_55 {dimension_numbers = #tpu.dot_dimension_numbers<[1], [0], [0], [1], [0, 0, 1, 1], [], []>} : vector<16x16xf32>, vector<16x384xf32>, vector<16x384xf32> -> vector<16x384xf32>
    %50 = arith.addf %45, %49 : vector<16x384xf32>
    %c0_56 = arith.constant 0 : index
    %c0_57 = arith.constant 0 : index
    %51 = vector.load %arg5[%c0_56, %c0_57] : memref<16x1xf32, #tpu.memory_space<vmem>>, vector<16x1xf32>
    %52 = vector.broadcast %51 : vector<16x1xf32> to vector<16x384xf32>
    %53 = arith.addf %50, %52 : vector<16x384xf32>
    %cst_58 = arith.constant 0.000000e+00 : f32
    %54 = vector.broadcast %cst_58 : f32 to vector<16x384xf32>
    %55 = arith.maximumf %53, %54 : vector<16x384xf32>
    %c0_59 = arith.constant 0 : index
    %c0_60 = arith.constant 0 : index
    %c0_61 = arith.constant 0 : index
    %56 = vector.load %arg1[%c0_59, %c0_60, %c0_61] : memref<2x8x128xf32, #tpu.memory_space<vmem>>, vector<1x8x128xf32>
    %57 = vector.shape_cast %56 : vector<1x8x128xf32> to vector<8x128xf32>
    %c0_62 = arith.constant 0 : index
    %c0_63 = arith.constant 0 : index
    %58 = vector.load %arg6[%c0_62, %c0_63] : memref<16x8xf32, #tpu.memory_space<vmem>>, vector<16x8xf32>
    %cst_64 = arith.constant dense<0.000000e+00> : vector<16x128xf32>
    %59 = tpu.matmul %58, %57, %cst_64 {dimension_numbers = #tpu.dot_dimension_numbers<[1], [0], [0], [1], [0, 0, 1, 1], [], []>} : vector<16x8xf32>, vector<8x128xf32>, vector<16x128xf32> -> vector<16x128xf32>
    %c0_65 = arith.constant 0 : index
    %c0_66 = arith.constant 0 : index
    %60 = vector.load %arg7[%c0_65, %c0_66] : memref<16x1xf32, #tpu.memory_space<vmem>>, vector<16x1xf32>
    %61 = vector.broadcast %60 : vector<16x1xf32> to vector<16x128xf32>
    %62 = arith.addf %59, %61 : vector<16x128xf32>
    %63 = vector.extract_strided_slice %55 {offsets = [0, 0], sizes = [16, 128], strides = [1, 1]} : vector<16x384xf32> to vector<16x128xf32>
    %64 = arith.addf %63, %62 : vector<16x128xf32>
    %c0_67 = arith.constant 0 : index
    %c0_68 = arith.constant 0 : index
    %c0_69 = arith.constant 0 : index
    %65 = vector.load %arg8[%c0_67, %c0_68, %c0_69] : memref<2x16x128xf32, #tpu.memory_space<vmem>>, vector<1x16x128xf32>
    %66 = vector.shape_cast %65 : vector<1x16x128xf32> to vector<16x128xf32>
    %67 = vector.shape_cast %64 : vector<16x128xf32> to vector<1x16x128xf32>
    tpu.vector_store %arg8[%c0_67, %c0_68, %c0_69], %67 {strides = array<i32>} : memref<2x16x128xf32, #tpu.memory_space<vmem>>, vector<1x16x128xf32>,
    %c1_70 = arith.constant 1 : index
    %c0_71 = arith.constant 0 : index
    %c0_72 = arith.constant 0 : index
    %68 = vector.load %arg1[%c1_70, %c0_71, %c0_72] : memref<2x8x128xf32, #tpu.memory_space<vmem>>, vector<1x8x128xf32>
    %69 = vector.shape_cast %68 : vector<1x8x128xf32> to vector<8x128xf32>
    %c0_73 = arith.constant 0 : index
    %c0_74 = arith.constant 0 : index
    %70 = vector.load %arg6[%c0_73, %c0_74] : memref<16x8xf32, #tpu.memory_space<vmem>>, vector<16x8xf32>
    %cst_75 = arith.constant dense<0.000000e+00> : vector<16x128xf32>
    %71 = tpu.matmul %70, %69, %cst_75 {dimension_numbers = #tpu.dot_dimension_numbers<[1], [0], [0], [1], [0, 0, 1, 1], [], []>} : vector<16x8xf32>, vector<8x128xf32>, vector<16x128xf32> -> vector<16x128xf32>
    %c0_76 = arith.constant 0 : index
    %c0_77 = arith.constant 0 : index
    %72 = vector.load %arg7[%c0_76, %c0_77] : memref<16x1xf32, #tpu.memory_space<vmem>>, vector<16x1xf32>
    %73 = vector.broadcast %72 : vector<16x1xf32> to vector<16x128xf32>
    %74 = arith.addf %71, %73 : vector<16x128xf32>
    %75 = vector.extract_strided_slice %55 {offsets = [0, 256], sizes = [16, 128], strides = [1, 1]} : vector<16x384xf32> to vector<16x128xf32>
    %76 = arith.addf %75, %74 : vector<16x128xf32>
    %c1_78 = arith.constant 1 : index
    %c0_79 = arith.constant 0 : index
    %c0_80 = arith.constant 0 : index
    %77 = vector.load %arg8[%c1_78, %c0_79, %c0_80] : memref<2x16x128xf32, #tpu.memory_space<vmem>>, vector<1x16x128xf32>
    %78 = vector.shape_cast %77 : vector<1x16x128xf32> to vector<16x128xf32>
    %79 = vector.shape_cast %76 : vector<16x128xf32> to vector<1x16x128xf32>
    tpu.vector_store %arg8[%c1_78, %c0_79, %c0_80], %79 {strides = array<i32>} : memref<2x16x128xf32, #tpu.memory_space<vmem>>, vector<1x16x128xf32>,
    return
  }
  func.func @transform_0(%arg0: i32) -> (i32, i32, i32) {
    %c0_i32 = arith.constant 0 : i32
    %c0_i32_0 = arith.constant 0 : i32
    %c0_i32_1 = arith.constant 0 : i32
    return %arg0, %c0_i32, %c0_i32_0 : i32, i32, i32
  }
  func.func @transform_1(%arg0: i32) -> (i32, i32, i32) {
    %c0_i32 = arith.constant 0 : i32
    %c0_i32_0 = arith.constant 0 : i32
    %c0_i32_1 = arith.constant 0 : i32
    %c0_i32_2 = arith.constant 0 : i32
    return %c0_i32, %c0_i32_0, %c0_i32_1 : i32, i32, i32
  }
  func.func @transform_2(%arg0: i32) -> (i32, i32) {
    %c0_i32 = arith.constant 0 : i32
    %c0_i32_0 = arith.constant 0 : i32
    %c0_i32_1 = arith.constant 0 : i32
    return %c0_i32, %c0_i32_0 : i32, i32
  }
  func.func @transform_3(%arg0: i32) -> (i32, i32, i32) {
    %c0_i32 = arith.constant 0 : i32
    %c0_i32_0 = arith.constant 0 : i32
    %c0_i32_1 = arith.constant 0 : i32
    %c0_i32_2 = arith.constant 0 : i32
    return %c0_i32, %c0_i32_0, %c0_i32_1 : i32, i32, i32
  }
  func.func @transform_4(%arg0: i32) -> (i32, i32) {
    %c0_i32 = arith.constant 0 : i32
    %c0_i32_0 = arith.constant 0 : i32
    %c0_i32_1 = arith.constant 0 : i32
    return %c0_i32, %c0_i32_0 : i32, i32
  }
  func.func @transform_5(%arg0: i32) -> (i32, i32) {
    %c0_i32 = arith.constant 0 : i32
    %c0_i32_0 = arith.constant 0 : i32
    %c0_i32_1 = arith.constant 0 : i32
    return %c0_i32, %c0_i32_0 : i32, i32
  }
  func.func @transform_6(%arg0: i32) -> (i32, i32) {
    %c0_i32 = arith.constant 0 : i32
    %c0_i32_0 = arith.constant 0 : i32
    %c0_i32_1 = arith.constant 0 : i32
    return %c0_i32, %c0_i32_0 : i32, i32
  }
  func.func @transform_7(%arg0: i32) -> (i32, i32, i32) {
    %c0_i32 = arith.constant 0 : i32
    %c0_i32_0 = arith.constant 0 : i32
    %c0_i32_1 = arith.constant 0 : i32
    return %arg0, %c0_i32, %c0_i32_0 : i32, i32, i32
  }
}

</mosaic_0001>

<llo_original>
// kernel: temporal_conv_net_fwd.3
$region0: #{temporal_conv_net_fwd.3}
  #allocation0 [shape = 'u32[]', space=smem, size = 0x4, offset = 0x4, fixed_abs, tag = 'smem constant byte address 0x4 - core index']
  #allocation1 [shape = 'u32[72,128]{1,0:T(1,128)}', space=vmem, size = 0x9000, scoped, tag = 'internal scratch']
  #allocation2 [shape = 'f32[8,512]{1,0:T(8,128)}', space=vmem, size = 0x4000, scoped, tag = 'scratch operand']
  #allocation3 [shape = 'f32[8,512]{1,0:T(8,128)}', space=vmem, size = 0x4000, scoped, tag = 'scratch operand']
  %s0 = inlined_call_operand.vmem [shape: f32[4,8,128], index: 0, kind: input, shape index: {}]
  %s1 = inlined_call_operand.hbm [shape: f32[3,8,8], index: 1, kind: input, shape index: {}]
  %s2 = inlined_call_operand.vmem [shape: f32[8,1], index: 2, kind: input, shape index: {}]
  %s3 = inlined_call_operand.hbm [shape: f32[3,8,8], index: 3, kind: input, shape index: {}]
  %s4 = inlined_call_operand.vmem [shape: f32[8,1], index: 4, kind: input, shape index: {}]
  %s5 = inlined_call_operand.vmem [shape: f32[4,8,128], index: 5, kind: output, shape index: {}]
  %s6 = sld [smem:[#allocation0]]
  $region61: #{temporal_conv_net_fwd.3} parent=0
    _
  %s8 = ssub.s32 1, %s6
  %s9 = scalar_select 0, %s8, %s6
  $region1: #{temporal_conv_net_fwd.3} parent=0
    #allocation4 [shape = 'u8[12288]{0}', space=vmem, size = 0x3000, scoped, tag = 'input window, operand 1, single buffered']
    #allocation5 [shape = 's32[2]{0}', space=sflag, size = 0x8, scoped, tag = 'scoped memory for temporal_conv_net_fwd.3']
    #allocation6 [shape = 'u8[12288]{0}', space=vmem, size = 0x3000, scoped, tag = 'input window, operand 3, single buffered']
    #allocation7 [shape = 's32[1]{0}', space=sflag, size = 0x4, scoped, tag = 'scoped memory for temporal_conv_net_fwd.3']
    %10 = vsyncpa [#allocation5], 0
    %11 = vsyncpa [#allocation7], 0
    loop: start=0, step=1, limit=4
    $region2: #{temporal_conv_net_fwd.3} parent=1 // loop_pre_header
      _
    $region3: #{temporal_conv_net_fwd.3} parent=1 // loop_header
      %s13 = sphi 0, %s17
      %p14 = scmp.ge.s32.totalorder %s13, 4
      %s23 = sphi 0, %s25
      %s26 = sphi 0, %s23
      %s27 = sphi 0, %s26
      %s43 = sphi 0, %s27
      %s47 = sphi 0, %s47
      %s49 = sphi 0, %s47
      %s50 = sphi 0, %s49
      %s64 = sphi 0, %s50
      %s68 = sphi 0, %s68
      %s70 = sphi 0, %s68
      %s71 = sphi 0, %s70
      %s85 = sphi 0, %s71
      %s89 = sphi 0, %s89
      %s91 = sphi 0, %s89
      %s92 = sphi 0, %s91
      %s106 = sphi 0, %s92
      %s110 = sphi 0, %s110
      %s112 = sphi 0, %s110
      %s113 = sphi 0, %s112
      %s127 = sphi 0, %s113
      %s133 = sphi 0, %s135
      %s136 = sphi 0, %s133
      %s137 = sphi 0, %s136
      %s153 = sphi 0, %s137
    $region4: #{temporal_conv_net_fwd.3} parent=1 // loop_header_branch
      %16 = sbr.rel (%p14) target = $region8
    $region5: #{temporal_conv_net_fwd.3} parent=1 // loop_body
      %s18 = ssub.s32 %s13, 1
      %s19 = ssub.s32 %s13, 2
      %s20 = sadd.s32 %s13, 1
      %s21 = ssub.s32 %s13, %s20
      %p22 = scmp.eq.s32.totalorder %s21, 0
      %s24 = sadd.s32 %s23, 1
      %s25 = scalar_select %p22, %s23, %s24
      %p28 = pneg %p22
      %p29 = scmp.eq.s32.totalorder %s13, 1
      %p30 = por %p28, %p29
      %p31 = scmp.ne.s32.totalorder %s23, %s26
      %p32 = scmp.eq.s32.totalorder %s13, 0
      %p33 = por %p31, %p32
      %p34 = scmp.ne.s32.totalorder %s23, %s26
      %p35 = scmp.eq.s32.totalorder %s18, 1
      %p36 = por %p34, %p35
      %p37 = scmp.ne.s32.totalorder %s26, %s27
      %p38 = scmp.eq.s32.totalorder %s18, 0
      %p39 = por %p37, %p38
      %p40 = scmp.ne.s32.totalorder %s26, %s27
      %p41 = scmp.eq.s32.totalorder %s19, 1
      %p42 = por %p40, %p41
      %p44 = scmp.ne.s32.totalorder %s27, %s43
      %p45 = scmp.eq.s32.totalorder %s19, 0
      %p46 = por %p44, %p45
      %s48 = sadd.s32 %s47, 1
      %p51 = scmp.eq.s32.totalorder %s13, 1
      %p52 = scmp.ne.s32.totalorder %s47, %s49
      %p53 = scmp.eq.s32.totalorder %s13, 0
      %p54 = por %p52, %p53
      %p55 = scmp.ne.s32.totalorder %s47, %s49
      %p56 = scmp.eq.s32.totalorder %s18, 1
      %p57 = por %p55, %p56
      %p58 = scmp.ne.s32.totalorder %s49, %s50
      %p59 = scmp.eq.s32.totalorder %s18, 0
      %p60 = por %p58, %p59
      %p61 = scmp.ne.s32.totalorder %s49, %s50
      %p62 = scmp.eq.s32.totalorder %s19, 1
      %p63 = por %p61, %p62
      %p65 = scmp.ne.s32.totalorder %s50, %s64
      %p66 = scmp.eq.s32.totalorder %s19, 0
      %p67 = por %p65, %p66
      %s69 = sadd.s32 %s68, 1
      %p72 = scmp.eq.s32.totalorder %s13, 1
      %p73 = scmp.ne.s32.totalorder %s68, %s70
      %p74 = scmp.eq.s32.totalorder %s13, 0
      %p75 = por %p73, %p74
      %p76 = scmp.ne.s32.totalorder %s68, %s70
      %p77 = scmp.eq.s32.totalorder %s18, 1
      %p78 = por %p76, %p77
      %p79 = scmp.ne.s32.totalorder %s70, %s71
      %p80 = scmp.eq.s32.totalorder %s18, 0
      %p81 = por %p79, %p80
      %p82 = scmp.ne.s32.totalorder %s70, %s71
      %p83 = scmp.eq.s32.totalorder %s19, 1
      %p84 = por %p82, %p83
      %p86 = scmp.ne.s32.totalorder %s71, %s85
      %p87 = scmp.eq.s32.totalorder %s19, 0
      %p88 = por %p86, %p87
      %s90 = sadd.s32 %s89, 1
      %p93 = scmp.eq.s32.totalorder %s13, 1
      %p94 = scmp.ne.s32.totalorder %s89, %s91
      %p95 = scmp.eq.s32.totalorder %s13, 0
      %p96 = por %p94, %p95
      %p97 = scmp.ne.s32.totalorder %s89, %s91
      %p98 = scmp.eq.s32.totalorder %s18, 1
      %p99 = por %p97, %p98
      %p100 = scmp.ne.s32.totalorder %s91, %s92
      %p101 = scmp.eq.s32.totalorder %s18, 0
      %p102 = por %p100, %p101
      %p103 = scmp.ne.s32.totalorder %s91, %s92
      %p104 = scmp.eq.s32.totalorder %s19, 1
      %p105 = por %p103, %p104
      %p107 = scmp.ne.s32.totalorder %s92, %s106
      %p108 = scmp.eq.s32.totalorder %s19, 0
      %p109 = por %p107, %p108
      %s111 = sadd.s32 %s110, 1
      %p114 = scmp.eq.s32.totalorder %s13, 1
      %p115 = scmp.ne.s32.totalorder %s110, %s112
      %p116 = scmp.eq.s32.totalorder %s13, 0
      %p117 = por %p115, %p116
      %p118 = scmp.ne.s32.totalorder %s110, %s112
      %p119 = scmp.eq.s32.totalorder %s18, 1
      %p120 = por %p118, %p119
      %p121 = scmp.ne.s32.totalorder %s112, %s113
      %p122 = scmp.eq.s32.totalorder %s18, 0
      %p123 = por %p121, %p122
      %p124 = scmp.ne.s32.totalorder %s112, %s113
      %p125 = scmp.eq.s32.totalorder %s19, 1
      %p126 = por %p124, %p125
      %p128 = scmp.ne.s32.totalorder %s113, %s127
      %p129 = scmp.eq.s32.totalorder %s19, 0
      %p130 = por %p128, %p129
      %s131 = ssub.s32 %s13, %s20
      %p132 = scmp.eq.s32.totalorder %s131, 0
      %s134 = sadd.s32 %s133, 1
      %s135 = scalar_select %p132, %s133, %s134
      %p138 = pneg %p132
      %p139 = scmp.eq.s32.totalorder %s13, 1
      %p140 = por %p138, %p139
      %p141 = scmp.ne.s32.totalorder %s133, %s136
      %p142 = scmp.eq.s32.totalorder %s13, 0
      %p143 = por %p141, %p142
      %p144 = scmp.ne.s32.totalorder %s133, %s136
      %p145 = scmp.eq.s32.totalorder %s18, 1
      %p146 = por %p144, %p145
      %p147 = scmp.ne.s32.totalorder %s136, %s137
      %p148 = scmp.eq.s32.totalorder %s18, 0
      %p149 = por %p147, %p148
      %p150 = scmp.ne.s32.totalorder %s136, %s137
      %p151 = scmp.eq.s32.totalorder %s19, 1
      %p152 = por %p150, %p151
      %p154 = scmp.ne.s32.totalorder %s137, %s153
      %p155 = scmp.eq.s32.totalorder %s19, 0
      %p156 = por %p154, %p155
      %p157 = scmp.le.s32.totalorder 1, %s13
      %p158 = scmp.lt.s32.totalorder %s13, 3
      %p159 = pnand %p157, %p158
      %p160 = pneg %p159
      // Predicated region
      $region9: #{temporal_conv_net_fwd.3} parent=5 // pred_check
        _
      $region10: #{temporal_conv_net_fwd.3} parent=5 // pred_check_branch
        %162 = sbr.rel (%p159) target = $region12
      $region11: #{temporal_conv_net_fwd.3} parent=5 // pred_region
        %s163 = ssub.s32 %s13, 1
        // Predicated region
        $region13: #{temporal_conv_net_fwd.3} parent=11 // pred_check
          %p164 = pneg %p60
        $region14: #{temporal_conv_net_fwd.3} parent=11 // pred_check_branch
          %166 = sbr.rel (%p164) target = $region16
        $region15: #{temporal_conv_net_fwd.3} parent=11 // pred_region
          %168 = vsyncadd [#allocation5], 0
          %s169 = sshll.u32 %s1, 4
          %s170 = int_to_ptr.hbm [resolvable:$true] %s169
          %s171 = sshll.u32 [#allocation4], 4
          %s172 = int_to_ptr.vmem [resolvable:$true] %s171
          %177 = dma.hbm_to_vmem [thread:$0]  %s170, 384, %s172, [#allocation5], 128, 128, 8
        $region16: #{temporal_conv_net_fwd.3} parent=11 // pred_fallthru
          _
        // Predicated region
        $region17: #{temporal_conv_net_fwd.3} parent=11 // pred_check
          %p178 = pneg %p81
        $region18: #{temporal_conv_net_fwd.3} parent=11 // pred_check_branch
          %180 = sbr.rel (%p178) target = $region20
        $region19: #{temporal_conv_net_fwd.3} parent=11 // pred_region
          _
        $region20: #{temporal_conv_net_fwd.3} parent=11 // pred_fallthru
          _
        // Predicated region
        $region21: #{temporal_conv_net_fwd.3} parent=11 // pred_check
          %p181 = pneg %p102
        $region22: #{temporal_conv_net_fwd.3} parent=11 // pred_check_branch
          %183 = sbr.rel (%p181) target = $region24
        $region23: #{temporal_conv_net_fwd.3} parent=11 // pred_region
          %185 = vsyncadd [#allocation7], 0
          %s186 = sshll.u32 %s3, 4
          %s187 = int_to_ptr.hbm [resolvable:$true] %s186
          %s188 = sshll.u32 [#allocation6], 4
          %s189 = int_to_ptr.vmem [resolvable:$true] %s188
          %194 = dma.hbm_to_vmem [thread:$0]  %s187, 384, %s189, [#allocation7], 128, 128, 8
        $region24: #{temporal_conv_net_fwd.3} parent=11 // pred_fallthru
          _
        // Predicated region
        $region25: #{temporal_conv_net_fwd.3} parent=11 // pred_check
          %p195 = pneg %p123
        $region26: #{temporal_conv_net_fwd.3} parent=11 // pred_check_branch
          %197 = sbr.rel (%p195) target = $region28
        $region27: #{temporal_conv_net_fwd.3} parent=11 // pred_region
          _
        $region28: #{temporal_conv_net_fwd.3} parent=11 // pred_fallthru
          _
      $region12: #{temporal_conv_net_fwd.3} parent=5 // pred_fallthru
        _
      %p198 = scmp.lt.s32.totalorder %s13, 2
      // Predicated region
      $region29: #{temporal_conv_net_fwd.3} parent=5 // pred_check
        %p199 = pneg %p198
      $region30: #{temporal_conv_net_fwd.3} parent=5 // pred_check_branch
        %201 = sbr.rel (%p199) target = $region32
      $region31: #{temporal_conv_net_fwd.3} parent=5 // pred_region
        // Predicated region
        $region33: #{temporal_conv_net_fwd.3} parent=31 // pred_check
          %p202 = pneg %p33
        $region34: #{temporal_conv_net_fwd.3} parent=31 // pred_check_branch
          %204 = sbr.rel (%p202) target = $region36
        $region35: #{temporal_conv_net_fwd.3} parent=31 // pred_region
          %s205 = smul.u32 2, %s13
          %p206 = scmp.lt.s32.totalorder %s205, 3
          %s207 = scalar_select %p206, %s205, 3
          %s208 = smul.addr %s207, 8
          %s209 = scalar_lea.vmem %s0, %s208
          %s210 = smul.u32 2, %s13
        $region36: #{temporal_conv_net_fwd.3} parent=31 // pred_fallthru
          _
      $region32: #{temporal_conv_net_fwd.3} parent=5 // pred_fallthru
        _
      %p211 = scmp.le.s32.totalorder 1, %s13
      %p212 = scmp.lt.s32.totalorder %s13, 3
      %p213 = pnand %p211, %p212
      %p214 = pneg %p213
      // Predicated region
      $region37: #{temporal_conv_net_fwd.3} parent=5 // pred_check
        _
      $region38: #{temporal_conv_net_fwd.3} parent=5 // pred_check_branch
        %216 = sbr.rel (%p213) target = $region40
      $region39: #{temporal_conv_net_fwd.3} parent=5 // pred_region
        %s217 = ssub.s32 %s13, 1
        // Predicated region
        $region41: #{temporal_conv_net_fwd.3} parent=39 // pred_check
          %p218 = pneg %p60
        $region42: #{temporal_conv_net_fwd.3} parent=39 // pred_check_branch
          %220 = sbr.rel (%p218) target = $region44
        $region43: #{temporal_conv_net_fwd.3} parent=39 // pred_region
          %222 = dma.done [#allocation5], 384
        $region44: #{temporal_conv_net_fwd.3} parent=39 // pred_fallthru
          _
        // Predicated region
        $region45: #{temporal_conv_net_fwd.3} parent=39 // pred_check
          %p223 = pneg %p102
        $region46: #{temporal_conv_net_fwd.3} parent=39 // pred_check_branch
          %225 = sbr.rel (%p223) target = $region48
        $region47: #{temporal_conv_net_fwd.3} parent=39 // pred_region
          %227 = dma.done [#allocation7], 384
        $region48: #{temporal_conv_net_fwd.3} parent=39 // pred_fallthru
          _
        %s228 = smul.u32 2, %s18
        %p229 = scmp.lt.s32.totalorder %s228, 3
        %s230 = scalar_select %p229, %s228, 3
        %s231 = smul.addr %s230, 8
        %s232 = scalar_lea.vmem %s0, %s231
        %p233 = pneg %p39
        %p234 = pneg %p36
        %p235 = pneg %p60
        %p236 = pneg %p57
        %p237 = pneg %p81
        %p238 = pneg %p78
        %p239 = pneg %p102
        %p240 = pneg %p99
        %p241 = pneg %p123
        %p242 = pneg %p120
        %p243 = pneg %p149
        %p244 = pneg %p146
        %s245 = smul.u32 2, %s18
        %p246 = scmp.lt.s32.totalorder %s245, 3
        %s247 = scalar_select %p246, %s245, 3
        %s248 = smul.addr %s247, 8
        %s249 = scalar_lea.vmem %s5, %s248
        %s250 = smul.u32 2, %s18
        %p251 = scmp.lt.s32.totalorder %s250, 3
        %s252 = scalar_select %p251, %s250, 3
        %s253 = smul.addr %s252, 8
        %s254 = scalar_lea.vmem %s0, %s253
        %s255 = smul.u32 2, %s18
        %s256 = smul.u32 2, %s18
        %p257 = scmp.lt.s32.totalorder %s256, 3
        %s258 = scalar_select %p257, %s256, 3
        %s259 = smul.addr %s258, 8
        %s260 = scalar_lea.vmem %s5, %s259
        %s261 = smul.u32 2, %s18
        %262 = vst [vmem:[#allocation2] sm:$0xff] 0.0
        %v263 = vld [vmem:[%s254] sm:$0xff]
        %264 = vst [vmem:[#allocation2 + $0x8] sm:$0xff] %v263
        %265 = vst [vmem:[#allocation2 + $0x10] sm:$0xff] 0.0
        %s266 = scalar_lea.vmem %s254, 8
        %v267 = vld [vmem:[%s266] sm:$0xff]
        %268 = vst [vmem:[#allocation2 + $0x18] sm:$0xff] %v267
        %v269 = vld [vmem:[#allocation4] sm:$0xff]
        %v270 = vld [vmem:[#allocation2] sm:$0xff]
        %v271 = vld [vmem:[#allocation2 + $0x8] sm:$0xff]
        %v272 = vld [vmem:[#allocation2 + $0x10] sm:$0xff]
        %v273 = vld [vmem:[#allocation2 + $0x18] sm:$0xff]
        %s274 = scalar_lea.vmem [#allocation4], 8
        %v275 = vld [vmem:[%s274] sm:$0xff]
        %280 = vrot.lane.b32.xlu0 %v270, 1
        %v281 = vpop.permute.xlu0 %280
        %282 = vrot.lane.b32.xlu0 %v271, 1
        %v283 = vpop.permute.xlu0 %282
        %284 = vrot.lane.b32.xlu0 %v272, 1
        %v285 = vpop.permute.xlu0 %284
        %286 = vrot.lane.b32.xlu0 %v273, 1
        %v287 = vpop.permute.xlu0 %286
        %vm288 = vcmask 7168
        %v289 = vsel %vm288, %v281, %v283
        %v290 = vsel %vm288, %v285, %v287
        %vm293 = vcmask 64512
        %v295 = vsel %vm293, %v275, 0
        %297 = vmatpush.msra.mxu0 0.0
        %298 = vmatpush.msra.mxu0 0.0
        %299 = vmatpush.msra.mxu0 0.0
        %300 = vmatpush.msra.mxu0 0.0
        %301 = vmatpush.msra.mxu0 0.0
        %302 = vmatpush.msra.mxu0 0.0
        %303 = vmatpush.msra.mxu0 0.0
        %304 = vmatpush.msra.mxu0 0.0
        %305 = vmatpush.msra.mxu0 0.0
        %306 = vmatpush.msra.mxu0 0.0
        %307 = vmatpush.msra.mxu0 0.0
        %308 = vmatpush.msra.mxu0 0.0
        %309 = vmatpush.msra.mxu0 0.0
        %310 = vmatpush.msra.mxu0 0.0
        %311 = vmatpush.msra.mxu0 0.0
        %312 = vmatpush.msra.mxu0 %v289
        %313 = vmatmul.f32.gmra.mxu0 %v295
        %v314 = vpop.f32.mrf.mxu0
        %v315 = vadd.f32 0.0, %v314
        %316 = vdwg.mxu0
        %317 = vmatpush.msra.mxu0 0.0
        %318 = vmatpush.msra.mxu0 0.0
        %319 = vmatpush.msra.mxu0 0.0
        %320 = vmatpush.msra.mxu0 0.0
        %321 = vmatpush.msra.mxu0 0.0
        %322 = vmatpush.msra.mxu0 0.0
        %323 = vmatpush.msra.mxu0 0.0
        %324 = vmatpush.msra.mxu0 0.0
        %325 = vmatpush.msra.mxu0 0.0
        %326 = vmatpush.msra.mxu0 0.0
        %327 = vmatpush.msra.mxu0 0.0
        %328 = vmatpush.msra.mxu0 0.0
        %329 = vmatpush.msra.mxu0 0.0
        %330 = vmatpush.msra.mxu0 0.0
        %331 = vmatpush.msra.mxu0 0.0
        %332 = vmatpush.msra.mxu0 %v290
        %333 = vmatmul.f32.gmra.mxu0 %v295
        %v334 = vpop.f32.mrf.mxu0
        %v335 = vadd.f32 0.0, %v334
        %336 = vdwg.mxu0
        %337 = vrot.lane.b32.xlu0 %v270, 2
        %v338 = vpop.permute.xlu0 %337
        %339 = vrot.lane.b32.xlu0 %v271, 2
        %v340 = vpop.permute.xlu0 %339
        %341 = vrot.lane.b32.xlu0 %v272, 2
        %v342 = vpop.permute.xlu0 %341
        %343 = vrot.lane.b32.xlu0 %v273, 2
        %v344 = vpop.permute.xlu0 %343
        %vm345 = vcmask 15360
        %v346 = vsel %vm345, %v338, %v340
        %v347 = vsel %vm345, %v342, %v344
        %v351 = vsel %vm293, %v269, 0
        %353 = vmatpush.msra.mxu0 0.0
        %354 = vmatpush.msra.mxu0 0.0
        %355 = vmatpush.msra.mxu0 0.0
        %356 = vmatpush.msra.mxu0 0.0
        %357 = vmatpush.msra.mxu0 0.0
        %358 = vmatpush.msra.mxu0 0.0
        %359 = vmatpush.msra.mxu0 0.0
        %360 = vmatpush.msra.mxu0 0.0
        %361 = vmatpush.msra.mxu0 0.0
        %362 = vmatpush.msra.mxu0 0.0
        %363 = vmatpush.msra.mxu0 0.0
        %364 = vmatpush.msra.mxu0 0.0
        %365 = vmatpush.msra.mxu0 0.0
        %366 = vmatpush.msra.mxu0 0.0
        %367 = vmatpush.msra.mxu0 0.0
        %368 = vmatpush.msra.mxu0 %v346
        %369 = vmatmul.f32.gmra.mxu0 %v351
        %v370 = vpop.f32.mrf.mxu0
        %v371 = vadd.f32 %v315, %v370
        %372 = vdwg.mxu0
        %373 = vmatpush.msra.mxu0 0.0
        %374 = vmatpush.msra.mxu0 0.0
        %375 = vmatpush.msra.mxu0 0.0
        %376 = vmatpush.msra.mxu0 0.0
        %377 = vmatpush.msra.mxu0 0.0
        %378 = vmatpush.msra.mxu0 0.0
        %379 = vmatpush.msra.mxu0 0.0
        %380 = vmatpush.msra.mxu0 0.0
        %381 = vmatpush.msra.mxu0 0.0
        %382 = vmatpush.msra.mxu0 0.0
        %383 = vmatpush.msra.mxu0 0.0
        %384 = vmatpush.msra.mxu0 0.0
        %385 = vmatpush.msra.mxu0 0.0
        %386 = vmatpush.msra.mxu0 0.0
        %387 = vmatpush.msra.mxu0 0.0
        %388 = vmatpush.msra.mxu0 %v347
        %389 = vmatmul.f32.gmra.mxu0 %v351
        %v390 = vpop.f32.mrf.mxu0
        %v391 = vadd.f32 %v335, %v390
        %392 = vdwg.mxu0
        %s393 = scalar_lea.vmem [#allocation4], 16
        %v394 = vld [vmem:[%s393] sm:$0xff]
        %v396 = vsel %vm293, %v394, 0
        %398 = vmatpush.msra.mxu0 0.0
        %399 = vmatpush.msra.mxu0 0.0
        %400 = vmatpush.msra.mxu0 0.0
        %401 = vmatpush.msra.mxu0 0.0
        %402 = vmatpush.msra.mxu0 0.0
        %403 = vmatpush.msra.mxu0 0.0
        %404 = vmatpush.msra.mxu0 0.0
        %405 = vmatpush.msra.mxu0 0.0
        %406 = vmatpush.msra.mxu0 0.0
        %407 = vmatpush.msra.mxu0 0.0
        %408 = vmatpush.msra.mxu0 0.0
        %409 = vmatpush.msra.mxu0 0.0
        %410 = vmatpush.msra.mxu0 0.0
        %411 = vmatpush.msra.mxu0 0.0
        %412 = vmatpush.msra.mxu0 0.0
        %413 = vmatpush.msra.mxu0 %v271
        %414 = vmatmul.f32.gmra.mxu0 %v396
        %v415 = vpop.f32.mrf.mxu0
        %v416 = vadd.f32 0.0, %v415
        %417 = vdwg.mxu0
        %418 = vmatpush.msra.mxu0 0.0
        %419 = vmatpush.msra.mxu0 0.0
        %420 = vmatpush.msra.mxu0 0.0
        %421 = vmatpush.msra.mxu0 0.0
        %422 = vmatpush.msra.mxu0 0.0
        %423 = vmatpush.msra.mxu0 0.0
        %424 = vmatpush.msra.mxu0 0.0
        %425 = vmatpush.msra.mxu0 0.0
        %426 = vmatpush.msra.mxu0 0.0
        %427 = vmatpush.msra.mxu0 0.0
        %428 = vmatpush.msra.mxu0 0.0
        %429 = vmatpush.msra.mxu0 0.0
        %430 = vmatpush.msra.mxu0 0.0
        %431 = vmatpush.msra.mxu0 0.0
        %432 = vmatpush.msra.mxu0 0.0
        %433 = vmatpush.msra.mxu0 %v273
        %434 = vmatmul.f32.gmra.mxu0 %v396
        %v435 = vpop.f32.mrf.mxu0
        %v436 = vadd.f32 0.0, %v435
        %437 = vdwg.mxu0
        %v438 = vadd.f32 %v371, %v416
        %v439 = vadd.f32 %v391, %v436
        %v440 = vld [vmem:[%s2] sm:$0xff]
        %442 = vset.pattern.permute.xlu0 0
        %443 = vperm.xlu0 %442, %v440
        %v444 = vpop.permute.xlu0 %443
        %v446 = vadd.f32 %v438, %v444
        %v447 = vadd.f32 %v439, %v444
        %v448 = vmax.f32 %v446, 0.0
        %v449 = vmax.f32 %v447, 0.0
        %450 = vst [vmem:[#allocation3] sm:$0xff] 0.0
        %451 = vst [vmem:[#allocation3 + $0x8] sm:$0xff] %v448
        %452 = vst [vmem:[#allocation3 + $0x10] sm:$0xff] 0.0
        %453 = vst [vmem:[#allocation3 + $0x18] sm:$0xff] %v449
        %v454 = vld [vmem:[#allocation6] sm:$0xff]
        %v455 = vld [vmem:[#allocation3] sm:$0xff]
        %v456 = vld [vmem:[#allocation3 + $0x8] sm:$0xff]
        %v457 = vld [vmem:[#allocation3 + $0x10] sm:$0xff]
        %v458 = vld [vmem:[#allocation3 + $0x18] sm:$0xff]
        %s459 = scalar_lea.vmem [#allocation6], 8
        %v460 = vld [vmem:[%s459] sm:$0xff]
        %465 = vrot.lane.b32.xlu0 %v455, 1
        %v466 = vpop.permute.xlu0 %465
        %467 = vrot.lane.b32.xlu0 %v456, 1
        %v468 = vpop.permute.xlu0 %467
        %469 = vrot.lane.b32.xlu0 %v457, 1
        %v470 = vpop.permute.xlu0 %469
        %471 = vrot.lane.b32.xlu0 %v458, 1
        %v472 = vpop.permute.xlu0 %471
        %v473 = vsel %vm288, %v466, %v468
        %v474 = vsel %vm288, %v470, %v472
        %v478 = vsel %vm293, %v460, 0
        %480 = vmatpush.msra.mxu0 0.0
        %481 = vmatpush.msra.mxu0 0.0
        %482 = vmatpush.msra.mxu0 0.0
        %483 = vmatpush.msra.mxu0 0.0
        %484 = vmatpush.msra.mxu0 0.0
        %485 = vmatpush.msra.mxu0 0.0
        %486 = vmatpush.msra.mxu0 0.0
        %487 = vmatpush.msra.mxu0 0.0
        %488 = vmatpush.msra.mxu0 0.0
        %489 = vmatpush.msra.mxu0 0.0
        %490 = vmatpush.msra.mxu0 0.0
        %491 = vmatpush.msra.mxu0 0.0
        %492 = vmatpush.msra.mxu0 0.0
        %493 = vmatpush.msra.mxu0 0.0
        %494 = vmatpush.msra.mxu0 0.0
        %495 = vmatpush.msra.mxu0 %v473
        %496 = vmatmul.f32.gmra.mxu0 %v478
        %v497 = vpop.f32.mrf.mxu0
        %v498 = vadd.f32 0.0, %v497
        %499 = vdwg.mxu0
        %500 = vmatpush.msra.mxu0 0.0
        %501 = vmatpush.msra.mxu0 0.0
        %502 = vmatpush.msra.mxu0 0.0
        %503 = vmatpush.msra.mxu0 0.0
        %504 = vmatpush.msra.mxu0 0.0
        %505 = vmatpush.msra.mxu0 0.0
        %506 = vmatpush.msra.mxu0 0.0
        %507 = vmatpush.msra.mxu0 0.0
        %508 = vmatpush.msra.mxu0 0.0
        %509 = vmatpush.msra.mxu0 0.0
        %510 = vmatpush.msra.mxu0 0.0
        %511 = vmatpush.msra.mxu0 0.0
        %512 = vmatpush.msra.mxu0 0.0
        %513 = vmatpush.msra.mxu0 0.0
        %514 = vmatpush.msra.mxu0 0.0
        %515 = vmatpush.msra.mxu0 %v474
        %516 = vmatmul.f32.gmra.mxu0 %v478
        %v517 = vpop.f32.mrf.mxu0
        %v518 = vadd.f32 0.0, %v517
        %519 = vdwg.mxu0
        %520 = vrot.lane.b32.xlu0 %v455, 2
        %v521 = vpop.permute.xlu0 %520
        %522 = vrot.lane.b32.xlu0 %v456, 2
        %v523 = vpop.permute.xlu0 %522
        %524 = vrot.lane.b32.xlu0 %v457, 2
        %v525 = vpop.permute.xlu0 %524
        %526 = vrot.lane.b32.xlu0 %v458, 2
        %v527 = vpop.permute.xlu0 %526
        %v528 = vsel %vm345, %v521, %v523
        %v529 = vsel %vm345, %v525, %v527
        %v533 = vsel %vm293, %v454, 0
        %535 = vmatpush.msra.mxu0 0.0
        %536 = vmatpush.msra.mxu0 0.0
        %537 = vmatpush.msra.mxu0 0.0
        %538 = vmatpush.msra.mxu0 0.0
        %539 = vmatpush.msra.mxu0 0.0
        %540 = vmatpush.msra.mxu0 0.0
        %541 = vmatpush.msra.mxu0 0.0
        %542 = vmatpush.msra.mxu0 0.0
        %543 = vmatpush.msra.mxu0 0.0
        %544 = vmatpush.msra.mxu0 0.0
        %545 = vmatpush.msra.mxu0 0.0
        %546 = vmatpush.msra.mxu0 0.0
        %547 = vmatpush.msra.mxu0 0.0
        %548 = vmatpush.msra.mxu0 0.0
        %549 = vmatpush.msra.mxu0 0.0
        %550 = vmatpush.msra.mxu0 %v528
        %551 = vmatmul.f32.gmra.mxu0 %v533
        %v552 = vpop.f32.mrf.mxu0
        %v553 = vadd.f32 %v498, %v552
        %554 = vdwg.mxu0
        %555 = vmatpush.msra.mxu0 0.0
        %556 = vmatpush.msra.mxu0 0.0
        %557 = vmatpush.msra.mxu0 0.0
        %558 = vmatpush.msra.mxu0 0.0
        %559 = vmatpush.msra.mxu0 0.0
        %560 = vmatpush.msra.mxu0 0.0
        %561 = vmatpush.msra.mxu0 0.0
        %562 = vmatpush.msra.mxu0 0.0
        %563 = vmatpush.msra.mxu0 0.0
        %564 = vmatpush.msra.mxu0 0.0
        %565 = vmatpush.msra.mxu0 0.0
        %566 = vmatpush.msra.mxu0 0.0
        %567 = vmatpush.msra.mxu0 0.0
        %568 = vmatpush.msra.mxu0 0.0
        %569 = vmatpush.msra.mxu0 0.0
        %570 = vmatpush.msra.mxu0 %v529
        %571 = vmatmul.f32.gmra.mxu0 %v533
        %v572 = vpop.f32.mrf.mxu0
        %v573 = vadd.f32 %v518, %v572
        %574 = vdwg.mxu0
        %s575 = scalar_lea.vmem [#allocation6], 16
        %v576 = vld [vmem:[%s575] sm:$0xff]
        %v578 = vsel %vm293, %v576, 0
        %580 = vmatpush.msra.mxu0 0.0
        %581 = vmatpush.msra.mxu0 0.0
        %582 = vmatpush.msra.mxu0 0.0
        %583 = vmatpush.msra.mxu0 0.0
        %584 = vmatpush.msra.mxu0 0.0
        %585 = vmatpush.msra.mxu0 0.0
        %586 = vmatpush.msra.mxu0 0.0
        %587 = vmatpush.msra.mxu0 0.0
        %588 = vmatpush.msra.mxu0 0.0
        %589 = vmatpush.msra.mxu0 0.0
        %590 = vmatpush.msra.mxu0 0.0
        %591 = vmatpush.msra.mxu0 0.0
        %592 = vmatpush.msra.mxu0 0.0
        %593 = vmatpush.msra.mxu0 0.0
        %594 = vmatpush.msra.mxu0 0.0
        %595 = vmatpush.msra.mxu0 %v456
        %596 = vmatmul.f32.gmra.mxu0 %v578
        %v597 = vpop.f32.mrf.mxu0
        %v598 = vadd.f32 0.0, %v597
        %599 = vdwg.mxu0
        %600 = vmatpush.msra.mxu0 0.0
        %601 = vmatpush.msra.mxu0 0.0
        %602 = vmatpush.msra.mxu0 0.0
        %603 = vmatpush.msra.mxu0 0.0
        %604 = vmatpush.msra.mxu0 0.0
        %605 = vmatpush.msra.mxu0 0.0
        %606 = vmatpush.msra.mxu0 0.0
        %607 = vmatpush.msra.mxu0 0.0
        %608 = vmatpush.msra.mxu0 0.0
        %609 = vmatpush.msra.mxu0 0.0
        %610 = vmatpush.msra.mxu0 0.0
        %611 = vmatpush.msra.mxu0 0.0
        %612 = vmatpush.msra.mxu0 0.0
        %613 = vmatpush.msra.mxu0 0.0
        %614 = vmatpush.msra.mxu0 0.0
        %615 = vmatpush.msra.mxu0 %v458
        %616 = vmatmul.f32.gmra.mxu0 %v578
        %v617 = vpop.f32.mrf.mxu0
        %v618 = vadd.f32 0.0, %v617
        %619 = vdwg.mxu0
        %v620 = vadd.f32 %v553, %v598
        %v621 = vadd.f32 %v573, %v618
        %v622 = vld [vmem:[%s4] sm:$0xff]
        %624 = vset.pattern.permute.xlu0 0
        %625 = vperm.xlu0 %624, %v622
        %v626 = vpop.permute.xlu0 %625
        %v628 = vadd.f32 %v620, %v626
        %v629 = vadd.f32 %v621, %v626
        %v630 = vmax.f32 %v628, 0.0
        %v631 = vmax.f32 %v629, 0.0
        %v632 = vld [vmem:[%s254] sm:$0xff]
        %v633 = vadd.f32 %v630, %v632
        %634 = vst [vmem:[%s260] sm:$0xff] %v633
        %v635 = vld [vmem:[%s266] sm:$0xff]
        %v636 = vadd.f32 %v631, %v635
        %s637 = scalar_lea.vmem %s260, 8
        %638 = vst [vmem:[%s637] sm:$0xff] %v636
        %s639 = smul.u32 2, %s18
        %p640 = scmp.lt.s32.totalorder %s639, 3
        %s641 = scalar_select %p640, %s639, 3
        %s642 = smul.addr %s641, 8
        %s643 = scalar_lea.vmem %s5, %s642
        // Predicated region
        $region49: #{temporal_conv_net_fwd.3} parent=39 // pred_check
          %p644 = pneg %p146
        $region50: #{temporal_conv_net_fwd.3} parent=39 // pred_check_branch
          %646 = sbr.rel (%p644) target = $region52
        $region51: #{temporal_conv_net_fwd.3} parent=39 // pred_region
          %s647 = smul.u32 2, %s18
        $region52: #{temporal_conv_net_fwd.3} parent=39 // pred_fallthru
          _
      $region40: #{temporal_conv_net_fwd.3} parent=5 // pred_fallthru
        _
      %p648 = scmp.le.s32.totalorder 2, %s13
      // Predicated region
      $region53: #{temporal_conv_net_fwd.3} parent=5 // pred_check
        %p649 = pneg %p648
      $region54: #{temporal_conv_net_fwd.3} parent=5 // pred_check_branch
        %651 = sbr.rel (%p649) target = $region56
      $region55: #{temporal_conv_net_fwd.3} parent=5 // pred_region
        %s652 = ssub.s32 %s13, 2
        // Predicated region
        $region57: #{temporal_conv_net_fwd.3} parent=55 // pred_check
          %p653 = pneg %p152
        $region58: #{temporal_conv_net_fwd.3} parent=55 // pred_check_branch
          %655 = sbr.rel (%p653) target = $region60
        $region59: #{temporal_conv_net_fwd.3} parent=55 // pred_region
          %s656 = smul.u32 2, %s19
          %p657 = scmp.lt.s32.totalorder %s656, 3
          %s658 = scalar_select %p657, %s656, 3
          %s659 = smul.addr %s658, 8
          %s660 = scalar_lea.vmem %s5, %s659
        $region60: #{temporal_conv_net_fwd.3} parent=55 // pred_fallthru
          _
      $region56: #{temporal_conv_net_fwd.3} parent=5 // pred_fallthru
        _
    $region6: #{temporal_conv_net_fwd.3} parent=1 // loop_footer
      %s17 = sadd.s32 1, %s13
    $region7: #{temporal_conv_net_fwd.3} parent=1 // loop_footer_branch
      %12 = sbr.rel target = $region3
    $region8: #{temporal_conv_net_fwd.3} parent=1 // loop_exit
      _
    %661 = vsyncpa [#allocation5], 1
    %s662 = scalar_lea.sflag [#allocation5], 1
    %663 = vsyncpa %s662, 1
    %664 = vsyncpa [#allocation7], 1

// kernel: temporal_conv_net_fwd.5
$region0: #{temporal_conv_net_fwd.5}
  #allocation0 [shape = 'u32[]', space=smem, size = 0x4, offset = 0x4, fixed_abs, tag = 'smem constant byte address 0x4 - core index']
  #allocation1 [shape = 'u32[72,128]{1,0:T(1,128)}', space=vmem, size = 0x9000, scoped, tag = 'internal scratch']
  #allocation2 [shape = 'f32[16,512]{1,0:T(8,128)}', space=vmem, size = 0x8000, scoped, tag = 'scratch operand']
  #allocation3 [shape = 'f32[16,512]{1,0:T(8,128)}', space=vmem, size = 0x8000, scoped, tag = 'scratch operand']
  %s0 = inlined_call_operand.vmem [shape: f32[4,16,128], index: 0, kind: input, shape index: {}]
  %s1 = inlined_call_operand.vmem [shape: f32[3,16,16], index: 1, kind: input, shape index: {}]
  %s2 = inlined_call_operand.vmem [shape: f32[16,1], index: 2, kind: input, shape index: {}]
  %s3 = inlined_call_operand.vmem [shape: f32[3,16,16], index: 3, kind: input, shape index: {}]
  %s4 = inlined_call_operand.vmem [shape: f32[16,1], index: 4, kind: input, shape index: {}]
  %s5 = inlined_call_operand.vmem [shape: f32[4,16,128], index: 5, kind: output, shape index: {}]
  %s6 = sld [smem:[#allocation0]]
  $region53: #{temporal_conv_net_fwd.5} parent=0
    _
  %s8 = ssub.s32 1, %s6
  %s9 = scalar_select 0, %s8, %s6
  loop: start=0, step=1, limit=4
  $region2: #{temporal_conv_net_fwd.5} parent=0 // loop_pre_header
    _
  $region3: #{temporal_conv_net_fwd.5} parent=0 // loop_header
    %s11 = sphi 0, %s15
    %p12 = scmp.ge.s32.totalorder %s11, 4
    %s21 = sphi 0, %s23
    %s24 = sphi 0, %s21
    %s25 = sphi 0, %s24
    %s41 = sphi 0, %s25
    %s45 = sphi 0, %s45
    %s47 = sphi 0, %s45
    %s48 = sphi 0, %s47
    %s62 = sphi 0, %s48
    %s66 = sphi 0, %s66
    %s68 = sphi 0, %s66
    %s69 = sphi 0, %s68
    %s83 = sphi 0, %s69
    %s87 = sphi 0, %s87
    %s89 = sphi 0, %s87
    %s90 = sphi 0, %s89
    %s104 = sphi 0, %s90
    %s108 = sphi 0, %s108
    %s110 = sphi 0, %s108
    %s111 = sphi 0, %s110
    %s125 = sphi 0, %s111
    %s131 = sphi 0, %s133
    %s134 = sphi 0, %s131
    %s135 = sphi 0, %s134
    %s151 = sphi 0, %s135
  $region4: #{temporal_conv_net_fwd.5} parent=0 // loop_header_branch
    %14 = sbr.rel (%p12) target = $region8
  $region5: #{temporal_conv_net_fwd.5} parent=0 // loop_body
    %s16 = ssub.s32 %s11, 1
    %s17 = ssub.s32 %s11, 2
    %s18 = sadd.s32 %s11, 1
    %s19 = ssub.s32 %s11, %s18
    %p20 = scmp.eq.s32.totalorder %s19, 0
    %s22 = sadd.s32 %s21, 1
    %s23 = scalar_select %p20, %s21, %s22
    %p26 = pneg %p20
    %p27 = scmp.eq.s32.totalorder %s11, 1
    %p28 = por %p26, %p27
    %p29 = scmp.ne.s32.totalorder %s21, %s24
    %p30 = scmp.eq.s32.totalorder %s11, 0
    %p31 = por %p29, %p30
    %p32 = scmp.ne.s32.totalorder %s21, %s24
    %p33 = scmp.eq.s32.totalorder %s16, 1
    %p34 = por %p32, %p33
    %p35 = scmp.ne.s32.totalorder %s24, %s25
    %p36 = scmp.eq.s32.totalorder %s16, 0
    %p37 = por %p35, %p36
    %p38 = scmp.ne.s32.totalorder %s24, %s25
    %p39 = scmp.eq.s32.totalorder %s17, 1
    %p40 = por %p38, %p39
    %p42 = scmp.ne.s32.totalorder %s25, %s41
    %p43 = scmp.eq.s32.totalorder %s17, 0
    %p44 = por %p42, %p43
    %s46 = sadd.s32 %s45, 1
    %p49 = scmp.eq.s32.totalorder %s11, 1
    %p50 = scmp.ne.s32.totalorder %s45, %s47
    %p51 = scmp.eq.s32.totalorder %s11, 0
    %p52 = por %p50, %p51
    %p53 = scmp.ne.s32.totalorder %s45, %s47
    %p54 = scmp.eq.s32.totalorder %s16, 1
    %p55 = por %p53, %p54
    %p56 = scmp.ne.s32.totalorder %s47, %s48
    %p57 = scmp.eq.s32.totalorder %s16, 0
    %p58 = por %p56, %p57
    %p59 = scmp.ne.s32.totalorder %s47, %s48
    %p60 = scmp.eq.s32.totalorder %s17, 1
    %p61 = por %p59, %p60
    %p63 = scmp.ne.s32.totalorder %s48, %s62
    %p64 = scmp.eq.s32.totalorder %s17, 0
    %p65 = por %p63, %p64
    %s67 = sadd.s32 %s66, 1
    %p70 = scmp.eq.s32.totalorder %s11, 1
    %p71 = scmp.ne.s32.totalorder %s66, %s68
    %p72 = scmp.eq.s32.totalorder %s11, 0
    %p73 = por %p71, %p72
    %p74 = scmp.ne.s32.totalorder %s66, %s68
    %p75 = scmp.eq.s32.totalorder %s16, 1
    %p76 = por %p74, %p75
    %p77 = scmp.ne.s32.totalorder %s68, %s69
    %p78 = scmp.eq.s32.totalorder %s16, 0
    %p79 = por %p77, %p78
    %p80 = scmp.ne.s32.totalorder %s68, %s69
    %p81 = scmp.eq.s32.totalorder %s17, 1
    %p82 = por %p80, %p81
    %p84 = scmp.ne.s32.totalorder %s69, %s83
    %p85 = scmp.eq.s32.totalorder %s17, 0
    %p86 = por %p84, %p85
    %s88 = sadd.s32 %s87, 1
    %p91 = scmp.eq.s32.totalorder %s11, 1
    %p92 = scmp.ne.s32.totalorder %s87, %s89
    %p93 = scmp.eq.s32.totalorder %s11, 0
    %p94 = por %p92, %p93
    %p95 = scmp.ne.s32.totalorder %s87, %s89
    %p96 = scmp.eq.s32.totalorder %s16, 1
    %p97 = por %p95, %p96
    %p98 = scmp.ne.s32.totalorder %s89, %s90
    %p99 = scmp.eq.s32.totalorder %s16, 0
    %p100 = por %p98, %p99
    %p101 = scmp.ne.s32.totalorder %s89, %s90
    %p102 = scmp.eq.s32.totalorder %s17, 1
    %p103 = por %p101, %p102
    %p105 = scmp.ne.s32.totalorder %s90, %s104
    %p106 = scmp.eq.s32.totalorder %s17, 0
    %p107 = por %p105, %p106
    %s109 = sadd.s32 %s108, 1
    %p112 = scmp.eq.s32.totalorder %s11, 1
    %p113 = scmp.ne.s32.totalorder %s108, %s110
    %p114 = scmp.eq.s32.totalorder %s11, 0
    %p115 = por %p113, %p114
    %p116 = scmp.ne.s32.totalorder %s108, %s110
    %p117 = scmp.eq.s32.totalorder %s16, 1
    %p118 = por %p116, %p117
    %p119 = scmp.ne.s32.totalorder %s110, %s111
    %p120 = scmp.eq.s32.totalorder %s16, 0
    %p121 = por %p119, %p120
    %p122 = scmp.ne.s32.totalorder %s110, %s111
    %p123 = scmp.eq.s32.totalorder %s17, 1
    %p124 = por %p122, %p123
    %p126 = scmp.ne.s32.totalorder %s111, %s125
    %p127 = scmp.eq.s32.totalorder %s17, 0
    %p128 = por %p126, %p127
    %s129 = ssub.s32 %s11, %s18
    %p130 = scmp.eq.s32.totalorder %s129, 0
    %s132 = sadd.s32 %s131, 1
    %s133 = scalar_select %p130, %s131, %s132
    %p136 = pneg %p130
    %p137 = scmp.eq.s32.totalorder %s11, 1
    %p138 = por %p136, %p137
    %p139 = scmp.ne.s32.totalorder %s131, %s134
    %p140 = scmp.eq.s32.totalorder %s11, 0
    %p141 = por %p139, %p140
    %p142 = scmp.ne.s32.totalorder %s131, %s134
    %p143 = scmp.eq.s32.totalorder %s16, 1
    %p144 = por %p142, %p143
    %p145 = scmp.ne.s32.totalorder %s134, %s135
    %p146 = scmp.eq.s32.totalorder %s16, 0
    %p147 = por %p145, %p146
    %p148 = scmp.ne.s32.totalorder %s134, %s135
    %p149 = scmp.eq.s32.totalorder %s17, 1
    %p150 = por %p148, %p149
    %p152 = scmp.ne.s32.totalorder %s135, %s151
    %p153 = scmp.eq.s32.totalorder %s17, 0
    %p154 = por %p152, %p153
    %p155 = scmp.le.s32.totalorder 1, %s11
    %p156 = scmp.lt.s32.totalorder %s11, 3
    %p157 = pnand %p155, %p156
    %p158 = pneg %p157
    // Predicated region
    $region9: #{temporal_conv_net_fwd.5} parent=5 // pred_check
      _
    $region10: #{temporal_conv_net_fwd.5} parent=5 // pred_check_branch
      %160 = sbr.rel (%p157) target = $region12
    $region11: #{temporal_conv_net_fwd.5} parent=5 // pred_region
      %s161 = ssub.s32 %s11, 1
      // Predicated region
      $region13: #{temporal_conv_net_fwd.5} parent=11 // pred_check
        %p162 = pneg %p58
      $region14: #{temporal_conv_net_fwd.5} parent=11 // pred_check_branch
        %164 = sbr.rel (%p162) target = $region16
      $region15: #{temporal_conv_net_fwd.5} parent=11 // pred_region
        _
      $region16: #{temporal_conv_net_fwd.5} parent=11 // pred_fallthru
        _
      // Predicated region
      $region17: #{temporal_conv_net_fwd.5} parent=11 // pred_check
        %p165 = pneg %p79
      $region18: #{temporal_conv_net_fwd.5} parent=11 // pred_check_branch
        %167 = sbr.rel (%p165) target = $region20
      $region19: #{temporal_conv_net_fwd.5} parent=11 // pred_region
        _
      $region20: #{temporal_conv_net_fwd.5} parent=11 // pred_fallthru
        _
      // Predicated region
      $region21: #{temporal_conv_net_fwd.5} parent=11 // pred_check
        %p168 = pneg %p100
      $region22: #{temporal_conv_net_fwd.5} parent=11 // pred_check_branch
        %170 = sbr.rel (%p168) target = $region24
      $region23: #{temporal_conv_net_fwd.5} parent=11 // pred_region
        _
      $region24: #{temporal_conv_net_fwd.5} parent=11 // pred_fallthru
        _
      // Predicated region
      $region25: #{temporal_conv_net_fwd.5} parent=11 // pred_check
        %p171 = pneg %p121
      $region26: #{temporal_conv_net_fwd.5} parent=11 // pred_check_branch
        %173 = sbr.rel (%p171) target = $region28
      $region27: #{temporal_conv_net_fwd.5} parent=11 // pred_region
        _
      $region28: #{temporal_conv_net_fwd.5} parent=11 // pred_fallthru
        _
    $region12: #{temporal_conv_net_fwd.5} parent=5 // pred_fallthru
      _
    %p174 = scmp.lt.s32.totalorder %s11, 2
    // Predicated region
    $region29: #{temporal_conv_net_fwd.5} parent=5 // pred_check
      %p175 = pneg %p174
    $region30: #{temporal_conv_net_fwd.5} parent=5 // pred_check_branch
      %177 = sbr.rel (%p175) target = $region32
    $region31: #{temporal_conv_net_fwd.5} parent=5 // pred_region
      // Predicated region
      $region33: #{temporal_conv_net_fwd.5} parent=31 // pred_check
        %p178 = pneg %p31
      $region34: #{temporal_conv_net_fwd.5} parent=31 // pred_check_branch
        %180 = sbr.rel (%p178) target = $region36
      $region35: #{temporal_conv_net_fwd.5} parent=31 // pred_region
        %s181 = smul.u32 2, %s11
        %p182 = scmp.lt.s32.totalorder %s181, 3
        %s183 = scalar_select %p182, %s181, 3
        %s184 = smul.addr %s183, 2
        %s185 = smul.addr %s184, 8
        %s186 = scalar_lea.vmem %s0, %s185
        %s187 = smul.u32 2, %s11
      $region36: #{temporal_conv_net_fwd.5} parent=31 // pred_fallthru
        _
    $region32: #{temporal_conv_net_fwd.5} parent=5 // pred_fallthru
      _
    %p188 = scmp.le.s32.totalorder 1, %s11
    %p189 = scmp.lt.s32.totalorder %s11, 3
    %p190 = pnand %p188, %p189
    %p191 = pneg %p190
    // Predicated region
    $region37: #{temporal_conv_net_fwd.5} parent=5 // pred_check
      _
    $region38: #{temporal_conv_net_fwd.5} parent=5 // pred_check_branch
      %193 = sbr.rel (%p190) target = $region40
    $region39: #{temporal_conv_net_fwd.5} parent=5 // pred_region
      %s194 = ssub.s32 %s11, 1
      %s195 = smul.u32 2, %s16
      %p196 = scmp.lt.s32.totalorder %s195, 3
      %s197 = scalar_select %p196, %s195, 3
      %s198 = smul.addr %s197, 2
      %s199 = smul.addr %s198, 8
      %s200 = scalar_lea.vmem %s0, %s199
      %p201 = pneg %p37
      %p202 = pneg %p34
      %p203 = pneg %p58
      %p204 = pneg %p55
      %p205 = pneg %p79
      %p206 = pneg %p76
      %p207 = pneg %p100
      %p208 = pneg %p97
      %p209 = pneg %p121
      %p210 = pneg %p118
      %p211 = pneg %p147
      %p212 = pneg %p144
      %s213 = smul.u32 2, %s16
      %p214 = scmp.lt.s32.totalorder %s213, 3
      %s215 = scalar_select %p214, %s213, 3
      %s216 = smul.addr %s215, 2
      %s217 = smul.addr %s216, 8
      %s218 = scalar_lea.vmem %s5, %s217
      %s219 = smul.u32 2, %s16
      %p220 = scmp.lt.s32.totalorder %s219, 3
      %s221 = scalar_select %p220, %s219, 3
      %s222 = smul.addr %s221, 2
      %s223 = smul.addr %s222, 8
      %s224 = scalar_lea.vmem %s0, %s223
      %s225 = smul.u32 2, %s16
      %s226 = smul.u32 2, %s16
      %p227 = scmp.lt.s32.totalorder %s226, 3
      %s228 = scalar_select %p227, %s226, 3
      %s229 = smul.addr %s228, 2
      %s230 = smul.addr %s229, 8
      %s231 = scalar_lea.vmem %s5, %s230
      %s232 = smul.u32 2, %s16
      %233 = vst [vmem:[#allocation2] sm:$0xff] 0.0
      %234 = vst [vmem:[#allocation2 + $0x20] sm:$0xff] 0.0
      %v235 = vld [vmem:[%s224] sm:$0xff]
      %v236 = vld [vmem:[%s224 + $0x8] sm:$0xff]
      %237 = vst [vmem:[#allocation2 + $0x8] sm:$0xff] %v235
      %238 = vst [vmem:[#allocation2 + $0x28] sm:$0xff] %v236
      %239 = vst [vmem:[#allocation2 + $0x10] sm:$0xff] 0.0
      %240 = vst [vmem:[#allocation2 + $0x30] sm:$0xff] 0.0
      %s241 = scalar_lea.vmem %s224, 16
      %v242 = vld [vmem:[%s241] sm:$0xff]
      %v243 = vld [vmem:[%s241 + $0x8] sm:$0xff]
      %244 = vst [vmem:[#allocation2 + $0x18] sm:$0xff] %v242
      %245 = vst [vmem:[#allocation2 + $0x38] sm:$0xff] %v243
      %v246 = vld [vmem:[%s1] sm:$0xff]
      %v247 = vld [vmem:[%s1 + $0x8] sm:$0xff]
      %v248 = vld [vmem:[#allocation2] sm:$0xff]
      %v249 = vld [vmem:[#allocation2 + $0x8] sm:$0xff]
      %v250 = vld [vmem:[#allocation2 + $0x10] sm:$0xff]
      %v251 = vld [vmem:[#allocation2 + $0x18] sm:$0xff]
      %v252 = vld [vmem:[#allocation2 + $0x20] sm:$0xff]
      %v253 = vld [vmem:[#allocation2 + $0x28] sm:$0xff]
      %v254 = vld [vmem:[#allocation2 + $0x30] sm:$0xff]
      %v255 = vld [vmem:[#allocation2 + $0x38] sm:$0xff]
      %s256 = scalar_lea.vmem %s1, 16
      %v257 = vld [vmem:[%s256] sm:$0xff]
      %v258 = vld [vmem:[%s256 + $0x8] sm:$0xff]
      %267 = vrot.lane.b32.xlu0 %v248, 4
      %v268 = vpop.permute.xlu0 %267
      %269 = vrot.lane.b32.xlu0 %v249, 4
      %v270 = vpop.permute.xlu0 %269
      %271 = vrot.lane.b32.xlu0 %v250, 4
      %v272 = vpop.permute.xlu0 %271
      %273 = vrot.lane.b32.xlu0 %v251, 4
      %v274 = vpop.permute.xlu0 %273
      %275 = vrot.lane.b32.xlu0 %v252, 4
      %v276 = vpop.permute.xlu0 %275
      %277 = vrot.lane.b32.xlu0 %v253, 4
      %v278 = vpop.permute.xlu0 %277
      %279 = vrot.lane.b32.xlu0 %v254, 4
      %v280 = vpop.permute.xlu0 %279
      %281 = vrot.lane.b32.xlu0 %v255, 4
      %v282 = vpop.permute.xlu0 %281
      %vm283 = vcmask 31744
      %v284 = vsel %vm283, %v268, %v270
      %v285 = vsel %vm283, %v272, %v274
      %v286 = vsel %vm283, %v276, %v278
      %v287 = vsel %vm283, %v280, %v282
      %vm292 = vcmask 130048
      %v294 = vsel %vm292, %v257, 0
      %v297 = vsel %vm292, %v258, 0
      %299 = vmatpush.msra.mxu0 0.0
      %300 = vmatpush.msra.mxu0 0.0
      %301 = vmatpush.msra.mxu0 0.0
      %302 = vmatpush.msra.mxu0 0.0
      %303 = vmatpush.msra.mxu0 0.0
      %304 = vmatpush.msra.mxu0 0.0
      %305 = vmatpush.msra.mxu0 0.0
      %306 = vmatpush.msra.mxu0 0.0
      %307 = vmatpush.msra.mxu0 0.0
      %308 = vmatpush.msra.mxu0 0.0
      %309 = vmatpush.msra.mxu0 0.0
      %310 = vmatpush.msra.mxu0 0.0
      %311 = vmatpush.msra.mxu0 0.0
      %312 = vmatpush.msra.mxu0 0.0
      %313 = vmatpush.msra.mxu0 %v286
      %314 = vmatpush.msra.mxu0 %v284
      %315 = vmatmul.f32.gmra.mxu0 %v294
      %v316 = vpop.f32.mrf.mxu0
      %v317 = vadd.f32 0.0, %v316
      %318 = vmatmul.f32.gmra.mxu0 %v297
      %v319 = vpop.f32.mrf.mxu0
      %v320 = vadd.f32 0.0, %v319
      %321 = vdwg.mxu0
      %322 = vmatpush.msra.mxu0 0.0
      %323 = vmatpush.msra.mxu0 0.0
      %324 = vmatpush.msra.mxu0 0.0
      %325 = vmatpush.msra.mxu0 0.0
      %326 = vmatpush.msra.mxu0 0.0
      %327 = vmatpush.msra.mxu0 0.0
      %328 = vmatpush.msra.mxu0 0.0
      %329 = vmatpush.msra.mxu0 0.0
      %330 = vmatpush.msra.mxu0 0.0
      %331 = vmatpush.msra.mxu0 0.0
      %332 = vmatpush.msra.mxu0 0.0
      %333 = vmatpush.msra.mxu0 0.0
      %334 = vmatpush.msra.mxu0 0.0
      %335 = vmatpush.msra.mxu0 0.0
      %336 = vmatpush.msra.mxu0 %v287
      %337 = vmatpush.msra.mxu0 %v285
      %338 = vmatmul.f32.gmra.mxu0 %v294
      %v339 = vpop.f32.mrf.mxu0
      %v340 = vadd.f32 0.0, %v339
      %341 = vmatmul.f32.gmra.mxu0 %v297
      %v342 = vpop.f32.mrf.mxu0
      %v343 = vadd.f32 0.0, %v342
      %344 = vdwg.mxu0
      %345 = vrot.lane.b32.xlu0 %v248, 8
      %v346 = vpop.permute.xlu0 %345
      %347 = vrot.lane.b32.xlu0 %v249, 8
      %v348 = vpop.permute.xlu0 %347
      %349 = vrot.lane.b32.xlu0 %v250, 8
      %v350 = vpop.permute.xlu0 %349
      %351 = vrot.lane.b32.xlu0 %v251, 8
      %v352 = vpop.permute.xlu0 %351
      %353 = vrot.lane.b32.xlu0 %v252, 8
      %v354 = vpop.permute.xlu0 %353
      %355 = vrot.lane.b32.xlu0 %v253, 8
      %v356 = vpop.permute.xlu0 %355
      %357 = vrot.lane.b32.xlu0 %v254, 8
      %v358 = vpop.permute.xlu0 %357
      %359 = vrot.lane.b32.xlu0 %v255, 8
      %v360 = vpop.permute.xlu0 %359
      %vm361 = vcmask 64512
      %v362 = vsel %vm361, %v346, %v348
      %v363 = vsel %vm361, %v350, %v352
      %v364 = vsel %vm361, %v354, %v356
      %v365 = vsel %vm361, %v358, %v360
      %v371 = vsel %vm292, %v246, 0
      %v374 = vsel %vm292, %v247, 0
      %376 = vmatpush.msra.mxu0 0.0
      %377 = vmatpush.msra.mxu0 0.0
      %378 = vmatpush.msra.mxu0 0.0
      %379 = vmatpush.msra.mxu0 0.0
      %380 = vmatpush.msra.mxu0 0.0
      %381 = vmatpush.msra.mxu0 0.0
      %382 = vmatpush.msra.mxu0 0.0
      %383 = vmatpush.msra.mxu0 0.0
      %384 = vmatpush.msra.mxu0 0.0
      %385 = vmatpush.msra.mxu0 0.0
      %386 = vmatpush.msra.mxu0 0.0
      %387 = vmatpush.msra.mxu0 0.0
      %388 = vmatpush.msra.mxu0 0.0
      %389 = vmatpush.msra.mxu0 0.0
      %390 = vmatpush.msra.mxu0 %v364
      %391 = vmatpush.msra.mxu0 %v362
      %392 = vmatmul.f32.gmra.mxu0 %v371
      %v393 = vpop.f32.mrf.mxu0
      %v394 = vadd.f32 %v317, %v393
      %395 = vmatmul.f32.gmra.mxu0 %v374
      %v396 = vpop.f32.mrf.mxu0
      %v397 = vadd.f32 %v320, %v396
      %398 = vdwg.mxu0
      %399 = vmatpush.msra.mxu0 0.0
      %400 = vmatpush.msra.mxu0 0.0
      %401 = vmatpush.msra.mxu0 0.0
      %402 = vmatpush.msra.mxu0 0.0
      %403 = vmatpush.msra.mxu0 0.0
      %404 = vmatpush.msra.mxu0 0.0
      %405 = vmatpush.msra.mxu0 0.0
      %406 = vmatpush.msra.mxu0 0.0
      %407 = vmatpush.msra.mxu0 0.0
      %408 = vmatpush.msra.mxu0 0.0
      %409 = vmatpush.msra.mxu0 0.0
      %410 = vmatpush.msra.mxu0 0.0
      %411 = vmatpush.msra.mxu0 0.0
      %412 = vmatpush.msra.mxu0 0.0
      %413 = vmatpush.msra.mxu0 %v365
      %414 = vmatpush.msra.mxu0 %v363
      %415 = vmatmul.f32.gmra.mxu0 %v371
      %v416 = vpop.f32.mrf.mxu0
      %v417 = vadd.f32 %v340, %v416
      %418 = vmatmul.f32.gmra.mxu0 %v374
      %v419 = vpop.f32.mrf.mxu0
      %v420 = vadd.f32 %v343, %v419
      %421 = vdwg.mxu0
      %s422 = scalar_lea.vmem %s1, 32
      %v423 = vld [vmem:[%s422] sm:$0xff]
      %v424 = vld [vmem:[%s422 + $0x8] sm:$0xff]
      %v426 = vsel %vm292, %v423, 0
      %v429 = vsel %vm292, %v424, 0
      %431 = vmatpush.msra.mxu0 0.0
      %432 = vmatpush.msra.mxu0 0.0
      %433 = vmatpush.msra.mxu0 0.0
      %434 = vmatpush.msra.mxu0 0.0
      %435 = vmatpush.msra.mxu0 0.0
      %436 = vmatpush.msra.mxu0 0.0
      %437 = vmatpush.msra.mxu0 0.0
      %438 = vmatpush.msra.mxu0 0.0
      %439 = vmatpush.msra.mxu0 0.0
      %440 = vmatpush.msra.mxu0 0.0
      %441 = vmatpush.msra.mxu0 0.0
      %442 = vmatpush.msra.mxu0 0.0
      %443 = vmatpush.msra.mxu0 0.0
      %444 = vmatpush.msra.mxu0 0.0
      %445 = vmatpush.msra.mxu0 %v253
      %446 = vmatpush.msra.mxu0 %v249
      %447 = vmatmul.f32.gmra.mxu0 %v426
      %v448 = vpop.f32.mrf.mxu0
      %v449 = vadd.f32 0.0, %v448
      %450 = vmatmul.f32.gmra.mxu0 %v429
      %v451 = vpop.f32.mrf.mxu0
      %v452 = vadd.f32 0.0, %v451
      %453 = vdwg.mxu0
      %454 = vmatpush.msra.mxu0 0.0
      %455 = vmatpush.msra.mxu0 0.0
      %456 = vmatpush.msra.mxu0 0.0
      %457 = vmatpush.msra.mxu0 0.0
      %458 = vmatpush.msra.mxu0 0.0
      %459 = vmatpush.msra.mxu0 0.0
      %460 = vmatpush.msra.mxu0 0.0
      %461 = vmatpush.msra.mxu0 0.0
      %462 = vmatpush.msra.mxu0 0.0
      %463 = vmatpush.msra.mxu0 0.0
      %464 = vmatpush.msra.mxu0 0.0
      %465 = vmatpush.msra.mxu0 0.0
      %466 = vmatpush.msra.mxu0 0.0
      %467 = vmatpush.msra.mxu0 0.0
      %468 = vmatpush.msra.mxu0 %v255
      %469 = vmatpush.msra.mxu0 %v251
      %470 = vmatmul.f32.gmra.mxu0 %v426
      %v471 = vpop.f32.mrf.mxu0
      %v472 = vadd.f32 0.0, %v471
      %473 = vmatmul.f32.gmra.mxu0 %v429
      %v474 = vpop.f32.mrf.mxu0
      %v475 = vadd.f32 0.0, %v474
      %476 = vdwg.mxu0
      %v477 = vadd.f32 %v394, %v449
      %v478 = vadd.f32 %v417, %v472
      %v479 = vadd.f32 %v397, %v452
      %v480 = vadd.f32 %v420, %v475
      %v481 = vld [vmem:[%s2] sm:$0xff]
      %v482 = vld [vmem:[%s2 + $0x8] sm:$0xff]
      %484 = vset.pattern.permute.xlu0 0
      %485 = vperm.xlu0 %484, %v481
      %v486 = vpop.permute.xlu0 %485
      %489 = vset.pattern.permute.xlu0 0
      %490 = vperm.xlu0 %489, %v482
      %v491 = vpop.permute.xlu0 %490
      %v493 = vadd.f32 %v477, %v486
      %v494 = vadd.f32 %v478, %v486
      %v495 = vadd.f32 %v479, %v491
      %v496 = vadd.f32 %v480, %v491
      %v497 = vmax.f32 %v493, 0.0
      %v498 = vmax.f32 %v494, 0.0
      %v499 = vmax.f32 %v495, 0.0
      %v500 = vmax.f32 %v496, 0.0
      %501 = vst [vmem:[#allocation3] sm:$0xff] 0.0
      %502 = vst [vmem:[#allocation3 + $0x20] sm:$0xff] 0.0
      %503 = vst [vmem:[#allocation3 + $0x8] sm:$0xff] %v497
      %504 = vst [vmem:[#allocation3 + $0x28] sm:$0xff] %v499
      %505 = vst [vmem:[#allocation3 + $0x10] sm:$0xff] 0.0
      %506 = vst [vmem:[#allocation3 + $0x30] sm:$0xff] 0.0
      %507 = vst [vmem:[#allocation3 + $0x18] sm:$0xff] %v498
      %508 = vst [vmem:[#allocation3 + $0x38] sm:$0xff] %v500
      %v509 = vld [vmem:[%s3] sm:$0xff]
      %v510 = vld [vmem:[%s3 + $0x8] sm:$0xff]
      %v511 = vld [vmem:[#allocation3] sm:$0xff]
      %v512 = vld [vmem:[#allocation3 + $0x8] sm:$0xff]
      %v513 = vld [vmem:[#allocation3 + $0x10] sm:$0xff]
      %v514 = vld [vmem:[#allocation3 + $0x18] sm:$0xff]
      %v515 = vld [vmem:[#allocation3 + $0x20] sm:$0xff]
      %v516 = vld [vmem:[#allocation3 + $0x28] sm:$0xff]
      %v517 = vld [vmem:[#allocation3 + $0x30] sm:$0xff]
      %v518 = vld [vmem:[#allocation3 + $0x38] sm:$0xff]
      %s519 = scalar_lea.vmem %s3, 16
      %v520 = vld [vmem:[%s519] sm:$0xff]
      %v521 = vld [vmem:[%s519 + $0x8] sm:$0xff]
      %530 = vrot.lane.b32.xlu0 %v511, 4
      %v531 = vpop.permute.xlu0 %530
      %532 = vrot.lane.b32.xlu0 %v512, 4
      %v533 = vpop.permute.xlu0 %532
      %534 = vrot.lane.b32.xlu0 %v513, 4
      %v535 = vpop.permute.xlu0 %534
      %536 = vrot.lane.b32.xlu0 %v514, 4
      %v537 = vpop.permute.xlu0 %536
      %538 = vrot.lane.b32.xlu0 %v515, 4
      %v539 = vpop.permute.xlu0 %538
      %540 = vrot.lane.b32.xlu0 %v516, 4
      %v541 = vpop.permute.xlu0 %540
      %542 = vrot.lane.b32.xlu0 %v517, 4
      %v543 = vpop.permute.xlu0 %542
      %544 = vrot.lane.b32.xlu0 %v518, 4
      %v545 = vpop.permute.xlu0 %544
      %v546 = vsel %vm283, %v531, %v533
      %v547 = vsel %vm283, %v535, %v537
      %v548 = vsel %vm283, %v539, %v541
      %v549 = vsel %vm283, %v543, %v545
      %v555 = vsel %vm292, %v520, 0
      %v558 = vsel %vm292, %v521, 0
      %560 = vmatpush.msra.mxu0 0.0
      %561 = vmatpush.msra.mxu0 0.0
      %562 = vmatpush.msra.mxu0 0.0
      %563 = vmatpush.msra.mxu0 0.0
      %564 = vmatpush.msra.mxu0 0.0
      %565 = vmatpush.msra.mxu0 0.0
      %566 = vmatpush.msra.mxu0 0.0
      %567 = vmatpush.msra.mxu0 0.0
      %568 = vmatpush.msra.mxu0 0.0
      %569 = vmatpush.msra.mxu0 0.0
      %570 = vmatpush.msra.mxu0 0.0
      %571 = vmatpush.msra.mxu0 0.0
      %572 = vmatpush.msra.mxu0 0.0
      %573 = vmatpush.msra.mxu0 0.0
      %574 = vmatpush.msra.mxu0 %v548
      %575 = vmatpush.msra.mxu0 %v546
      %576 = vmatmul.f32.gmra.mxu0 %v555
      %v577 = vpop.f32.mrf.mxu0
      %v578 = vadd.f32 0.0, %v577
      %579 = vmatmul.f32.gmra.mxu0 %v558
      %v580 = vpop.f32.mrf.mxu0
      %v581 = vadd.f32 0.0, %v580
      %582 = vdwg.mxu0
      %583 = vmatpush.msra.mxu0 0.0
      %584 = vmatpush.msra.mxu0 0.0
      %585 = vmatpush.msra.mxu0 0.0
      %586 = vmatpush.msra.mxu0 0.0
      %587 = vmatpush.msra.mxu0 0.0
      %588 = vmatpush.msra.mxu0 0.0
      %589 = vmatpush.msra.mxu0 0.0
      %590 = vmatpush.msra.mxu0 0.0
      %591 = vmatpush.msra.mxu0 0.0
      %592 = vmatpush.msra.mxu0 0.0
      %593 = vmatpush.msra.mxu0 0.0
      %594 = vmatpush.msra.mxu0 0.0
      %595 = vmatpush.msra.mxu0 0.0
      %596 = vmatpush.msra.mxu0 0.0
      %597 = vmatpush.msra.mxu0 %v549
      %598 = vmatpush.msra.mxu0 %v547
      %599 = vmatmul.f32.gmra.mxu0 %v555
      %v600 = vpop.f32.mrf.mxu0
      %v601 = vadd.f32 0.0, %v600
      %602 = vmatmul.f32.gmra.mxu0 %v558
      %v603 = vpop.f32.mrf.mxu0
      %v604 = vadd.f32 0.0, %v603
      %605 = vdwg.mxu0
      %606 = vrot.lane.b32.xlu0 %v511, 8
      %v607 = vpop.permute.xlu0 %606
      %608 = vrot.lane.b32.xlu0 %v512, 8
      %v609 = vpop.permute.xlu0 %608
      %610 = vrot.lane.b32.xlu0 %v513, 8
      %v611 = vpop.permute.xlu0 %610
      %612 = vrot.lane.b32.xlu0 %v514, 8
      %v613 = vpop.permute.xlu0 %612
      %614 = vrot.lane.b32.xlu0 %v515, 8
      %v615 = vpop.permute.xlu0 %614
      %616 = vrot.lane.b32.xlu0 %v516, 8
      %v617 = vpop.permute.xlu0 %616
      %618 = vrot.lane.b32.xlu0 %v517, 8
      %v619 = vpop.permute.xlu0 %618
      %620 = vrot.lane.b32.xlu0 %v518, 8
      %v621 = vpop.permute.xlu0 %620
      %v622 = vsel %vm361, %v607, %v609
      %v623 = vsel %vm361, %v611, %v613
      %v624 = vsel %vm361, %v615, %v617
      %v625 = vsel %vm361, %v619, %v621
      %v631 = vsel %vm292, %v509, 0
      %v634 = vsel %vm292, %v510, 0
      %636 = vmatpush.msra.mxu0 0.0
      %637 = vmatpush.msra.mxu0 0.0
      %638 = vmatpush.msra.mxu0 0.0
      %639 = vmatpush.msra.mxu0 0.0
      %640 = vmatpush.msra.mxu0 0.0
      %641 = vmatpush.msra.mxu0 0.0
      %642 = vmatpush.msra.mxu0 0.0
      %643 = vmatpush.msra.mxu0 0.0
      %644 = vmatpush.msra.mxu0 0.0
      %645 = vmatpush.msra.mxu0 0.0
      %646 = vmatpush.msra.mxu0 0.0
      %647 = vmatpush.msra.mxu0 0.0
      %648 = vmatpush.msra.mxu0 0.0
      %649 = vmatpush.msra.mxu0 0.0
      %650 = vmatpush.msra.mxu0 %v624
      %651 = vmatpush.msra.mxu0 %v622
      %652 = vmatmul.f32.gmra.mxu0 %v631
      %v653 = vpop.f32.mrf.mxu0
      %v654 = vadd.f32 %v578, %v653
      %655 = vmatmul.f32.gmra.mxu0 %v634
      %v656 = vpop.f32.mrf.mxu0
      %v657 = vadd.f32 %v581, %v656
      %658 = vdwg.mxu0
      %659 = vmatpush.msra.mxu0 0.0
      %660 = vmatpush.msra.mxu0 0.0
      %661 = vmatpush.msra.mxu0 0.0
      %662 = vmatpush.msra.mxu0 0.0
      %663 = vmatpush.msra.mxu0 0.0
      %664 = vmatpush.msra.mxu0 0.0
      %665 = vmatpush.msra.mxu0 0.0
      %666 = vmatpush.msra.mxu0 0.0
      %667 = vmatpush.msra.mxu0 0.0
      %668 = vmatpush.msra.mxu0 0.0
      %669 = vmatpush.msra.mxu0 0.0
      %670 = vmatpush.msra.mxu0 0.0
      %671 = vmatpush.msra.mxu0 0.0
      %672 = vmatpush.msra.mxu0 0.0
      %673 = vmatpush.msra.mxu0 %v625
      %674 = vmatpush.msra.mxu0 %v623
      %675 = vmatmul.f32.gmra.mxu0 %v631
      %v676 = vpop.f32.mrf.mxu0
      %v677 = vadd.f32 %v601, %v676
      %678 = vmatmul.f32.gmra.mxu0 %v634
      %v679 = vpop.f32.mrf.mxu0
      %v680 = vadd.f32 %v604, %v679
      %681 = vdwg.mxu0
      %s682 = scalar_lea.vmem %s3, 32
      %v683 = vld [vmem:[%s682] sm:$0xff]
      %v684 = vld [vmem:[%s682 + $0x8] sm:$0xff]
      %v686 = vsel %vm292, %v683, 0
      %v689 = vsel %vm292, %v684, 0
      %691 = vmatpush.msra.mxu0 0.0
      %692 = vmatpush.msra.mxu0 0.0
      %693 = vmatpush.msra.mxu0 0.0
      %694 = vmatpush.msra.mxu0 0.0
      %695 = vmatpush.msra.mxu0 0.0
      %696 = vmatpush.msra.mxu0 0.0
      %697 = vmatpush.msra.mxu0 0.0
      %698 = vmatpush.msra.mxu0 0.0
      %699 = vmatpush.msra.mxu0 0.0
      %700 = vmatpush.msra.mxu0 0.0
      %701 = vmatpush.msra.mxu0 0.0
      %702 = vmatpush.msra.mxu0 0.0
      %703 = vmatpush.msra.mxu0 0.0
      %704 = vmatpush.msra.mxu0 0.0
      %705 = vmatpush.msra.mxu0 %v516
      %706 = vmatpush.msra.mxu0 %v512
      %707 = vmatmul.f32.gmra.mxu0 %v686
      %v708 = vpop.f32.mrf.mxu0
      %v709 = vadd.f32 0.0, %v708
      %710 = vmatmul.f32.gmra.mxu0 %v689
      %v711 = vpop.f32.mrf.mxu0
      %v712 = vadd.f32 0.0, %v711
      %713 = vdwg.mxu0
      %714 = vmatpush.msra.mxu0 0.0
      %715 = vmatpush.msra.mxu0 0.0
      %716 = vmatpush.msra.mxu0 0.0
      %717 = vmatpush.msra.mxu0 0.0
      %718 = vmatpush.msra.mxu0 0.0
      %719 = vmatpush.msra.mxu0 0.0
      %720 = vmatpush.msra.mxu0 0.0
      %721 = vmatpush.msra.mxu0 0.0
      %722 = vmatpush.msra.mxu0 0.0
      %723 = vmatpush.msra.mxu0 0.0
      %724 = vmatpush.msra.mxu0 0.0
      %725 = vmatpush.msra.mxu0 0.0
      %726 = vmatpush.msra.mxu0 0.0
      %727 = vmatpush.msra.mxu0 0.0
      %728 = vmatpush.msra.mxu0 %v518
      %729 = vmatpush.msra.mxu0 %v514
      %730 = vmatmul.f32.gmra.mxu0 %v686
      %v731 = vpop.f32.mrf.mxu0
      %v732 = vadd.f32 0.0, %v731
      %733 = vmatmul.f32.gmra.mxu0 %v689
      %v734 = vpop.f32.mrf.mxu0
      %v735 = vadd.f32 0.0, %v734
      %736 = vdwg.mxu0
      %v737 = vadd.f32 %v654, %v709
      %v738 = vadd.f32 %v677, %v732
      %v739 = vadd.f32 %v657, %v712
      %v740 = vadd.f32 %v680, %v735
      %v741 = vld [vmem:[%s4] sm:$0xff]
      %v742 = vld [vmem:[%s4 + $0x8] sm:$0xff]
      %744 = vset.pattern.permute.xlu0 0
      %745 = vperm.xlu0 %744, %v741
      %v746 = vpop.permute.xlu0 %745
      %749 = vset.pattern.permute.xlu0 0
      %750 = vperm.xlu0 %749, %v742
      %v751 = vpop.permute.xlu0 %750
      %v753 = vadd.f32 %v737, %v746
      %v754 = vadd.f32 %v738, %v746
      %v755 = vadd.f32 %v739, %v751
      %v756 = vadd.f32 %v740, %v751
      %v757 = vmax.f32 %v753, 0.0
      %v758 = vmax.f32 %v754, 0.0
      %v759 = vmax.f32 %v755, 0.0
      %v760 = vmax.f32 %v756, 0.0
      %v761 = vld [vmem:[%s224] sm:$0xff]
      %v762 = vld [vmem:[%s224 + $0x8] sm:$0xff]
      %v763 = vadd.f32 %v757, %v761
      %v764 = vadd.f32 %v759, %v762
      %765 = vst [vmem:[%s231] sm:$0xff] %v763
      %766 = vst [vmem:[%s231 + $0x8] sm:$0xff] %v764
      %v767 = vld [vmem:[%s241] sm:$0xff]
      %v768 = vld [vmem:[%s241 + $0x8] sm:$0xff]
      %v769 = vadd.f32 %v758, %v767
      %v770 = vadd.f32 %v760, %v768
      %s771 = scalar_lea.vmem %s231, 16
      %772 = vst [vmem:[%s771] sm:$0xff] %v769
      %773 = vst [vmem:[%s771 + $0x8] sm:$0xff] %v770
      %s774 = smul.u32 2, %s16
      %p775 = scmp.lt.s32.totalorder %s774, 3
      %s776 = scalar_select %p775, %s774, 3
      %s777 = smul.addr %s776, 2
      %s778 = smul.addr %s777, 8
      %s779 = scalar_lea.vmem %s5, %s778
      // Predicated region
      $region41: #{temporal_conv_net_fwd.5} parent=39 // pred_check
        %p780 = pneg %p144
      $region42: #{temporal_conv_net_fwd.5} parent=39 // pred_check_branch
        %782 = sbr.rel (%p780) target = $region44
      $region43: #{temporal_conv_net_fwd.5} parent=39 // pred_region
        %s783 = smul.u32 2, %s16
      $region44: #{temporal_conv_net_fwd.5} parent=39 // pred_fallthru
        _
    $region40: #{temporal_conv_net_fwd.5} parent=5 // pred_fallthru
      _
    %p784 = scmp.le.s32.totalorder 2, %s11
    // Predicated region
    $region45: #{temporal_conv_net_fwd.5} parent=5 // pred_check
      %p785 = pneg %p784
    $region46: #{temporal_conv_net_fwd.5} parent=5 // pred_check_branch
      %787 = sbr.rel (%p785) target = $region48
    $region47: #{temporal_conv_net_fwd.5} parent=5 // pred_region
      %s788 = ssub.s32 %s11, 2
      // Predicated region
      $region49: #{temporal_conv_net_fwd.5} parent=47 // pred_check
        %p789 = pneg %p150
      $region50: #{temporal_conv_net_fwd.5} parent=47 // pred_check_branch
        %791 = sbr.rel (%p789) target = $region52
      $region51: #{temporal_conv_net_fwd.5} parent=47 // pred_region
        %s792 = smul.u32 2, %s17
        %p793 = scmp.lt.s32.totalorder %s792, 3
        %s794 = scalar_select %p793, %s792, 3
        %s795 = smul.addr %s794, 2
        %s796 = smul.addr %s795, 8
        %s797 = scalar_lea.vmem %s5, %s796
      $region52: #{temporal_conv_net_fwd.5} parent=47 // pred_fallthru
        _
    $region48: #{temporal_conv_net_fwd.5} parent=5 // pred_fallthru
      _
  $region6: #{temporal_conv_net_fwd.5} parent=0 // loop_footer
    %s15 = sadd.s32 1, %s11
  $region7: #{temporal_conv_net_fwd.5} parent=0 // loop_footer_branch
    %10 = sbr.rel target = $region3
  $region8: #{temporal_conv_net_fwd.5} parent=0 // loop_exit
    _

// kernel: temporal_conv_net_fwd.4
$region0: #{temporal_conv_net_fwd.4}
  #allocation0 [shape = 'u32[]', space=smem, size = 0x4, offset = 0x4, fixed_abs, tag = 'smem constant byte address 0x4 - core index']
  #allocation1 [shape = 'u32[72,128]{1,0:T(1,128)}', space=vmem, size = 0x9000, scoped, tag = 'internal scratch']
  #allocation2 [shape = 'f32[8,512]{1,0:T(8,128)}', space=vmem, size = 0x4000, scoped, tag = 'scratch operand']
  #allocation3 [shape = 'f32[16,512]{1,0:T(8,128)}', space=vmem, size = 0x8000, scoped, tag = 'scratch operand']
  %s0 = inlined_call_operand.vmem [shape: f32[4,8,128], index: 0, kind: input, shape index: {}]
  %s1 = inlined_call_operand.vmem [shape: f32[3,16,8], index: 1, kind: input, shape index: {}]
  %s2 = inlined_call_operand.vmem [shape: f32[16,1], index: 2, kind: input, shape index: {}]
  %s3 = inlined_call_operand.vmem [shape: f32[3,16,16], index: 3, kind: input, shape index: {}]
  %s4 = inlined_call_operand.vmem [shape: f32[16,1], index: 4, kind: input, shape index: {}]
  %s5 = inlined_call_operand.vmem [shape: f32[16,8], index: 5, kind: input, shape index: {}]
  %s6 = inlined_call_operand.vmem [shape: f32[16,1], index: 6, kind: input, shape index: {}]
  %s7 = inlined_call_operand.vmem [shape: f32[4,16,128], index: 7, kind: output, shape index: {}]
  %s8 = sld [smem:[#allocation0]]
  $region61: #{temporal_conv_net_fwd.4} parent=0
    _
  %s10 = ssub.s32 1, %s8
  %s11 = scalar_select 0, %s10, %s8
  loop: start=0, step=1, limit=4
  $region2: #{temporal_conv_net_fwd.4} parent=0 // loop_pre_header
    _
  $region3: #{temporal_conv_net_fwd.4} parent=0 // loop_header
    %s13 = sphi 0, %s17
    %p14 = scmp.ge.s32.totalorder %s13, 4
    %s23 = sphi 0, %s25
    %s26 = sphi 0, %s23
    %s27 = sphi 0, %s26
    %s43 = sphi 0, %s27
    %s47 = sphi 0, %s47
    %s49 = sphi 0, %s47
    %s50 = sphi 0, %s49
    %s64 = sphi 0, %s50
    %s68 = sphi 0, %s68
    %s70 = sphi 0, %s68
    %s71 = sphi 0, %s70
    %s85 = sphi 0, %s71
    %s89 = sphi 0, %s89
    %s91 = sphi 0, %s89
    %s92 = sphi 0, %s91
    %s106 = sphi 0, %s92
    %s110 = sphi 0, %s110
    %s112 = sphi 0, %s110
    %s113 = sphi 0, %s112
    %s127 = sphi 0, %s113
    %s131 = sphi 0, %s131
    %s133 = sphi 0, %s131
    %s134 = sphi 0, %s133
    %s148 = sphi 0, %s134
    %s152 = sphi 0, %s152
    %s154 = sphi 0, %s152
    %s155 = sphi 0, %s154
    %s169 = sphi 0, %s155
    %s175 = sphi 0, %s177
    %s178 = sphi 0, %s175
    %s179 = sphi 0, %s178
    %s195 = sphi 0, %s179
  $region4: #{temporal_conv_net_fwd.4} parent=0 // loop_header_branch
    %16 = sbr.rel (%p14) target = $region8
  $region5: #{temporal_conv_net_fwd.4} parent=0 // loop_body
    %s18 = ssub.s32 %s13, 1
    %s19 = ssub.s32 %s13, 2
    %s20 = sadd.s32 %s13, 1
    %s21 = ssub.s32 %s13, %s20
    %p22 = scmp.eq.s32.totalorder %s21, 0
    %s24 = sadd.s32 %s23, 1
    %s25 = scalar_select %p22, %s23, %s24
    %p28 = pneg %p22
    %p29 = scmp.eq.s32.totalorder %s13, 1
    %p30 = por %p28, %p29
    %p31 = scmp.ne.s32.totalorder %s23, %s26
    %p32 = scmp.eq.s32.totalorder %s13, 0
    %p33 = por %p31, %p32
    %p34 = scmp.ne.s32.totalorder %s23, %s26
    %p35 = scmp.eq.s32.totalorder %s18, 1
    %p36 = por %p34, %p35
    %p37 = scmp.ne.s32.totalorder %s26, %s27
    %p38 = scmp.eq.s32.totalorder %s18, 0
    %p39 = por %p37, %p38
    %p40 = scmp.ne.s32.totalorder %s26, %s27
    %p41 = scmp.eq.s32.totalorder %s19, 1
    %p42 = por %p40, %p41
    %p44 = scmp.ne.s32.totalorder %s27, %s43
    %p45 = scmp.eq.s32.totalorder %s19, 0
    %p46 = por %p44, %p45
    %s48 = sadd.s32 %s47, 1
    %p51 = scmp.eq.s32.totalorder %s13, 1
    %p52 = scmp.ne.s32.totalorder %s47, %s49
    %p53 = scmp.eq.s32.totalorder %s13, 0
    %p54 = por %p52, %p53
    %p55 = scmp.ne.s32.totalorder %s47, %s49
    %p56 = scmp.eq.s32.totalorder %s18, 1
    %p57 = por %p55, %p56
    %p58 = scmp.ne.s32.totalorder %s49, %s50
    %p59 = scmp.eq.s32.totalorder %s18, 0
    %p60 = por %p58, %p59
    %p61 = scmp.ne.s32.totalorder %s49, %s50
    %p62 = scmp.eq.s32.totalorder %s19, 1
    %p63 = por %p61, %p62
    %p65 = scmp.ne.s32.totalorder %s50, %s64
    %p66 = scmp.eq.s32.totalorder %s19, 0
    %p67 = por %p65, %p66
    %s69 = sadd.s32 %s68, 1
    %p72 = scmp.eq.s32.totalorder %s13, 1
    %p73 = scmp.ne.s32.totalorder %s68, %s70
    %p74 = scmp.eq.s32.totalorder %s13, 0
    %p75 = por %p73, %p74
    %p76 = scmp.ne.s32.totalorder %s68, %s70
    %p77 = scmp.eq.s32.totalorder %s18, 1
    %p78 = por %p76, %p77
    %p79 = scmp.ne.s32.totalorder %s70, %s71
    %p80 = scmp.eq.s32.totalorder %s18, 0
    %p81 = por %p79, %p80
    %p82 = scmp.ne.s32.totalorder %s70, %s71
    %p83 = scmp.eq.s32.totalorder %s19, 1
    %p84 = por %p82, %p83
    %p86 = scmp.ne.s32.totalorder %s71, %s85
    %p87 = scmp.eq.s32.totalorder %s19, 0
    %p88 = por %p86, %p87
    %s90 = sadd.s32 %s89, 1
    %p93 = scmp.eq.s32.totalorder %s13, 1
    %p94 = scmp.ne.s32.totalorder %s89, %s91
    %p95 = scmp.eq.s32.totalorder %s13, 0
    %p96 = por %p94, %p95
    %p97 = scmp.ne.s32.totalorder %s89, %s91
    %p98 = scmp.eq.s32.totalorder %s18, 1
    %p99 = por %p97, %p98
    %p100 = scmp.ne.s32.totalorder %s91, %s92
    %p101 = scmp.eq.s32.totalorder %s18, 0
    %p102 = por %p100, %p101
    %p103 = scmp.ne.s32.totalorder %s91, %s92
    %p104 = scmp.eq.s32.totalorder %s19, 1
    %p105 = por %p103, %p104
    %p107 = scmp.ne.s32.totalorder %s92, %s106
    %p108 = scmp.eq.s32.totalorder %s19, 0
    %p109 = por %p107, %p108
    %s111 = sadd.s32 %s110, 1
    %p114 = scmp.eq.s32.totalorder %s13, 1
    %p115 = scmp.ne.s32.totalorder %s110, %s112
    %p116 = scmp.eq.s32.totalorder %s13, 0
    %p117 = por %p115, %p116
    %p118 = scmp.ne.s32.totalorder %s110, %s112
    %p119 = scmp.eq.s32.totalorder %s18, 1
    %p120 = por %p118, %p119
    %p121 = scmp.ne.s32.totalorder %s112, %s113
    %p122 = scmp.eq.s32.totalorder %s18, 0
    %p123 = por %p121, %p122
    %p124 = scmp.ne.s32.totalorder %s112, %s113
    %p125 = scmp.eq.s32.totalorder %s19, 1
    %p126 = por %p124, %p125
    %p128 = scmp.ne.s32.totalorder %s113, %s127
    %p129 = scmp.eq.s32.totalorder %s19, 0
    %p130 = por %p128, %p129
    %s132 = sadd.s32 %s131, 1
    %p135 = scmp.eq.s32.totalorder %s13, 1
    %p136 = scmp.ne.s32.totalorder %s131, %s133
    %p137 = scmp.eq.s32.totalorder %s13, 0
    %p138 = por %p136, %p137
    %p139 = scmp.ne.s32.totalorder %s131, %s133
    %p140 = scmp.eq.s32.totalorder %s18, 1
    %p141 = por %p139, %p140
    %p142 = scmp.ne.s32.totalorder %s133, %s134
    %p143 = scmp.eq.s32.totalorder %s18, 0
    %p144 = por %p142, %p143
    %p145 = scmp.ne.s32.totalorder %s133, %s134
    %p146 = scmp.eq.s32.totalorder %s19, 1
    %p147 = por %p145, %p146
    %p149 = scmp.ne.s32.totalorder %s134, %s148
    %p150 = scmp.eq.s32.totalorder %s19, 0
    %p151 = por %p149, %p150
    %s153 = sadd.s32 %s152, 1
    %p156 = scmp.eq.s32.totalorder %s13, 1
    %p157 = scmp.ne.s32.totalorder %s152, %s154
    %p158 = scmp.eq.s32.totalorder %s13, 0
    %p159 = por %p157, %p158
    %p160 = scmp.ne.s32.totalorder %s152, %s154
    %p161 = scmp.eq.s32.totalorder %s18, 1
    %p162 = por %p160, %p161
    %p163 = scmp.ne.s32.totalorder %s154, %s155
    %p164 = scmp.eq.s32.totalorder %s18, 0
    %p165 = por %p163, %p164
    %p166 = scmp.ne.s32.totalorder %s154, %s155
    %p167 = scmp.eq.s32.totalorder %s19, 1
    %p168 = por %p166, %p167
    %p170 = scmp.ne.s32.totalorder %s155, %s169
    %p171 = scmp.eq.s32.totalorder %s19, 0
    %p172 = por %p170, %p171
    %s173 = ssub.s32 %s13, %s20
    %p174 = scmp.eq.s32.totalorder %s173, 0
    %s176 = sadd.s32 %s175, 1
    %s177 = scalar_select %p174, %s175, %s176
    %p180 = pneg %p174
    %p181 = scmp.eq.s32.totalorder %s13, 1
    %p182 = por %p180, %p181
    %p183 = scmp.ne.s32.totalorder %s175, %s178
    %p184 = scmp.eq.s32.totalorder %s13, 0
    %p185 = por %p183, %p184
    %p186 = scmp.ne.s32.totalorder %s175, %s178
    %p187 = scmp.eq.s32.totalorder %s18, 1
    %p188 = por %p186, %p187
    %p189 = scmp.ne.s32.totalorder %s178, %s179
    %p190 = scmp.eq.s32.totalorder %s18, 0
    %p191 = por %p189, %p190
    %p192 = scmp.ne.s32.totalorder %s178, %s179
    %p193 = scmp.eq.s32.totalorder %s19, 1
    %p194 = por %p192, %p193
    %p196 = scmp.ne.s32.totalorder %s179, %s195
    %p197 = scmp.eq.s32.totalorder %s19, 0
    %p198 = por %p196, %p197
    %p199 = scmp.le.s32.totalorder 1, %s13
    %p200 = scmp.lt.s32.totalorder %s13, 3
    %p201 = pnand %p199, %p200
    %p202 = pneg %p201
    // Predicated region
    $region9: #{temporal_conv_net_fwd.4} parent=5 // pred_check
      _
    $region10: #{temporal_conv_net_fwd.4} parent=5 // pred_check_branch
      %204 = sbr.rel (%p201) target = $region12
    $region11: #{temporal_conv_net_fwd.4} parent=5 // pred_region
      %s205 = ssub.s32 %s13, 1
      // Predicated region
      $region13: #{temporal_conv_net_fwd.4} parent=11 // pred_check
        %p206 = pneg %p60
      $region14: #{temporal_conv_net_fwd.4} parent=11 // pred_check_branch
        %208 = sbr.rel (%p206) target = $region16
      $region15: #{temporal_conv_net_fwd.4} parent=11 // pred_region
        _
      $region16: #{temporal_conv_net_fwd.4} parent=11 // pred_fallthru
        _
      // Predicated region
      $region17: #{temporal_conv_net_fwd.4} parent=11 // pred_check
        %p209 = pneg %p81
      $region18: #{temporal_conv_net_fwd.4} parent=11 // pred_check_branch
        %211 = sbr.rel (%p209) target = $region20
      $region19: #{temporal_conv_net_fwd.4} parent=11 // pred_region
        _
      $region20: #{temporal_conv_net_fwd.4} parent=11 // pred_fallthru
        _
      // Predicated region
      $region21: #{temporal_conv_net_fwd.4} parent=11 // pred_check
        %p212 = pneg %p102
      $region22: #{temporal_conv_net_fwd.4} parent=11 // pred_check_branch
        %214 = sbr.rel (%p212) target = $region24
      $region23: #{temporal_conv_net_fwd.4} parent=11 // pred_region
        _
      $region24: #{temporal_conv_net_fwd.4} parent=11 // pred_fallthru
        _
      // Predicated region
      $region25: #{temporal_conv_net_fwd.4} parent=11 // pred_check
        %p215 = pneg %p123
      $region26: #{temporal_conv_net_fwd.4} parent=11 // pred_check_branch
        %217 = sbr.rel (%p215) target = $region28
      $region27: #{temporal_conv_net_fwd.4} parent=11 // pred_region
        _
      $region28: #{temporal_conv_net_fwd.4} parent=11 // pred_fallthru
        _
      // Predicated region
      $region29: #{temporal_conv_net_fwd.4} parent=11 // pred_check
        %p218 = pneg %p144
      $region30: #{temporal_conv_net_fwd.4} parent=11 // pred_check_branch
        %220 = sbr.rel (%p218) target = $region32
      $region31: #{temporal_conv_net_fwd.4} parent=11 // pred_region
        _
      $region32: #{temporal_conv_net_fwd.4} parent=11 // pred_fallthru
        _
      // Predicated region
      $region33: #{temporal_conv_net_fwd.4} parent=11 // pred_check
        %p221 = pneg %p165
      $region34: #{temporal_conv_net_fwd.4} parent=11 // pred_check_branch
        %223 = sbr.rel (%p221) target = $region36
      $region35: #{temporal_conv_net_fwd.4} parent=11 // pred_region
        _
      $region36: #{temporal_conv_net_fwd.4} parent=11 // pred_fallthru
        _
    $region12: #{temporal_conv_net_fwd.4} parent=5 // pred_fallthru
      _
    %p224 = scmp.lt.s32.totalorder %s13, 2
    // Predicated region
    $region37: #{temporal_conv_net_fwd.4} parent=5 // pred_check
      %p225 = pneg %p224
    $region38: #{temporal_conv_net_fwd.4} parent=5 // pred_check_branch
      %227 = sbr.rel (%p225) target = $region40
    $region39: #{temporal_conv_net_fwd.4} parent=5 // pred_region
      // Predicated region
      $region41: #{temporal_conv_net_fwd.4} parent=39 // pred_check
        %p228 = pneg %p33
      $region42: #{temporal_conv_net_fwd.4} parent=39 // pred_check_branch
        %230 = sbr.rel (%p228) target = $region44
      $region43: #{temporal_conv_net_fwd.4} parent=39 // pred_region
        %s231 = smul.u32 2, %s13
        %p232 = scmp.lt.s32.totalorder %s231, 3
        %s233 = scalar_select %p232, %s231, 3
        %s234 = smul.addr %s233, 8
        %s235 = scalar_lea.vmem %s0, %s234
        %s236 = smul.u32 2, %s13
      $region44: #{temporal_conv_net_fwd.4} parent=39 // pred_fallthru
        _
    $region40: #{temporal_conv_net_fwd.4} parent=5 // pred_fallthru
      _
    %p237 = scmp.le.s32.totalorder 1, %s13
    %p238 = scmp.lt.s32.totalorder %s13, 3
    %p239 = pnand %p237, %p238
    %p240 = pneg %p239
    // Predicated region
    $region45: #{temporal_conv_net_fwd.4} parent=5 // pred_check
      _
    $region46: #{temporal_conv_net_fwd.4} parent=5 // pred_check_branch
      %242 = sbr.rel (%p239) target = $region48
    $region47: #{temporal_conv_net_fwd.4} parent=5 // pred_region
      %s243 = ssub.s32 %s13, 1
      %s244 = smul.u32 2, %s18
      %p245 = scmp.lt.s32.totalorder %s244, 3
      %s246 = scalar_select %p245, %s244, 3
      %s247 = smul.addr %s246, 8
      %s248 = scalar_lea.vmem %s0, %s247
      %p249 = pneg %p39
      %p250 = pneg %p36
      %p251 = pneg %p60
      %p252 = pneg %p57
      %p253 = pneg %p81
      %p254 = pneg %p78
      %p255 = pneg %p102
      %p256 = pneg %p99
      %p257 = pneg %p123
      %p258 = pneg %p120
      %p259 = pneg %p144
      %p260 = pneg %p141
      %p261 = pneg %p165
      %p262 = pneg %p162
      %p263 = pneg %p191
      %p264 = pneg %p188
      %s265 = smul.u32 2, %s18
      %p266 = scmp.lt.s32.totalorder %s265, 3
      %s267 = scalar_select %p266, %s265, 3
      %s268 = smul.addr %s267, 2
      %s269 = smul.addr %s268, 8
      %s270 = scalar_lea.vmem %s7, %s269
      %s271 = smul.u32 2, %s18
      %p272 = scmp.lt.s32.totalorder %s271, 3
      %s273 = scalar_select %p272, %s271, 3
      %s274 = smul.addr %s273, 8
      %s275 = scalar_lea.vmem %s0, %s274
      %s276 = smul.u32 2, %s18
      %s277 = smul.u32 2, %s18
      %p278 = scmp.lt.s32.totalorder %s277, 3
      %s279 = scalar_select %p278, %s277, 3
      %s280 = smul.addr %s279, 2
      %s281 = smul.addr %s280, 8
      %s282 = scalar_lea.vmem %s7, %s281
      %s283 = smul.u32 2, %s18
      %284 = vst [vmem:[#allocation2] sm:$0xff] 0.0
      %v285 = vld [vmem:[%s275] sm:$0xff]
      %286 = vst [vmem:[#allocation2 + $0x8] sm:$0xff] %v285
      %287 = vst [vmem:[#allocation2 + $0x10] sm:$0xff] 0.0
      %s288 = scalar_lea.vmem %s275, 8
      %v289 = vld [vmem:[%s288] sm:$0xff]
      %290 = vst [vmem:[#allocation2 + $0x18] sm:$0xff] %v289
      %v291 = vld [vmem:[%s1] sm:$0xff]
      %v292 = vld [vmem:[%s1 + $0x8] sm:$0xff]
      %v293 = vld [vmem:[#allocation2] sm:$0xff]
      %v294 = vld [vmem:[#allocation2 + $0x8] sm:$0xff]
      %v295 = vld [vmem:[#allocation2 + $0x10] sm:$0xff]
      %v296 = vld [vmem:[#allocation2 + $0x18] sm:$0xff]
      %s297 = scalar_lea.vmem %s1, 16
      %v298 = vld [vmem:[%s297] sm:$0xff]
      %v299 = vld [vmem:[%s297 + $0x8] sm:$0xff]
      %304 = vrot.lane.b32.xlu0 %v293, 2
      %v305 = vpop.permute.xlu0 %304
      %306 = vrot.lane.b32.xlu0 %v294, 2
      %v307 = vpop.permute.xlu0 %306
      %308 = vrot.lane.b32.xlu0 %v295, 2
      %v309 = vpop.permute.xlu0 %308
      %310 = vrot.lane.b32.xlu0 %v296, 2
      %v311 = vpop.permute.xlu0 %310
      %vm312 = vcmask 15360
      %v313 = vsel %vm312, %v305, %v307
      %v314 = vsel %vm312, %v309, %v311
      %vm317 = vcmask 64512
      %v319 = vsel %vm317, %v298, 0
      %v322 = vsel %vm317, %v299, 0
      %324 = vmatpush.msra.mxu0 0.0
      %325 = vmatpush.msra.mxu0 0.0
      %326 = vmatpush.msra.mxu0 0.0
      %327 = vmatpush.msra.mxu0 0.0
      %328 = vmatpush.msra.mxu0 0.0
      %329 = vmatpush.msra.mxu0 0.0
      %330 = vmatpush.msra.mxu0 0.0
      %331 = vmatpush.msra.mxu0 0.0
      %332 = vmatpush.msra.mxu0 0.0
      %333 = vmatpush.msra.mxu0 0.0
      %334 = vmatpush.msra.mxu0 0.0
      %335 = vmatpush.msra.mxu0 0.0
      %336 = vmatpush.msra.mxu0 0.0
      %337 = vmatpush.msra.mxu0 0.0
      %338 = vmatpush.msra.mxu0 0.0
      %339 = vmatpush.msra.mxu0 %v313
      %340 = vmatmul.f32.gmra.mxu0 %v319
      %v341 = vpop.f32.mrf.mxu0
      %v342 = vadd.f32 0.0, %v341
      %343 = vmatmul.f32.gmra.mxu0 %v322
      %v344 = vpop.f32.mrf.mxu0
      %v345 = vadd.f32 0.0, %v344
      %346 = vdwg.mxu0
      %347 = vmatpush.msra.mxu0 0.0
      %348 = vmatpush.msra.mxu0 0.0
      %349 = vmatpush.msra.mxu0 0.0
      %350 = vmatpush.msra.mxu0 0.0
      %351 = vmatpush.msra.mxu0 0.0
      %352 = vmatpush.msra.mxu0 0.0
      %353 = vmatpush.msra.mxu0 0.0
      %354 = vmatpush.msra.mxu0 0.0
      %355 = vmatpush.msra.mxu0 0.0
      %356 = vmatpush.msra.mxu0 0.0
      %357 = vmatpush.msra.mxu0 0.0
      %358 = vmatpush.msra.mxu0 0.0
      %359 = vmatpush.msra.mxu0 0.0
      %360 = vmatpush.msra.mxu0 0.0
      %361 = vmatpush.msra.mxu0 0.0
      %362 = vmatpush.msra.mxu0 %v314
      %363 = vmatmul.f32.gmra.mxu0 %v319
      %v364 = vpop.f32.mrf.mxu0
      %v365 = vadd.f32 0.0, %v364
      %366 = vmatmul.f32.gmra.mxu0 %v322
      %v367 = vpop.f32.mrf.mxu0
      %v368 = vadd.f32 0.0, %v367
      %369 = vdwg.mxu0
      %370 = vrot.lane.b32.xlu0 %v293, 4
      %v371 = vpop.permute.xlu0 %370
      %372 = vrot.lane.b32.xlu0 %v294, 4
      %v373 = vpop.permute.xlu0 %372
      %374 = vrot.lane.b32.xlu0 %v295, 4
      %v375 = vpop.permute.xlu0 %374
      %376 = vrot.lane.b32.xlu0 %v296, 4
      %v377 = vpop.permute.xlu0 %376
      %vm378 = vcmask 31744
      %v379 = vsel %vm378, %v371, %v373
      %v380 = vsel %vm378, %v375, %v377
      %v384 = vsel %vm317, %v291, 0
      %v387 = vsel %vm317, %v292, 0
      %389 = vmatpush.msra.mxu0 0.0
      %390 = vmatpush.msra.mxu0 0.0
      %391 = vmatpush.msra.mxu0 0.0
      %392 = vmatpush.msra.mxu0 0.0
      %393 = vmatpush.msra.mxu0 0.0
      %394 = vmatpush.msra.mxu0 0.0
      %395 = vmatpush.msra.mxu0 0.0
      %396 = vmatpush.msra.mxu0 0.0
      %397 = vmatpush.msra.mxu0 0.0
      %398 = vmatpush.msra.mxu0 0.0
      %399 = vmatpush.msra.mxu0 0.0
      %400 = vmatpush.msra.mxu0 0.0
      %401 = vmatpush.msra.mxu0 0.0
      %402 = vmatpush.msra.mxu0 0.0
      %403 = vmatpush.msra.mxu0 0.0
      %404 = vmatpush.msra.mxu0 %v379
      %405 = vmatmul.f32.gmra.mxu0 %v384
      %v406 = vpop.f32.mrf.mxu0
      %v407 = vadd.f32 %v342, %v406
      %408 = vmatmul.f32.gmra.mxu0 %v387
      %v409 = vpop.f32.mrf.mxu0
      %v410 = vadd.f32 %v345, %v409
      %411 = vdwg.mxu0
      %412 = vmatpush.msra.mxu0 0.0
      %413 = vmatpush.msra.mxu0 0.0
      %414 = vmatpush.msra.mxu0 0.0
      %415 = vmatpush.msra.mxu0 0.0
      %416 = vmatpush.msra.mxu0 0.0
      %417 = vmatpush.msra.mxu0 0.0
      %418 = vmatpush.msra.mxu0 0.0
      %419 = vmatpush.msra.mxu0 0.0
      %420 = vmatpush.msra.mxu0 0.0
      %421 = vmatpush.msra.mxu0 0.0
      %422 = vmatpush.msra.mxu0 0.0
      %423 = vmatpush.msra.mxu0 0.0
      %424 = vmatpush.msra.mxu0 0.0
      %425 = vmatpush.msra.mxu0 0.0
      %426 = vmatpush.msra.mxu0 0.0
      %427 = vmatpush.msra.mxu0 %v380
      %428 = vmatmul.f32.gmra.mxu0 %v384
      %v429 = vpop.f32.mrf.mxu0
      %v430 = vadd.f32 %v365, %v429
      %431 = vmatmul.f32.gmra.mxu0 %v387
      %v432 = vpop.f32.mrf.mxu0
      %v433 = vadd.f32 %v368, %v432
      %434 = vdwg.mxu0
      %s435 = scalar_lea.vmem %s1, 32
      %v436 = vld [vmem:[%s435] sm:$0xff]
      %v437 = vld [vmem:[%s435 + $0x8] sm:$0xff]
      %v439 = vsel %vm317, %v436, 0
      %v442 = vsel %vm317, %v437, 0
      %444 = vmatpush.msra.mxu0 0.0
      %445 = vmatpush.msra.mxu0 0.0
      %446 = vmatpush.msra.mxu0 0.0
      %447 = vmatpush.msra.mxu0 0.0
      %448 = vmatpush.msra.mxu0 0.0
      %449 = vmatpush.msra.mxu0 0.0
      %450 = vmatpush.msra.mxu0 0.0
      %451 = vmatpush.msra.mxu0 0.0
      %452 = vmatpush.msra.mxu0 0.0
      %453 = vmatpush.msra.mxu0 0.0
      %454 = vmatpush.msra.mxu0 0.0
      %455 = vmatpush.msra.mxu0 0.0
      %456 = vmatpush.msra.mxu0 0.0
      %457 = vmatpush.msra.mxu0 0.0
      %458 = vmatpush.msra.mxu0 0.0
      %459 = vmatpush.msra.mxu0 %v294
      %460 = vmatmul.f32.gmra.mxu0 %v439
      %v461 = vpop.f32.mrf.mxu0
      %v462 = vadd.f32 0.0, %v461
      %463 = vmatmul.f32.gmra.mxu0 %v442
      %v464 = vpop.f32.mrf.mxu0
      %v465 = vadd.f32 0.0, %v464
      %466 = vdwg.mxu0
      %467 = vmatpush.msra.mxu0 0.0
      %468 = vmatpush.msra.mxu0 0.0
      %469 = vmatpush.msra.mxu0 0.0
      %470 = vmatpush.msra.mxu0 0.0
      %471 = vmatpush.msra.mxu0 0.0
      %472 = vmatpush.msra.mxu0 0.0
      %473 = vmatpush.msra.mxu0 0.0
      %474 = vmatpush.msra.mxu0 0.0
      %475 = vmatpush.msra.mxu0 0.0
      %476 = vmatpush.msra.mxu0 0.0
      %477 = vmatpush.msra.mxu0 0.0
      %478 = vmatpush.msra.mxu0 0.0
      %479 = vmatpush.msra.mxu0 0.0
      %480 = vmatpush.msra.mxu0 0.0
      %481 = vmatpush.msra.mxu0 0.0
      %482 = vmatpush.msra.mxu0 %v296
      %483 = vmatmul.f32.gmra.mxu0 %v439
      %v484 = vpop.f32.mrf.mxu0
      %v485 = vadd.f32 0.0, %v484
      %486 = vmatmul.f32.gmra.mxu0 %v442
      %v487 = vpop.f32.mrf.mxu0
      %v488 = vadd.f32 0.0, %v487
      %489 = vdwg.mxu0
      %v490 = vadd.f32 %v407, %v462
      %v491 = vadd.f32 %v430, %v485
      %v492 = vadd.f32 %v410, %v465
      %v493 = vadd.f32 %v433, %v488
      %v494 = vld [vmem:[%s2] sm:$0xff]
      %v495 = vld [vmem:[%s2 + $0x8] sm:$0xff]
      %497 = vset.pattern.permute.xlu0 0
      %498 = vperm.xlu0 %497, %v494
      %v499 = vpop.permute.xlu0 %498
      %502 = vset.pattern.permute.xlu0 0
      %503 = vperm.xlu0 %502, %v495
      %v504 = vpop.permute.xlu0 %503
      %v506 = vadd.f32 %v490, %v499
      %v507 = vadd.f32 %v491, %v499
      %v508 = vadd.f32 %v492, %v504
      %v509 = vadd.f32 %v493, %v504
      %v510 = vmax.f32 %v506, 0.0
      %v511 = vmax.f32 %v507, 0.0
      %v512 = vmax.f32 %v508, 0.0
      %v513 = vmax.f32 %v509, 0.0
      %514 = vst [vmem:[#allocation3] sm:$0xff] 0.0
      %515 = vst [vmem:[#allocation3 + $0x20] sm:$0xff] 0.0
      %516 = vst [vmem:[#allocation3 + $0x8] sm:$0xff] %v510
      %517 = vst [vmem:[#allocation3 + $0x28] sm:$0xff] %v512
      %518 = vst [vmem:[#allocation3 + $0x10] sm:$0xff] 0.0
      %519 = vst [vmem:[#allocation3 + $0x30] sm:$0xff] 0.0
      %520 = vst [vmem:[#allocation3 + $0x18] sm:$0xff] %v511
      %521 = vst [vmem:[#allocation3 + $0x38] sm:$0xff] %v513
      %v522 = vld [vmem:[%s3] sm:$0xff]
      %v523 = vld [vmem:[%s3 + $0x8] sm:$0xff]
      %v524 = vld [vmem:[#allocation3] sm:$0xff]
      %v525 = vld [vmem:[#allocation3 + $0x8] sm:$0xff]
      %v526 = vld [vmem:[#allocation3 + $0x10] sm:$0xff]
      %v527 = vld [vmem:[#allocation3 + $0x18] sm:$0xff]
      %v528 = vld [vmem:[#allocation3 + $0x20] sm:$0xff]
      %v529 = vld [vmem:[#allocation3 + $0x28] sm:$0xff]
      %v530 = vld [vmem:[#allocation3 + $0x30] sm:$0xff]
      %v531 = vld [vmem:[#allocation3 + $0x38] sm:$0xff]
      %s532 = scalar_lea.vmem %s3, 16
      %v533 = vld [vmem:[%s532] sm:$0xff]
      %v534 = vld [vmem:[%s532 + $0x8] sm:$0xff]
      %543 = vrot.lane.b32.xlu0 %v524, 2
      %v544 = vpop.permute.xlu0 %543
      %545 = vrot.lane.b32.xlu0 %v525, 2
      %v546 = vpop.permute.xlu0 %545
      %547 = vrot.lane.b32.xlu0 %v526, 2
      %v548 = vpop.permute.xlu0 %547
      %549 = vrot.lane.b32.xlu0 %v527, 2
      %v550 = vpop.permute.xlu0 %549
      %551 = vrot.lane.b32.xlu0 %v528, 2
      %v552 = vpop.permute.xlu0 %551
      %553 = vrot.lane.b32.xlu0 %v529, 2
      %v554 = vpop.permute.xlu0 %553
      %555 = vrot.lane.b32.xlu0 %v530, 2
      %v556 = vpop.permute.xlu0 %555
      %557 = vrot.lane.b32.xlu0 %v531, 2
      %v558 = vpop.permute.xlu0 %557
      %v559 = vsel %vm312, %v544, %v546
      %v560 = vsel %vm312, %v548, %v550
      %v561 = vsel %vm312, %v552, %v554
      %v562 = vsel %vm312, %v556, %v558
      %vm567 = vcmask 130048
      %v569 = vsel %vm567, %v533, 0
      %v572 = vsel %vm567, %v534, 0
      %574 = vmatpush.msra.mxu0 0.0
      %575 = vmatpush.msra.mxu0 0.0
      %576 = vmatpush.msra.mxu0 0.0
      %577 = vmatpush.msra.mxu0 0.0
      %578 = vmatpush.msra.mxu0 0.0
      %579 = vmatpush.msra.mxu0 0.0
      %580 = vmatpush.msra.mxu0 0.0
      %581 = vmatpush.msra.mxu0 0.0
      %582 = vmatpush.msra.mxu0 0.0
      %583 = vmatpush.msra.mxu0 0.0
      %584 = vmatpush.msra.mxu0 0.0
      %585 = vmatpush.msra.mxu0 0.0
      %586 = vmatpush.msra.mxu0 0.0
      %587 = vmatpush.msra.mxu0 0.0
      %588 = vmatpush.msra.mxu0 %v561
      %589 = vmatpush.msra.mxu0 %v559
      %590 = vmatmul.f32.gmra.mxu0 %v569
      %v591 = vpop.f32.mrf.mxu0
      %v592 = vadd.f32 0.0, %v591
      %593 = vmatmul.f32.gmra.mxu0 %v572
      %v594 = vpop.f32.mrf.mxu0
      %v595 = vadd.f32 0.0, %v594
      %596 = vdwg.mxu0
      %597 = vmatpush.msra.mxu0 0.0
      %598 = vmatpush.msra.mxu0 0.0
      %599 = vmatpush.msra.mxu0 0.0
      %600 = vmatpush.msra.mxu0 0.0
      %601 = vmatpush.msra.mxu0 0.0
      %602 = vmatpush.msra.mxu0 0.0
      %603 = vmatpush.msra.mxu0 0.0
      %604 = vmatpush.msra.mxu0 0.0
      %605 = vmatpush.msra.mxu0 0.0
      %606 = vmatpush.msra.mxu0 0.0
      %607 = vmatpush.msra.mxu0 0.0
      %608 = vmatpush.msra.mxu0 0.0
      %609 = vmatpush.msra.mxu0 0.0
      %610 = vmatpush.msra.mxu0 0.0
      %611 = vmatpush.msra.mxu0 %v562
      %612 = vmatpush.msra.mxu0 %v560
      %613 = vmatmul.f32.gmra.mxu0 %v569
      %v614 = vpop.f32.mrf.mxu0
      %v615 = vadd.f32 0.0, %v614
      %616 = vmatmul.f32.gmra.mxu0 %v572
      %v617 = vpop.f32.mrf.mxu0
      %v618 = vadd.f32 0.0, %v617
      %619 = vdwg.mxu0
      %620 = vrot.lane.b32.xlu0 %v524, 4
      %v621 = vpop.permute.xlu0 %620
      %622 = vrot.lane.b32.xlu0 %v525, 4
      %v623 = vpop.permute.xlu0 %622
      %624 = vrot.lane.b32.xlu0 %v526, 4
      %v625 = vpop.permute.xlu0 %624
      %626 = vrot.lane.b32.xlu0 %v527, 4
      %v627 = vpop.permute.xlu0 %626
      %628 = vrot.lane.b32.xlu0 %v528, 4
      %v629 = vpop.permute.xlu0 %628
      %630 = vrot.lane.b32.xlu0 %v529, 4
      %v631 = vpop.permute.xlu0 %630
      %632 = vrot.lane.b32.xlu0 %v530, 4
      %v633 = vpop.permute.xlu0 %632
      %634 = vrot.lane.b32.xlu0 %v531, 4
      %v635 = vpop.permute.xlu0 %634
      %v636 = vsel %vm378, %v621, %v623
      %v637 = vsel %vm378, %v625, %v627
      %v638 = vsel %vm378, %v629, %v631
      %v639 = vsel %vm378, %v633, %v635
      %v645 = vsel %vm567, %v522, 0
      %v648 = vsel %vm567, %v523, 0
      %650 = vmatpush.msra.mxu0 0.0
      %651 = vmatpush.msra.mxu0 0.0
      %652 = vmatpush.msra.mxu0 0.0
      %653 = vmatpush.msra.mxu0 0.0
      %654 = vmatpush.msra.mxu0 0.0
      %655 = vmatpush.msra.mxu0 0.0
      %656 = vmatpush.msra.mxu0 0.0
      %657 = vmatpush.msra.mxu0 0.0
      %658 = vmatpush.msra.mxu0 0.0
      %659 = vmatpush.msra.mxu0 0.0
      %660 = vmatpush.msra.mxu0 0.0
      %661 = vmatpush.msra.mxu0 0.0
      %662 = vmatpush.msra.mxu0 0.0
      %663 = vmatpush.msra.mxu0 0.0
      %664 = vmatpush.msra.mxu0 %v638
      %665 = vmatpush.msra.mxu0 %v636
      %666 = vmatmul.f32.gmra.mxu0 %v645
      %v667 = vpop.f32.mrf.mxu0
      %v668 = vadd.f32 %v592, %v667
      %669 = vmatmul.f32.gmra.mxu0 %v648
      %v670 = vpop.f32.mrf.mxu0
      %v671 = vadd.f32 %v595, %v670
      %672 = vdwg.mxu0
      %673 = vmatpush.msra.mxu0 0.0
      %674 = vmatpush.msra.mxu0 0.0
      %675 = vmatpush.msra.mxu0 0.0
      %676 = vmatpush.msra.mxu0 0.0
      %677 = vmatpush.msra.mxu0 0.0
      %678 = vmatpush.msra.mxu0 0.0
      %679 = vmatpush.msra.mxu0 0.0
      %680 = vmatpush.msra.mxu0 0.0
      %681 = vmatpush.msra.mxu0 0.0
      %682 = vmatpush.msra.mxu0 0.0
      %683 = vmatpush.msra.mxu0 0.0
      %684 = vmatpush.msra.mxu0 0.0
      %685 = vmatpush.msra.mxu0 0.0
      %686 = vmatpush.msra.mxu0 0.0
      %687 = vmatpush.msra.mxu0 %v639
      %688 = vmatpush.msra.mxu0 %v637
      %689 = vmatmul.f32.gmra.mxu0 %v645
      %v690 = vpop.f32.mrf.mxu0
      %v691 = vadd.f32 %v615, %v690
      %692 = vmatmul.f32.gmra.mxu0 %v648
      %v693 = vpop.f32.mrf.mxu0
      %v694 = vadd.f32 %v618, %v693
      %695 = vdwg.mxu0
      %s696 = scalar_lea.vmem %s3, 32
      %v697 = vld [vmem:[%s696] sm:$0xff]
      %v698 = vld [vmem:[%s696 + $0x8] sm:$0xff]
      %v700 = vsel %vm567, %v697, 0
      %v703 = vsel %vm567, %v698, 0
      %705 = vmatpush.msra.mxu0 0.0
      %706 = vmatpush.msra.mxu0 0.0
      %707 = vmatpush.msra.mxu0 0.0
      %708 = vmatpush.msra.mxu0 0.0
      %709 = vmatpush.msra.mxu0 0.0
      %710 = vmatpush.msra.mxu0 0.0
      %711 = vmatpush.msra.mxu0 0.0
      %712 = vmatpush.msra.mxu0 0.0
      %713 = vmatpush.msra.mxu0 0.0
      %714 = vmatpush.msra.mxu0 0.0
      %715 = vmatpush.msra.mxu0 0.0
      %716 = vmatpush.msra.mxu0 0.0
      %717 = vmatpush.msra.mxu0 0.0
      %718 = vmatpush.msra.mxu0 0.0
      %719 = vmatpush.msra.mxu0 %v529
      %720 = vmatpush.msra.mxu0 %v525
      %721 = vmatmul.f32.gmra.mxu0 %v700
      %v722 = vpop.f32.mrf.mxu0
      %v723 = vadd.f32 0.0, %v722
      %724 = vmatmul.f32.gmra.mxu0 %v703
      %v725 = vpop.f32.mrf.mxu0
      %v726 = vadd.f32 0.0, %v725
      %727 = vdwg.mxu0
      %728 = vmatpush.msra.mxu0 0.0
      %729 = vmatpush.msra.mxu0 0.0
      %730 = vmatpush.msra.mxu0 0.0
      %731 = vmatpush.msra.mxu0 0.0
      %732 = vmatpush.msra.mxu0 0.0
      %733 = vmatpush.msra.mxu0 0.0
      %734 = vmatpush.msra.mxu0 0.0
      %735 = vmatpush.msra.mxu0 0.0
      %736 = vmatpush.msra.mxu0 0.0
      %737 = vmatpush.msra.mxu0 0.0
      %738 = vmatpush.msra.mxu0 0.0
      %739 = vmatpush.msra.mxu0 0.0
      %740 = vmatpush.msra.mxu0 0.0
      %741 = vmatpush.msra.mxu0 0.0
      %742 = vmatpush.msra.mxu0 %v531
      %743 = vmatpush.msra.mxu0 %v527
      %744 = vmatmul.f32.gmra.mxu0 %v700
      %v745 = vpop.f32.mrf.mxu0
      %v746 = vadd.f32 0.0, %v745
      %747 = vmatmul.f32.gmra.mxu0 %v703
      %v748 = vpop.f32.mrf.mxu0
      %v749 = vadd.f32 0.0, %v748
      %750 = vdwg.mxu0
      %v751 = vadd.f32 %v668, %v723
      %v752 = vadd.f32 %v691, %v746
      %v753 = vadd.f32 %v671, %v726
      %v754 = vadd.f32 %v694, %v749
      %v755 = vld [vmem:[%s4] sm:$0xff]
      %v756 = vld [vmem:[%s4 + $0x8] sm:$0xff]
      %758 = vset.pattern.permute.xlu0 0
      %759 = vperm.xlu0 %758, %v755
      %v760 = vpop.permute.xlu0 %759
      %763 = vset.pattern.permute.xlu0 0
      %764 = vperm.xlu0 %763, %v756
      %v765 = vpop.permute.xlu0 %764
      %v767 = vadd.f32 %v751, %v760
      %v768 = vadd.f32 %v752, %v760
      %v769 = vadd.f32 %v753, %v765
      %v770 = vadd.f32 %v754, %v765
      %v771 = vmax.f32 %v767, 0.0
      %v772 = vmax.f32 %v768, 0.0
      %v773 = vmax.f32 %v769, 0.0
      %v774 = vmax.f32 %v770, 0.0
      %v775 = vld [vmem:[%s275] sm:$0xff]
      %v776 = vld [vmem:[%s5] sm:$0xff]
      %v777 = vld [vmem:[%s5 + $0x8] sm:$0xff]
      %v778 = vld [vmem:[%s6] sm:$0xff]
      %v779 = vld [vmem:[%s6 + $0x8] sm:$0xff]
      %781 = vset.pattern.permute.xlu0 0
      %782 = vperm.xlu0 %781, %v778
      %v783 = vpop.permute.xlu0 %782
      %786 = vset.pattern.permute.xlu0 0
      %787 = vperm.xlu0 %786, %v779
      %v788 = vpop.permute.xlu0 %787
      %v791 = vsel %vm317, %v776, 0
      %v794 = vsel %vm317, %v777, 0
      %796 = vmatpush.msra.mxu0 0.0
      %797 = vmatpush.msra.mxu0 0.0
      %798 = vmatpush.msra.mxu0 0.0
      %799 = vmatpush.msra.mxu0 0.0
      %800 = vmatpush.msra.mxu0 0.0
      %801 = vmatpush.msra.mxu0 0.0
      %802 = vmatpush.msra.mxu0 0.0
      %803 = vmatpush.msra.mxu0 0.0
      %804 = vmatpush.msra.mxu0 0.0
      %805 = vmatpush.msra.mxu0 0.0
      %806 = vmatpush.msra.mxu0 0.0
      %807 = vmatpush.msra.mxu0 0.0
      %808 = vmatpush.msra.mxu0 0.0
      %809 = vmatpush.msra.mxu0 0.0
      %810 = vmatpush.msra.mxu0 0.0
      %811 = vmatpush.msra.mxu0 %v775
      %812 = vmatmul.f32.gmra.mxu0 %v791
      %v813 = vpop.f32.mrf.mxu0
      %v814 = vadd.f32 %v783, %v813
      %815 = vmatmul.f32.gmra.mxu0 %v794
      %v816 = vpop.f32.mrf.mxu0
      %v817 = vadd.f32 %v788, %v816
      %818 = vdwg.mxu0
      %v819 = vadd.f32 %v771, %v814
      %v820 = vadd.f32 %v773, %v817
      %821 = vst [vmem:[%s282] sm:$0xff] %v819
      %822 = vst [vmem:[%s282 + $0x8] sm:$0xff] %v820
      %v823 = vld [vmem:[%s288] sm:$0xff]
      %v824 = vld [vmem:[%s5] sm:$0xff]
      %v825 = vld [vmem:[%s5 + $0x8] sm:$0xff]
      %v826 = vld [vmem:[%s6] sm:$0xff]
      %v827 = vld [vmem:[%s6 + $0x8] sm:$0xff]
      %829 = vset.pattern.permute.xlu0 0
      %830 = vperm.xlu0 %829, %v826
      %v831 = vpop.permute.xlu0 %830
      %834 = vset.pattern.permute.xlu0 0
      %835 = vperm.xlu0 %834, %v827
      %v836 = vpop.permute.xlu0 %835
      %v839 = vsel %vm317, %v824, 0
      %v842 = vsel %vm317, %v825, 0
      %844 = vmatpush.msra.mxu0 0.0
      %845 = vmatpush.msra.mxu0 0.0
      %846 = vmatpush.msra.mxu0 0.0
      %847 = vmatpush.msra.mxu0 0.0
      %848 = vmatpush.msra.mxu0 0.0
      %849 = vmatpush.msra.mxu0 0.0
      %850 = vmatpush.msra.mxu0 0.0
      %851 = vmatpush.msra.mxu0 0.0
      %852 = vmatpush.msra.mxu0 0.0
      %853 = vmatpush.msra.mxu0 0.0
      %854 = vmatpush.msra.mxu0 0.0
      %855 = vmatpush.msra.mxu0 0.0
      %856 = vmatpush.msra.mxu0 0.0
      %857 = vmatpush.msra.mxu0 0.0
      %858 = vmatpush.msra.mxu0 0.0
      %859 = vmatpush.msra.mxu0 %v823
      %860 = vmatmul.f32.gmra.mxu0 %v839
      %v861 = vpop.f32.mrf.mxu0
      %v862 = vadd.f32 %v831, %v861
      %863 = vmatmul.f32.gmra.mxu0 %v842
      %v864 = vpop.f32.mrf.mxu0
      %v865 = vadd.f32 %v836, %v864
      %866 = vdwg.mxu0
      %v867 = vadd.f32 %v772, %v862
      %v868 = vadd.f32 %v774, %v865
      %s869 = scalar_lea.vmem %s282, 16
      %870 = vst [vmem:[%s869] sm:$0xff] %v867
      %871 = vst [vmem:[%s869 + $0x8] sm:$0xff] %v868
      %s872 = smul.u32 2, %s18
      %p873 = scmp.lt.s32.totalorder %s872, 3
      %s874 = scalar_select %p873, %s872, 3
      %s875 = smul.addr %s874, 2
      %s876 = smul.addr %s875, 8
      %s877 = scalar_lea.vmem %s7, %s876
      // Predicated region
      $region49: #{temporal_conv_net_fwd.4} parent=47 // pred_check
        %p878 = pneg %p188
      $region50: #{temporal_conv_net_fwd.4} parent=47 // pred_check_branch
        %880 = sbr.rel (%p878) target = $region52
      $region51: #{temporal_conv_net_fwd.4} parent=47 // pred_region
        %s881 = smul.u32 2, %s18
      $region52: #{temporal_conv_net_fwd.4} parent=47 // pred_fallthru
        _
    $region48: #{temporal_conv_net_fwd.4} parent=5 // pred_fallthru
      _
    %p882 = scmp.le.s32.totalorder 2, %s13
    // Predicated region
    $region53: #{temporal_conv_net_fwd.4} parent=5 // pred_check
      %p883 = pneg %p882
    $region54: #{temporal_conv_net_fwd.4} parent=5 // pred_check_branch
      %885 = sbr.rel (%p883) target = $region56
    $region55: #{temporal_conv_net_fwd.4} parent=5 // pred_region
      %s886 = ssub.s32 %s13, 2
      // Predicated region
      $region57: #{temporal_conv_net_fwd.4} parent=55 // pred_check
        %p887 = pneg %p194
      $region58: #{temporal_conv_net_fwd.4} parent=55 // pred_check_branch
        %889 = sbr.rel (%p887) target = $region60
      $region59: #{temporal_conv_net_fwd.4} parent=55 // pred_region
        %s890 = smul.u32 2, %s19
        %p891 = scmp.lt.s32.totalorder %s890, 3
        %s892 = scalar_select %p891, %s890, 3
        %s893 = smul.addr %s892, 2
        %s894 = smul.addr %s893, 8
        %s895 = scalar_lea.vmem %s7, %s894
      $region60: #{temporal_conv_net_fwd.4} parent=55 // pred_fallthru
        _
    $region56: #{temporal_conv_net_fwd.4} parent=5 // pred_fallthru
      _
  $region6: #{temporal_conv_net_fwd.4} parent=0 // loop_footer
    %s17 = sadd.s32 1, %s13
  $region7: #{temporal_conv_net_fwd.4} parent=0 // loop_footer_branch
    %12 = sbr.rel target = $region3
  $region8: #{temporal_conv_net_fwd.4} parent=0 // loop_exit
    _

</llo_original>
